<compile_context>
chip_gen: v5e
topology: v5e:2x2
jax: 0.10.0
libtpu: 0.0.40
codegen_flags: <defaults>
</compile_context>

<pallas_src>
import jax
import jax.numpy as jnp
from jax import lax
from jax.experimental import pallas as pl
from jax.experimental.pallas import tpu as pltpu


# ---------------------------------------------------------------------------
# Shared layout helpers
# ---------------------------------------------------------------------------
def _bias_offsets(c1, c2, lat):
    """128-aligned lane offsets of the packed small-parameter slab."""
    def rup(n):
        return ((n + 127) // 128) * 128
    o_b1 = 0
    o_b2 = o_b1 + rup(c1)
    o_hb1 = o_b2 + rup(c2)
    o_hb2 = o_hb1 + rup(lat)
    o_hw3 = o_hb2 + rup(lat)
    o_hb3 = o_hw3 + rup(lat)
    total = o_hb3 + 1
    return o_b1, o_b2, o_hb1, o_hb2, o_hw3, o_hb3, total


# ---------------------------------------------------------------------------
# One-time parameter preparation (layout / dtype only; semantics preserved)
# ---------------------------------------------------------------------------
def prepare_params(params, state_hw, kernel_size=3, stride=2):
    H, W = state_hw
    K, S = kernel_size, stride
    OH1, OW1 = (H - K) // S + 1, (W - K) // S + 1
    OH2, OW2 = (OH1 - K) // S + 1, (OW1 - K) // S + 1
    C1 = params["w1"].shape[-1]
    C2 = params["w2"].shape[-1]
    LAT = params["hw2"].shape[0]
    f32, bf16 = jnp.float32, jnp.bfloat16

    # hw1b rows are in PyTorch NCHW-flatten order (c2, oh2, ow2); the kernel's
    # lane-dense state latent is ordered (oh2, ow2, c2) -> permute the rows once.
    hw1b_perm = (params["hw1b"].reshape(C2, OH2, OW2, LAT)
                 .transpose(1, 2, 0, 3)
                 .reshape(OH2 * OW2 * C2, LAT))

    # Pack the six tiny parameters into one 128-aligned (1, N) slab.
    o_b1, o_b2, o_hb1, o_hb2, o_hw3, o_hb3, total = _bias_offsets(C1, C2, LAT)
    bias_pack = jnp.zeros((1, total), f32)
    bias_pack = bias_pack.at[0, o_b1:o_b1 + C1].set(params["b1"].astype(f32))
    bias_pack = bias_pack.at[0, o_b2:o_b2 + C2].set(params["b2"].astype(f32))
    bias_pack = bias_pack.at[0, o_hb1:o_hb1 + LAT].set(params["hb1"].astype(f32))
    bias_pack = bias_pack.at[0, o_hb2:o_hb2 + LAT].set(params["hb2"].astype(f32))
    bias_pack = bias_pack.at[0, o_hw3:o_hw3 + LAT].set(params["hw3"][:, 0].astype(f32))
    bias_pack = bias_pack.at[0, o_hb3:o_hb3 + 1].set(params["hb3"].astype(f32))

    return {
        # Big matmul operands in bf16 (half the DMA, native MXU inputs);
        # all accumulation in-kernel is f32 via preferred_element_type.
        "w1": params["w1"].reshape(-1, C1).astype(bf16),     # (K*K*Cin, 32) rows (ki,kj,ci)
        "w2": params["w2"].reshape(-1, C2).astype(bf16),     # (K*K*32, 64)
        "hw1b": hw1b_perm.astype(bf16),                      # (576, 128), rows (oh2,ow2,c2)
        "hw2": params["hw2"].astype(bf16),                   # (128, 128)
        # Embedding + first-layer action weight folded into one lookup table.
        "embw1": (params["emb"].astype(f32) @ params["hw1a"].astype(f32)),  # (A, 128)
        "bias_pack": bias_pack,                              # (1, ~641) f32
    }


# ---------------------------------------------------------------------------
# Fused forward: one pallas_call
# ---------------------------------------------------------------------------
def reward_model_forward(prep, state_nchw, action, kernel_size=3, stride=2):
    B, C, H, W = state_nchw.shape
    K, S = kernel_size, stride
    assert S == 2 and W % 2 == 0, "kernel assumes stride 2 and even width"
    OH1, OW1 = (H - K) // S + 1, (W - K) // S + 1
    OH2, OW2 = (OH1 - K) // S + 1, (OW1 - K) // S + 1
    C1 = prep["w1"].shape[1]
    C2 = prep["w2"].shape[1]
    LAT = prep["hw2"].shape[0]
    NPOS = OH2 * OW2
    FLAT = NPOS * C2

    # Row bookkeeping for the over-fetched strided im2col.
    # Valid conv1 position (b, oh1, ow1) lives at row t = b*TB1 + oh1*W + ow1 of the
    # conv1 patch matrix / y1; valid conv2 position (b, oh2, ow2) lives at row
    # u = b*TB2 + oh2*W + ow2 of the conv2 patch matrix / y2.
    TB1 = H * (W // 2)                   # per-batch row block of x_pairs / y1
    assert TB1 % S == 0
    TB2 = TB1 // S
    T1 = (B - 1) * TB1 + (OH1 - 1) * W + (OW1 - 1) + 1   # rows of patches1 / y1
    T2 = (B - 1) * TB2 + (OH2 - 1) * W + (OW2 - 1) + 1   # rows of patches2 / y2

    o_b1, o_b2, o_hb1, o_hb2, o_hw3, o_hb3, _ = _bias_offsets(C1, C2, LAT)

    # Only per-call host glue: NCHW -> NHWC, reshaped so each row holds one
    # (w-pair, channel) group: rows = (b, h, w//2), lanes = (w % 2) * C + c.
    # TODO(synk): accept NHWC input to drop this last non-fused host op.
    x_pairs = jnp.transpose(state_nchw, (0, 2, 3, 1)).reshape(B * TB1, 2 * C)
    x_pairs = x_pairs.astype(jnp.float32)

    f32, bf16 = jnp.float32, jnp.bfloat16

    def kernel(act_ref,                                            # SMEM (B,) int32
               x_ref, w1_ref, w2_ref, hw1b_ref, hw2_ref, embw1_ref, bias_ref,
               o_ref,                                              # (B, 1) f32
               p1_ref, y1_ref, p2_ref, y2_ref, s_ref, hact_ref):   # VMEM scratch

        # ----- conv1 (3x3, stride 2, VALID) as strided im2col + ONE dot ------
        # Tap (ki, kj) of position t sits at x_pairs row (ki*(W//2) + kj//2) + t,
        # lanes (kj%2)*C .. +C.  Taps (ki,0) and (ki,1) share rows -> fused copy.
        for ki in range(K):
            kj = 0
            while kj < K:
                width = 2 if kj + 1 < K else 1
                src = ki * (W // 2) + kj // 2
                dlo = (ki * K + kj) * C
                p1_ref[:, dlo:dlo + width * C] = (
                    x_ref[pl.ds(src, T1), 0:width * C])
                kj += width
        b1 = bias_ref[:, o_b1:o_b1 + C1]
        y1 = jnp.dot(p1_ref[...].astype(bf16), w1_ref[...],
                     preferred_element_type=f32)                   # (T1, 32)
        y1_ref[...] = jnp.maximum(y1 + b1, 0.0)

        # ----- conv2 (3x3, stride 2, VALID): 9 strided tap copies + ONE dot ---
        # Tap (ki, kj) of position u sits at y1 row (ki*W + kj) + S*u.
        for ki in range(K):
            for kj in range(K):
                dlo = (ki * K + kj) * C1
                p2_ref[:, dlo:dlo + C1] = (
                    y1_ref[pl.ds(ki * W + kj, T2, stride=S), :])
        b2 = bias_ref[:, o_b2:o_b2 + C2]
        y2 = jnp.dot(p2_ref[...].astype(bf16), w2_ref[...],
                     preferred_element_type=f32)                   # (T2, 64)
        y2_ref[...] = jnp.maximum(y2 + b2, 0.0)

        # ----- flatten: gather the NPOS valid rows per batch into a lane-dense
        #       (B, NPOS*C2) slab so the head is a single K=576 matmul ---------
        for oh2 in range(OH2):
            for ow2 in range(OW2):
                pos = oh2 * OW2 + ow2
                s_ref[:, pos * C2:(pos + 1) * C2] = (
                    y2_ref[pl.ds(oh2 * W + ow2, B, stride=TB2), :])

        # ----- action: Embedding + W1a folded -> single row lookup per sample -
        # (PyTorch's .squeeze() is a no-op for B>1, action_latent>1, as here.)
        for b in range(B):
            hact_ref[pl.ds(b, 1), :] = embw1_ref[pl.ds(act_ref[b], 1), :]

        # ----- MLP head --------------------------------------------------------
        h = hact_ref[...] + bias_ref[:, o_hb1:o_hb1 + LAT]
        h = h + jnp.dot(s_ref[...].astype(bf16), hw1b_ref[...],
                        preferred_element_type=f32)                # (B, 128)
        h = jnp.maximum(h, 0.0)
        h = jnp.dot(h.astype(bf16), hw2_ref[...], preferred_element_type=f32)
        h = jnp.maximum(h + bias_ref[:, o_hb2:o_hb2 + LAT], 0.0)
        # Linear(128, 1) as VPU multiply + lane reduction (avoids an N=1 MXU matmul).
        hw3 = bias_ref[:, o_hw3:o_hw3 + LAT]
        hb3 = bias_ref[:, o_hb3:o_hb3 + 1]
        o_ref[...] = jnp.sum(h * hw3, axis=-1, keepdims=True) + hb3

    inputs = (x_pairs, prep["w1"], prep["w2"], prep["hw1b"], prep["hw2"],
              prep["embw1"], prep["bias_pack"])

    def full_spec(shape):
        return pl.BlockSpec(shape, lambda i, act, _n=len(shape): (0,) * _n)

    return pl.pallas_call(
        kernel,
        out_shape=jax.ShapeDtypeStruct((B, 1), jnp.float32),
        grid_spec=pltpu.PrefetchScalarGridSpec(
            num_scalar_prefetch=1,               # action indices -> SMEM
            grid=(1,),
            in_specs=[full_spec(t.shape) for t in inputs],
            out_specs=full_spec((B, 1)),
            scratch_shapes=[
                pltpu.VMEM((T1, K * K * C), jnp.float32),    # conv1 im2col patches
                pltpu.VMEM((T1, C1), jnp.float32),           # conv1 output (relu'd)
                pltpu.VMEM((T2, K * K * C1), jnp.float32),   # conv2 im2col patches
                pltpu.VMEM((T2, C2), jnp.float32),           # conv2 output (relu'd)
                pltpu.VMEM((B, FLAT), jnp.float32),          # lane-dense state latent
                pltpu.VMEM((B, LAT), jnp.float32),           # action latent @ W1a
            ]),
        compiler_params=pltpu.CompilerParams(
            dimension_semantics=("arbitrary",)),
    )(action.astype(jnp.int32), *inputs)


# ---------------------------------------------------------------------------
# Pure-JAX reference with the ORIGINAL (PyTorch-layout) parameters
# ---------------------------------------------------------------------------
def reference_forward(params, state_nchw, action):
    act = params["emb"][action.astype(jnp.int32)]
    x = jnp.transpose(state_nchw, (0, 2, 3, 1))
    dn = ("NHWC", "HWIO", "NHWC")
    y1 = lax.conv_general_dilated(x, params["w1"], (2, 2), "VALID",
                                  dimension_numbers=dn) + params["b1"]
    y1 = jnp.maximum(y1, 0.0)
    y2 = lax.conv_general_dilated(y1, params["w2"], (2, 2), "VALID",
                                  dimension_numbers=dn) + params["b2"]
    y2 = jnp.maximum(y2, 0.0)
    B = y2.shape[0]
    s = jnp.transpose(y2, (0, 3, 1, 2)).reshape(B, -1)   # nn.Flatten on NCHW
    xcat = jnp.concatenate([act, s], axis=-1)
    w1 = jnp.concatenate([params["hw1a"], params["hw1b"]], axis=0)
    h = jnp.maximum(xcat @ w1 + params["hb1"], 0.0)
    h = jnp.maximum(h @ params["hw2"] + params["hb2"], 0.0)
    return h @ params["hw3"] + params["hb3"]


# ---------------------------------------------------------------------------
# Deterministic synthetic parameters (PyTorch layout, transposed Linear weights)
# ---------------------------------------------------------------------------
def init_params(key, n_input_channels, num_actions, n_flatten,
                action_latent=4, latent_dim=128):
    ks = jax.random.split(key, 12)
    f32 = jnp.float32

    def rnd(k, shape, scale=0.1):
        return (scale * jax.random.normal(k, shape)).astype(f32)

    return {
        "w1": rnd(ks[0], (3, 3, n_input_channels, 32)),   # HWIO
        "b1": rnd(ks[1], (32,)),
        "w2": rnd(ks[2], (3, 3, 32, 64)),
        "b2": rnd(ks[3], (64,)),
        "emb": rnd(ks[4], (num_actions, action_latent), scale=1.0),
        "hw1a": rnd(ks[5], (action_latent, latent_dim)),
        "hw1b": rnd(ks[6], (n_flatten, latent_dim)),
        "hb1": rnd(ks[7], (latent_dim,)),
        "hw2": rnd(ks[8], (latent_dim, latent_dim)),
        "hb2": rnd(ks[9], (latent_dim,)),
        "hw3": rnd(ks[10], (latent_dim, 1)),
        "hb3": rnd(ks[11], (1,)),
    }


if __name__ == "__main__":
    B, C, H, W = 2, 4, 16, 16
    num_actions = 6

    oh1 = (H - 3) // 2 + 1          # 7
    oh2 = (oh1 - 3) // 2 + 1        # 3
    n_flatten = 64 * oh2 * oh2      # 576

    key = jax.random.PRNGKey(0)
    kp, ks, ka = jax.random.split(key, 3)
    params = init_params(kp, C, num_actions, n_flatten)
    prep = prepare_params(params, (H, W))   # one-time weight re-layout (host)

    state = jax.random.uniform(ks, (B, C, H, W), dtype=jnp.float32)
    action = jax.random.randint(ka, (B,), 0, num_actions, dtype=jnp.int32)

    out = jax.jit(reward_model_forward)(prep, state, action)
    out = jax.block_until_ready(out)
    assert out.shape == (B, 1), out.shape

    ref = jax.jit(reference_forward)(params, state, action)
    ref = jax.block_until_ready(ref)
    # Tolerance covers bf16 MXU operands (kernel) vs default-precision f32 reference.
    assert jnp.allclose(out, ref, rtol=2e-2, atol=2e-2), (out, ref)

    print("KERNEL_OK")
</pallas_src>

<mosaic_0001>
module attributes {stable_mosaic.version = 11 : i64} {
  func.func @kernel(%arg0: i32, %arg1: memref<2xi32, #tpu.memory_space<smem>>, %arg2: memref<256x8xf32, #tpu.memory_space<vmem>>, %arg3: memref<36x32xbf16, #tpu.memory_space<vmem>>, %arg4: memref<288x64xbf16, #tpu.memory_space<vmem>>, %arg5: memref<576x128xbf16, #tpu.memory_space<vmem>>, %arg6: memref<128x128xbf16, #tpu.memory_space<vmem>>, %arg7: memref<6x128xf32, #tpu.memory_space<vmem>>, %arg8: memref<1x641xf32, #tpu.memory_space<vmem>>, %arg9: memref<2x1xf32, #tpu.memory_space<vmem>>, %arg10: memref<231x36xf32, #tpu.memory_space<vmem>>, %arg11: memref<231x32xf32, #tpu.memory_space<vmem>>, %arg12: memref<99x288xf32, #tpu.memory_space<vmem>>, %arg13: memref<99x64xf32, #tpu.memory_space<vmem>>, %arg14: memref<2x576xf32, #tpu.memory_space<vmem>>, %arg15: memref<2x128xf32, #tpu.memory_space<vmem>>) attributes {dimension_semantics = [#tpu.dimension_semantics<arbitrary>], iteration_bounds = array<i64: 1>, scalar_prefetch = 1 : i64, scratch_operands = 6 : i64, tpu.core_type = #tpu.core_type<tc>, window_params = [{pipeline_mode = #tpu.pipeline_mode<synchronous>, transform_indices = @transform_0, window_bounds = array<i64: 256, 8>}, {pipeline_mode = #tpu.pipeline_mode<synchronous>, transform_indices = @transform_1, window_bounds = array<i64: 36, 32>}, {pipeline_mode = #tpu.pipeline_mode<synchronous>, transform_indices = @transform_2, window_bounds = array<i64: 288, 64>}, {pipeline_mode = #tpu.pipeline_mode<synchronous>, transform_indices = @transform_3, window_bounds = array<i64: 576, 128>}, {pipeline_mode = #tpu.pipeline_mode<synchronous>, transform_indices = @transform_4, window_bounds = array<i64: 128, 128>}, {pipeline_mode = #tpu.pipeline_mode<synchronous>, transform_indices = @transform_5, window_bounds = array<i64: 6, 128>}, {pipeline_mode = #tpu.pipeline_mode<synchronous>, transform_indices = @transform_6, window_bounds = array<i64: 1, 641>}, {pipeline_mode = #tpu.pipeline_mode<synchronous>, transform_indices = @transform_7, window_bounds = array<i64: 2, 1>}]} {
    %c0 = arith.constant 0 : index
    %c0_0 = arith.constant 0 : index
    %0 = vector.load %arg2[%c0, %c0_0] : memref<256x8xf32, #tpu.memory_space<vmem>>, vector<231x8xf32>
    %c0_1 = arith.constant 0 : index
    %c0_2 = arith.constant 0 : index
    %1 = vector.load %arg10[%c0_1, %c0_2] : memref<231x36xf32, #tpu.memory_space<vmem>>, vector<231x8xf32>
    tpu.vector_store %arg10[%c0_1, %c0_2], %0 {strides = array<i32>} : memref<231x36xf32, #tpu.memory_space<vmem>>, vector<231x8xf32>,
    %c1 = arith.constant 1 : index
    %c0_3 = arith.constant 0 : index
    %2 = vector.load %arg2[%c1, %c0_3] : memref<256x8xf32, #tpu.memory_space<vmem>>, vector<231x4xf32>
    %c0_4 = arith.constant 0 : index
    %c8 = arith.constant 8 : index
    %3 = vector.load %arg10[%c0_4, %c8] : memref<231x36xf32, #tpu.memory_space<vmem>>, vector<231x4xf32>
    tpu.vector_store %arg10[%c0_4, %c8], %2 {strides = array<i32>} : memref<231x36xf32, #tpu.memory_space<vmem>>, vector<231x4xf32>,
    %c8_5 = arith.constant 8 : index
    %c0_6 = arith.constant 0 : index
    %4 = vector.load %arg2[%c8_5, %c0_6] : memref<256x8xf32, #tpu.memory_space<vmem>>, vector<231x8xf32>
    %c0_7 = arith.constant 0 : index
    %c12 = arith.constant 12 : index
    %5 = vector.load %arg10[%c0_7, %c12] : memref<231x36xf32, #tpu.memory_space<vmem>>, vector<231x8xf32>
    tpu.vector_store %arg10[%c0_7, %c12], %4 {strides = array<i32>} : memref<231x36xf32, #tpu.memory_space<vmem>>, vector<231x8xf32>,
    %c9 = arith.constant 9 : index
    %c0_8 = arith.constant 0 : index
    %6 = vector.load %arg2[%c9, %c0_8] : memref<256x8xf32, #tpu.memory_space<vmem>>, vector<231x4xf32>
    %c0_9 = arith.constant 0 : index
    %c20 = arith.constant 20 : index
    %7 = vector.load %arg10[%c0_9, %c20] : memref<231x36xf32, #tpu.memory_space<vmem>>, vector<231x4xf32>
    tpu.vector_store %arg10[%c0_9, %c20], %6 {strides = array<i32>} : memref<231x36xf32, #tpu.memory_space<vmem>>, vector<231x4xf32>,
    %c16 = arith.constant 16 : index
    %c0_10 = arith.constant 0 : index
    %8 = vector.load %arg2[%c16, %c0_10] : memref<256x8xf32, #tpu.memory_space<vmem>>, vector<231x8xf32>
    %c0_11 = arith.constant 0 : index
    %c24 = arith.constant 24 : index
    %9 = vector.load %arg10[%c0_11, %c24] : memref<231x36xf32, #tpu.memory_space<vmem>>, vector<231x8xf32>
    tpu.vector_store %arg10[%c0_11, %c24], %8 {strides = array<i32>} : memref<231x36xf32, #tpu.memory_space<vmem>>, vector<231x8xf32>,
    %c17 = arith.constant 17 : index
    %c0_12 = arith.constant 0 : index
    %10 = vector.load %arg2[%c17, %c0_12] : memref<256x8xf32, #tpu.memory_space<vmem>>, vector<231x4xf32>
    %c0_13 = arith.constant 0 : index
    %c32 = arith.constant 32 : index
    %11 = vector.load %arg10[%c0_13, %c32] : memref<231x36xf32, #tpu.memory_space<vmem>>, vector<231x4xf32>
    tpu.vector_store %arg10[%c0_13, %c32], %10 {strides = array<i32>} : memref<231x36xf32, #tpu.memory_space<vmem>>, vector<231x4xf32>,
    %c0_14 = arith.constant 0 : index
    %c0_15 = arith.constant 0 : index
    %12 = vector.load %arg8[%c0_14, %c0_15] : memref<1x641xf32, #tpu.memory_space<vmem>>, vector<1x32xf32>
    %c0_16 = arith.constant 0 : index
    %c0_17 = arith.constant 0 : index
    %13 = vector.load %arg10[%c0_16, %c0_17] : memref<231x36xf32, #tpu.memory_space<vmem>>, vector<231x36xf32>
    %14 = arith.truncf %13 : vector<231x36xf32> to vector<231x36xbf16>
    %c0_18 = arith.constant 0 : index
    %c0_19 = arith.constant 0 : index
    %15 = vector.load %arg3[%c0_18, %c0_19] : memref<36x32xbf16, #tpu.memory_space<vmem>>, vector<36x32xbf16>
    %cst = arith.constant dense<0.000000e+00> : vector<231x32xf32>
    %16 = tpu.matmul %14, %15, %cst {dimension_numbers = #tpu.dot_dimension_numbers<[1], [0], [0], [1], [0, 0, 1, 1], [], []>} : vector<231x36xbf16>, vector<36x32xbf16>, vector<231x32xf32> -> vector<231x32xf32>
    %17 = vector.broadcast %12 : vector<1x32xf32> to vector<231x32xf32>
    %18 = arith.addf %16, %17 : vector<231x32xf32>
    %cst_20 = arith.constant 0.000000e+00 : f32
    %19 = vector.broadcast %cst_20 : f32 to vector<231x32xf32>
    %20 = arith.maximumf %18, %19 : vector<231x32xf32>
    %c0_21 = arith.constant 0 : index
    %c0_22 = arith.constant 0 : index
    %21 = vector.load %arg11[%c0_21, %c0_22] : memref<231x32xf32, #tpu.memory_space<vmem>>, vector<231x32xf32>
    tpu.vector_store %arg11[%c0_21, %c0_22], %20 {strides = array<i32>} : memref<231x32xf32, #tpu.memory_space<vmem>>, vector<231x32xf32>,
    %c0_23 = arith.constant 0 : index
    %c0_24 = arith.constant 0 : index
    %22 = tpu.strided_load %arg11[%c0_23, %c0_24] {strides = array<i32: 2, 1>} : memref<231x32xf32, #tpu.memory_space<vmem>>, vector<99x32xf32>
    %c0_25 = arith.constant 0 : index
    %c0_26 = arith.constant 0 : index
    %23 = vector.load %arg12[%c0_25, %c0_26] : memref<99x288xf32, #tpu.memory_space<vmem>>, vector<99x32xf32>
    tpu.vector_store %arg12[%c0_25, %c0_26], %22 {strides = array<i32>} : memref<99x288xf32, #tpu.memory_space<vmem>>, vector<99x32xf32>,
    %c1_27 = arith.constant 1 : index
    %c0_28 = arith.constant 0 : index
    %24 = tpu.strided_load %arg11[%c1_27, %c0_28] {strides = array<i32: 2, 1>} : memref<231x32xf32, #tpu.memory_space<vmem>>, vector<99x32xf32>
    %c0_29 = arith.constant 0 : index
    %c32_30 = arith.constant 32 : index
    %25 = vector.load %arg12[%c0_29, %c32_30] : memref<99x288xf32, #tpu.memory_space<vmem>>, vector<99x32xf32>
    tpu.vector_store %arg12[%c0_29, %c32_30], %24 {strides = array<i32>} : memref<99x288xf32, #tpu.memory_space<vmem>>, vector<99x32xf32>,
    %c2 = arith.constant 2 : index
    %c0_31 = arith.constant 0 : index
    %26 = tpu.strided_load %arg11[%c2, %c0_31] {strides = array<i32: 2, 1>} : memref<231x32xf32, #tpu.memory_space<vmem>>, vector<99x32xf32>
    %c0_32 = arith.constant 0 : index
    %c64 = arith.constant 64 : index
    %27 = vector.load %arg12[%c0_32, %c64] : memref<99x288xf32, #tpu.memory_space<vmem>>, vector<99x32xf32>
    tpu.vector_store %arg12[%c0_32, %c64], %26 {strides = array<i32>} : memref<99x288xf32, #tpu.memory_space<vmem>>, vector<99x32xf32>,
    %c16_33 = arith.constant 16 : index
    %c0_34 = arith.constant 0 : index
    %28 = tpu.strided_load %arg11[%c16_33, %c0_34] {strides = array<i32: 2, 1>} : memref<231x32xf32, #tpu.memory_space<vmem>>, vector<99x32xf32>
    %c0_35 = arith.constant 0 : index
    %c96 = arith.constant 96 : index
    %29 = vector.load %arg12[%c0_35, %c96] : memref<99x288xf32, #tpu.memory_space<vmem>>, vector<99x32xf32>
    tpu.vector_store %arg12[%c0_35, %c96], %28 {strides = array<i32>} : memref<99x288xf32, #tpu.memory_space<vmem>>, vector<99x32xf32>,
    %c17_36 = arith.constant 17 : index
    %c0_37 = arith.constant 0 : index
    %30 = tpu.strided_load %arg11[%c17_36, %c0_37] {strides = array<i32: 2, 1>} : memref<231x32xf32, #tpu.memory_space<vmem>>, vector<99x32xf32>
    %c0_38 = arith.constant 0 : index
    %c128 = arith.constant 128 : index
    %31 = vector.load %arg12[%c0_38, %c128] : memref<99x288xf32, #tpu.memory_space<vmem>>, vector<99x32xf32>
    tpu.vector_store %arg12[%c0_38, %c128], %30 {strides = array<i32>} : memref<99x288xf32, #tpu.memory_space<vmem>>, vector<99x32xf32>,
    %c18 = arith.constant 18 : index
    %c0_39 = arith.constant 0 : index
    %32 = tpu.strided_load %arg11[%c18, %c0_39] {strides = array<i32: 2, 1>} : memref<231x32xf32, #tpu.memory_space<vmem>>, vector<99x32xf32>
    %c0_40 = arith.constant 0 : index
    %c160 = arith.constant 160 : index
    %33 = vector.load %arg12[%c0_40, %c160] : memref<99x288xf32, #tpu.memory_space<vmem>>, vector<99x32xf32>
    tpu.vector_store %arg12[%c0_40, %c160], %32 {strides = array<i32>} : memref<99x288xf32, #tpu.memory_space<vmem>>, vector<99x32xf32>,
    %c32_41 = arith.constant 32 : index
    %c0_42 = arith.constant 0 : index
    %34 = tpu.strided_load %arg11[%c32_41, %c0_42] {strides = array<i32: 2, 1>} : memref<231x32xf32, #tpu.memory_space<vmem>>, vector<99x32xf32>
    %c0_43 = arith.constant 0 : index
    %c192 = arith.constant 192 : index
    %35 = vector.load %arg12[%c0_43, %c192] : memref<99x288xf32, #tpu.memory_space<vmem>>, vector<99x32xf32>
    tpu.vector_store %arg12[%c0_43, %c192], %34 {strides = array<i32>} : memref<99x288xf32, #tpu.memory_space<vmem>>, vector<99x32xf32>,
    %c33 = arith.constant 33 : index
    %c0_44 = arith.constant 0 : index
    %36 = tpu.strided_load %arg11[%c33, %c0_44] {strides = array<i32: 2, 1>} : memref<231x32xf32, #tpu.memory_space<vmem>>, vector<99x32xf32>
    %c0_45 = arith.constant 0 : index
    %c224 = arith.constant 224 : index
    %37 = vector.load %arg12[%c0_45, %c224] : memref<99x288xf32, #tpu.memory_space<vmem>>, vector<99x32xf32>
    tpu.vector_store %arg12[%c0_45, %c224], %36 {strides = array<i32>} : memref<99x288xf32, #tpu.memory_space<vmem>>, vector<99x32xf32>,
    %c34 = arith.constant 34 : index
    %c0_46 = arith.constant 0 : index
    %38 = tpu.strided_load %arg11[%c34, %c0_46] {strides = array<i32: 2, 1>} : memref<231x32xf32, #tpu.memory_space<vmem>>, vector<99x32xf32>
    %c0_47 = arith.constant 0 : index
    %c256 = arith.constant 256 : index
    %39 = vector.load %arg12[%c0_47, %c256] : memref<99x288xf32, #tpu.memory_space<vmem>>, vector<99x32xf32>
    tpu.vector_store %arg12[%c0_47, %c256], %38 {strides = array<i32>} : memref<99x288xf32, #tpu.memory_space<vmem>>, vector<99x32xf32>,
    %c0_48 = arith.constant 0 : index
    %c128_49 = arith.constant 128 : index
    %40 = vector.load %arg8[%c0_48, %c128_49] : memref<1x641xf32, #tpu.memory_space<vmem>>, vector<1x64xf32>
    %c0_50 = arith.constant 0 : index
    %c0_51 = arith.constant 0 : index
    %41 = vector.load %arg12[%c0_50, %c0_51] : memref<99x288xf32, #tpu.memory_space<vmem>>, vector<99x288xf32>
    %42 = arith.truncf %41 : vector<99x288xf32> to vector<99x288xbf16>
    %c0_52 = arith.constant 0 : index
    %c0_53 = arith.constant 0 : index
    %43 = vector.load %arg4[%c0_52, %c0_53] : memref<288x64xbf16, #tpu.memory_space<vmem>>, vector<288x64xbf16>
    %cst_54 = arith.constant dense<0.000000e+00> : vector<99x64xf32>
    %44 = tpu.matmul %42, %43, %cst_54 {dimension_numbers = #tpu.dot_dimension_numbers<[1], [0], [0], [1], [0, 0, 1, 1], [], []>} : vector<99x288xbf16>, vector<288x64xbf16>, vector<99x64xf32> -> vector<99x64xf32>
    %45 = vector.broadcast %40 : vector<1x64xf32> to vector<99x64xf32>
    %46 = arith.addf %44, %45 : vector<99x64xf32>
    %cst_55 = arith.constant 0.000000e+00 : f32
    %47 = vector.broadcast %cst_55 : f32 to vector<99x64xf32>
    %48 = arith.maximumf %46, %47 : vector<99x64xf32>
    %c0_56 = arith.constant 0 : index
    %c0_57 = arith.constant 0 : index
    %49 = vector.load %arg13[%c0_56, %c0_57] : memref<99x64xf32, #tpu.memory_space<vmem>>, vector<99x64xf32>
    tpu.vector_store %arg13[%c0_56, %c0_57], %48 {strides = array<i32>} : memref<99x64xf32, #tpu.memory_space<vmem>>, vector<99x64xf32>,
    %c0_58 = arith.constant 0 : index
    %c0_59 = arith.constant 0 : index
    %50 = tpu.strided_load %arg13[%c0_58, %c0_59] {strides = array<i32: 64, 1>} : memref<99x64xf32, #tpu.memory_space<vmem>>, vector<2x64xf32>
    %c0_60 = arith.constant 0 : index
    %c0_61 = arith.constant 0 : index
    %51 = vector.load %arg14[%c0_60, %c0_61] : memref<2x576xf32, #tpu.memory_space<vmem>>, vector<2x64xf32>
    tpu.vector_store %arg14[%c0_60, %c0_61], %50 {strides = array<i32>} : memref<2x576xf32, #tpu.memory_space<vmem>>, vector<2x64xf32>,
    %c1_62 = arith.constant 1 : index
    %c0_63 = arith.constant 0 : index
    %52 = tpu.strided_load %arg13[%c1_62, %c0_63] {strides = array<i32: 64, 1>} : memref<99x64xf32, #tpu.memory_space<vmem>>, vector<2x64xf32>
    %c0_64 = arith.constant 0 : index
    %c64_65 = arith.constant 64 : index
    %53 = vector.load %arg14[%c0_64, %c64_65] : memref<2x576xf32, #tpu.memory_space<vmem>>, vector<2x64xf32>
    tpu.vector_store %arg14[%c0_64, %c64_65], %52 {strides = array<i32>} : memref<2x576xf32, #tpu.memory_space<vmem>>, vector<2x64xf32>,
    %c2_66 = arith.constant 2 : index
    %c0_67 = arith.constant 0 : index
    %54 = tpu.strided_load %arg13[%c2_66, %c0_67] {strides = array<i32: 64, 1>} : memref<99x64xf32, #tpu.memory_space<vmem>>, vector<2x64xf32>
    %c0_68 = arith.constant 0 : index
    %c128_69 = arith.constant 128 : index
    %55 = vector.load %arg14[%c0_68, %c128_69] : memref<2x576xf32, #tpu.memory_space<vmem>>, vector<2x64xf32>
    tpu.vector_store %arg14[%c0_68, %c128_69], %54 {strides = array<i32>} : memref<2x576xf32, #tpu.memory_space<vmem>>, vector<2x64xf32>,
    %c16_70 = arith.constant 16 : index
    %c0_71 = arith.constant 0 : index
    %56 = tpu.strided_load %arg13[%c16_70, %c0_71] {strides = array<i32: 64, 1>} : memref<99x64xf32, #tpu.memory_space<vmem>>, vector<2x64xf32>
    %c0_72 = arith.constant 0 : index
    %c192_73 = arith.constant 192 : index
    %57 = vector.load %arg14[%c0_72, %c192_73] : memref<2x576xf32, #tpu.memory_space<vmem>>, vector<2x64xf32>
    tpu.vector_store %arg14[%c0_72, %c192_73], %56 {strides = array<i32>} : memref<2x576xf32, #tpu.memory_space<vmem>>, vector<2x64xf32>,
    %c17_74 = arith.constant 17 : index
    %c0_75 = arith.constant 0 : index
    %58 = tpu.strided_load %arg13[%c17_74, %c0_75] {strides = array<i32: 64, 1>} : memref<99x64xf32, #tpu.memory_space<vmem>>, vector<2x64xf32>
    %c0_76 = arith.constant 0 : index
    %c256_77 = arith.constant 256 : index
    %59 = vector.load %arg14[%c0_76, %c256_77] : memref<2x576xf32, #tpu.memory_space<vmem>>, vector<2x64xf32>
    tpu.vector_store %arg14[%c0_76, %c256_77], %58 {strides = array<i32>} : memref<2x576xf32, #tpu.memory_space<vmem>>, vector<2x64xf32>,
    %c18_78 = arith.constant 18 : index
    %c0_79 = arith.constant 0 : index
    %60 = tpu.strided_load %arg13[%c18_78, %c0_79] {strides = array<i32: 64, 1>} : memref<99x64xf32, #tpu.memory_space<vmem>>, vector<2x64xf32>
    %c0_80 = arith.constant 0 : index
    %c320 = arith.constant 320 : index
    %61 = vector.load %arg14[%c0_80, %c320] : memref<2x576xf32, #tpu.memory_space<vmem>>, vector<2x64xf32>
    tpu.vector_store %arg14[%c0_80, %c320], %60 {strides = array<i32>} : memref<2x576xf32, #tpu.memory_space<vmem>>, vector<2x64xf32>,
    %c32_81 = arith.constant 32 : index
    %c0_82 = arith.constant 0 : index
    %62 = tpu.strided_load %arg13[%c32_81, %c0_82] {strides = array<i32: 64, 1>} : memref<99x64xf32, #tpu.memory_space<vmem>>, vector<2x64xf32>
    %c0_83 = arith.constant 0 : index
    %c384 = arith.constant 384 : index
    %63 = vector.load %arg14[%c0_83, %c384] : memref<2x576xf32, #tpu.memory_space<vmem>>, vector<2x64xf32>
    tpu.vector_store %arg14[%c0_83, %c384], %62 {strides = array<i32>} : memref<2x576xf32, #tpu.memory_space<vmem>>, vector<2x64xf32>,
    %c33_84 = arith.constant 33 : index
    %c0_85 = arith.constant 0 : index
    %64 = tpu.strided_load %arg13[%c33_84, %c0_85] {strides = array<i32: 64, 1>} : memref<99x64xf32, #tpu.memory_space<vmem>>, vector<2x64xf32>
    %c0_86 = arith.constant 0 : index
    %c448 = arith.constant 448 : index
    %65 = vector.load %arg14[%c0_86, %c448] : memref<2x576xf32, #tpu.memory_space<vmem>>, vector<2x64xf32>
    tpu.vector_store %arg14[%c0_86, %c448], %64 {strides = array<i32>} : memref<2x576xf32, #tpu.memory_space<vmem>>, vector<2x64xf32>,
    %c34_87 = arith.constant 34 : index
    %c0_88 = arith.constant 0 : index
    %66 = tpu.strided_load %arg13[%c34_87, %c0_88] {strides = array<i32: 64, 1>} : memref<99x64xf32, #tpu.memory_space<vmem>>, vector<2x64xf32>
    %c0_89 = arith.constant 0 : index
    %c512 = arith.constant 512 : index
    %67 = vector.load %arg14[%c0_89, %c512] : memref<2x576xf32, #tpu.memory_space<vmem>>, vector<2x64xf32>
    tpu.vector_store %arg14[%c0_89, %c512], %66 {strides = array<i32>} : memref<2x576xf32, #tpu.memory_space<vmem>>, vector<2x64xf32>,
    %c0_90 = arith.constant 0 : index
    %68 = memref.load %arg1[%c0_90] : memref<2xi32, #tpu.memory_space<smem>>
    %69 = arith.index_cast %68 : i32 to index
    %c0_91 = arith.constant 0 : index
    %70 = vector.load %arg7[%69, %c0_91] : memref<6x128xf32, #tpu.memory_space<vmem>>, vector<1x128xf32>
    %c0_92 = arith.constant 0 : index
    %c0_93 = arith.constant 0 : index
    %71 = vector.load %arg15[%c0_92, %c0_93] : memref<2x128xf32, #tpu.memory_space<vmem>>, vector<1x128xf32>
    tpu.vector_store %arg15[%c0_92, %c0_93], %70 {strides = array<i32>} : memref<2x128xf32, #tpu.memory_space<vmem>>, vector<1x128xf32>,
    %c1_94 = arith.constant 1 : index
    %72 = memref.load %arg1[%c1_94] : memref<2xi32, #tpu.memory_space<smem>>
    %73 = arith.index_cast %72 : i32 to index
    %c0_95 = arith.constant 0 : index
    %74 = vector.load %arg7[%73, %c0_95] : memref<6x128xf32, #tpu.memory_space<vmem>>, vector<1x128xf32>
    %c1_96 = arith.constant 1 : index
    %c0_97 = arith.constant 0 : index
    %75 = vector.load %arg15[%c1_96, %c0_97] : memref<2x128xf32, #tpu.memory_space<vmem>>, vector<1x128xf32>
    tpu.vector_store %arg15[%c1_96, %c0_97], %74 {strides = array<i32>} : memref<2x128xf32, #tpu.memory_space<vmem>>, vector<1x128xf32>,
    %c0_98 = arith.constant 0 : index
    %c0_99 = arith.constant 0 : index
    %76 = vector.load %arg15[%c0_98, %c0_99] : memref<2x128xf32, #tpu.memory_space<vmem>>, vector<2x128xf32>
    %c0_100 = arith.constant 0 : index
    %c256_101 = arith.constant 256 : index
    %77 = vector.load %arg8[%c0_100, %c256_101] : memref<1x641xf32, #tpu.memory_space<vmem>>, vector<1x128xf32>
    %78 = vector.broadcast %77 : vector<1x128xf32> to vector<2x128xf32>
    %79 = arith.addf %76, %78 : vector<2x128xf32>
    %c0_102 = arith.constant 0 : index
    %c0_103 = arith.constant 0 : index
    %80 = vector.load %arg14[%c0_102, %c0_103] : memref<2x576xf32, #tpu.memory_space<vmem>>, vector<2x576xf32>
    %81 = arith.truncf %80 : vector<2x576xf32> to vector<2x576xbf16>
    %c0_104 = arith.constant 0 : index
    %c0_105 = arith.constant 0 : index
    %82 = vector.load %arg5[%c0_104, %c0_105] : memref<576x128xbf16, #tpu.memory_space<vmem>>, vector<576x128xbf16>
    %cst_106 = arith.constant dense<0.000000e+00> : vector<2x128xf32>
    %83 = tpu.matmul %81, %82, %cst_106 {dimension_numbers = #tpu.dot_dimension_numbers<[1], [0], [0], [1], [0, 0, 1, 1], [], []>} : vector<2x576xbf16>, vector<576x128xbf16>, vector<2x128xf32> -> vector<2x128xf32>
    %84 = arith.addf %79, %83 : vector<2x128xf32>
    %cst_107 = arith.constant 0.000000e+00 : f32
    %85 = vector.broadcast %cst_107 : f32 to vector<2x128xf32>
    %86 = arith.maximumf %84, %85 : vector<2x128xf32>
    %87 = arith.truncf %86 : vector<2x128xf32> to vector<2x128xbf16>
    %c0_108 = arith.constant 0 : index
    %c0_109 = arith.constant 0 : index
    %88 = vector.load %arg6[%c0_108, %c0_109] : memref<128x128xbf16, #tpu.memory_space<vmem>>, vector<128x128xbf16>
    %cst_110 = arith.constant dense<0.000000e+00> : vector<2x128xf32>
    %89 = tpu.matmul %87, %88, %cst_110 {dimension_numbers = #tpu.dot_dimension_numbers<[1], [0], [0], [1], [0, 0, 1, 1], [], []>} : vector<2x128xbf16>, vector<128x128xbf16>, vector<2x128xf32> -> vector<2x128xf32>
    %c0_111 = arith.constant 0 : index
    %c384_112 = arith.constant 384 : index
    %90 = vector.load %arg8[%c0_111, %c384_112] : memref<1x641xf32, #tpu.memory_space<vmem>>, vector<1x128xf32>
    %91 = vector.broadcast %90 : vector<1x128xf32> to vector<2x128xf32>
    %92 = arith.addf %89, %91 : vector<2x128xf32>
    %cst_113 = arith.constant 0.000000e+00 : f32
    %93 = vector.broadcast %cst_113 : f32 to vector<2x128xf32>
    %94 = arith.maximumf %92, %93 : vector<2x128xf32>
    %c0_114 = arith.constant 0 : index
    %c512_115 = arith.constant 512 : index
    %95 = vector.load %arg8[%c0_114, %c512_115] : memref<1x641xf32, #tpu.memory_space<vmem>>, vector<1x128xf32>
    %c0_116 = arith.constant 0 : index
    %c640 = arith.constant 640 : index
    %96 = vector.load %arg8[%c0_116, %c640] : memref<1x641xf32, #tpu.memory_space<vmem>>, vector<1x1xf32>
    %97 = vector.broadcast %95 : vector<1x128xf32> to vector<2x128xf32>
    %98 = arith.mulf %94, %97 : vector<2x128xf32>
    %cst_117 = arith.constant dense<0.000000e+00> : vector<2xf32>
    %99 = vector.multi_reduction <add>, %98, %cst_117 [1] : vector<2x128xf32> to vector<2xf32>
    %100 = vector.shape_cast %99 : vector<2xf32> to vector<2x1xf32>
    %101 = vector.broadcast %96 : vector<1x1xf32> to vector<2x1xf32>
    %102 = arith.addf %100, %101 : vector<2x1xf32>
    %c0_118 = arith.constant 0 : index
    %c0_119 = arith.constant 0 : index
    %103 = vector.load %arg9[%c0_118, %c0_119] : memref<2x1xf32, #tpu.memory_space<vmem>>, vector<2x1xf32>
    tpu.vector_store %arg9[%c0_118, %c0_119], %102 {strides = array<i32>} : memref<2x1xf32, #tpu.memory_space<vmem>>, vector<2x1xf32>,
    return
  }
  func.func @transform_0(%arg0: i32, %arg1: memref<2xi32, #tpu.memory_space<smem>>) -> (i32, i32) {
    %c0_i32 = arith.constant 0 : i32
    %c0_i32_0 = arith.constant 0 : i32
    %c0_i32_1 = arith.constant 0 : i32
    return %c0_i32, %c0_i32_0 : i32, i32
  }
  func.func @transform_1(%arg0: i32, %arg1: memref<2xi32, #tpu.memory_space<smem>>) -> (i32, i32) {
    %c0_i32 = arith.constant 0 : i32
    %c0_i32_0 = arith.constant 0 : i32
    %c0_i32_1 = arith.constant 0 : i32
    return %c0_i32, %c0_i32_0 : i32, i32
  }
  func.func @transform_2(%arg0: i32, %arg1: memref<2xi32, #tpu.memory_space<smem>>) -> (i32, i32) {
    %c0_i32 = arith.constant 0 : i32
    %c0_i32_0 = arith.constant 0 : i32
    %c0_i32_1 = arith.constant 0 : i32
    return %c0_i32, %c0_i32_0 : i32, i32
  }
  func.func @transform_3(%arg0: i32, %arg1: memref<2xi32, #tpu.memory_space<smem>>) -> (i32, i32) {
    %c0_i32 = arith.constant 0 : i32
    %c0_i32_0 = arith.constant 0 : i32
    %c0_i32_1 = arith.constant 0 : i32
    return %c0_i32, %c0_i32_0 : i32, i32
  }
  func.func @transform_4(%arg0: i32, %arg1: memref<2xi32, #tpu.memory_space<smem>>) -> (i32, i32) {
    %c0_i32 = arith.constant 0 : i32
    %c0_i32_0 = arith.constant 0 : i32
    %c0_i32_1 = arith.constant 0 : i32
    return %c0_i32, %c0_i32_0 : i32, i32
  }
  func.func @transform_5(%arg0: i32, %arg1: memref<2xi32, #tpu.memory_space<smem>>) -> (i32, i32) {
    %c0_i32 = arith.constant 0 : i32
    %c0_i32_0 = arith.constant 0 : i32
    %c0_i32_1 = arith.constant 0 : i32
    return %c0_i32, %c0_i32_0 : i32, i32
  }
  func.func @transform_6(%arg0: i32, %arg1: memref<2xi32, #tpu.memory_space<smem>>) -> (i32, i32) {
    %c0_i32 = arith.constant 0 : i32
    %c0_i32_0 = arith.constant 0 : i32
    %c0_i32_1 = arith.constant 0 : i32
    return %c0_i32, %c0_i32_0 : i32, i32
  }
  func.func @transform_7(%arg0: i32, %arg1: memref<2xi32, #tpu.memory_space<smem>>) -> (i32, i32) {
    %c0_i32 = arith.constant 0 : i32
    %c0_i32_0 = arith.constant 0 : i32
    %c0_i32_1 = arith.constant 0 : i32
    return %c0_i32, %c0_i32_0 : i32, i32
  }
}

</mosaic_0001>

<llo_original>
// kernel: reward_model_forward.1
$region0: #{reward_model_forward.1}
  #allocation0 [shape = 'u32[]', space=smem, size = 0x4, offset = 0x4, fixed_abs, tag = 'smem constant byte address 0x4 - core index']
  #allocation1 [shape = 'u32[72,128]{1,0:T(1,128)}', space=vmem, size = 0x9000, scoped, tag = 'internal scratch']
  #allocation2 [shape = 'f32[231,36]{1,0:T(8,128)}', space=vmem, size = 0x1d000, scoped, tag = 'scratch operand']
  #allocation3 [shape = 'f32[231,32]{1,0:T(8,128)}', space=vmem, size = 0x1d000, scoped, tag = 'scratch operand']
  #allocation4 [shape = 'f32[99,288]{1,0:T(8,128)}', space=vmem, size = 0x27000, scoped, tag = 'scratch operand']
  #allocation5 [shape = 'f32[99,64]{1,0:T(8,128)}', space=vmem, size = 0xd000, scoped, tag = 'scratch operand']
  #allocation6 [shape = 'f32[2,576]{1,0:T(2,128)}', space=vmem, size = 0x1400, scoped, tag = 'scratch operand']
  #allocation7 [shape = 'f32[2,128]{1,0:T(2,128)}', space=vmem, size = 0x400, scoped, tag = 'scratch operand']
  #allocation8 [shape = 's32[1]{0}', space=sflag, size = 0x4, scoped, tag = 'scoped memory for reward_model_forward.1']
  #allocation9 [shape = 'u8[512]{0}', space=smem, size = 0x200, scoped, tag = 'prefetched SMEM operand 0']
  %s0 = inlined_call_operand.vmem [shape: s32[2], index: 0, kind: input, shape index: {}]
  %s1 = inlined_call_operand.vmem [shape: f32[256,8], index: 1, kind: input, shape index: {}]
  %s2 = inlined_call_operand.vmem [shape: bf16[36,32], index: 2, kind: input, shape index: {}]
  %s3 = inlined_call_operand.vmem [shape: bf16[288,64], index: 3, kind: input, shape index: {}]
  %s4 = inlined_call_operand.vmem [shape: bf16[576,128], index: 4, kind: input, shape index: {}]
  %s5 = inlined_call_operand.vmem [shape: bf16[128,128], index: 5, kind: input, shape index: {}]
  %s6 = inlined_call_operand.vmem [shape: f32[6,128], index: 6, kind: input, shape index: {}]
  %s7 = inlined_call_operand.vmem [shape: f32[1,641], index: 7, kind: input, shape index: {}]
  %s8 = inlined_call_operand.vmem [shape: f32[2,1], index: 8, kind: output, shape index: {}]
  %s9 = sld [smem:[#allocation0]]
  $region38: #{reward_model_forward.1} parent=0
    _
  %s11 = ssub.s32 1, %s9
  %s12 = scalar_select 0, %s11, %s9
  %s14 = sshll.u32 %s0, 4
  %s15 = int_to_ptr.vmem [resolvable:$true] %s14
  %17 = dma.vmem_to_smem %s15, 16, [#allocation9], [#allocation8]
  %19 = dma.done [#allocation8], 16
  %20 = sfence
  // Predicated region
  $region2: #{reward_model_forward.1} parent=0 // pred_check
    _
  $region3: #{reward_model_forward.1} parent=0 // pred_check_branch
    %22 = sbr.rel (0) target = $region5
  $region4: #{reward_model_forward.1} parent=0 // pred_region
    _
  $region5: #{reward_model_forward.1} parent=0 // pred_fallthru
    _
  // Predicated region
  $region6: #{reward_model_forward.1} parent=0 // pred_check
    _
  $region7: #{reward_model_forward.1} parent=0 // pred_check_branch
    %24 = sbr.rel (0) target = $region9
  $region8: #{reward_model_forward.1} parent=0 // pred_region
    _
  $region9: #{reward_model_forward.1} parent=0 // pred_fallthru
    _
  // Predicated region
  $region10: #{reward_model_forward.1} parent=0 // pred_check
    _
  $region11: #{reward_model_forward.1} parent=0 // pred_check_branch
    %26 = sbr.rel (0) target = $region13
  $region12: #{reward_model_forward.1} parent=0 // pred_region
    _
  $region13: #{reward_model_forward.1} parent=0 // pred_fallthru
    _
  // Predicated region
  $region14: #{reward_model_forward.1} parent=0 // pred_check
    _
  $region15: #{reward_model_forward.1} parent=0 // pred_check_branch
    %28 = sbr.rel (0) target = $region17
  $region16: #{reward_model_forward.1} parent=0 // pred_region
    _
  $region17: #{reward_model_forward.1} parent=0 // pred_fallthru
    _
  // Predicated region
  $region18: #{reward_model_forward.1} parent=0 // pred_check
    _
  $region19: #{reward_model_forward.1} parent=0 // pred_check_branch
    %30 = sbr.rel (0) target = $region21
  $region20: #{reward_model_forward.1} parent=0 // pred_region
    _
  $region21: #{reward_model_forward.1} parent=0 // pred_fallthru
    _
  // Predicated region
  $region22: #{reward_model_forward.1} parent=0 // pred_check
    _
  $region23: #{reward_model_forward.1} parent=0 // pred_check_branch
    %32 = sbr.rel (0) target = $region25
  $region24: #{reward_model_forward.1} parent=0 // pred_region
    _
  $region25: #{reward_model_forward.1} parent=0 // pred_fallthru
    _
  // Predicated region
  $region26: #{reward_model_forward.1} parent=0 // pred_check
    _
  $region27: #{reward_model_forward.1} parent=0 // pred_check_branch
    %34 = sbr.rel (0) target = $region29
  $region28: #{reward_model_forward.1} parent=0 // pred_region
    _
  $region29: #{reward_model_forward.1} parent=0 // pred_fallthru
    _
  %v36 = vld [vmem:[%s1] sm:$0xff]
  %v37 = vld [vmem:[%s1 + $0x8] sm:$0xff]
  %v38 = vld [vmem:[%s1 + $0x10] sm:$0xff]
  %v39 = vld [vmem:[%s1 + $0x18] sm:$0xff]
  %v40 = vld [vmem:[%s1 + $0x20] sm:$0xff]
  %v41 = vld [vmem:[%s1 + $0x28] sm:$0xff]
  %v42 = vld [vmem:[%s1 + $0x30] sm:$0xff]
  %v43 = vld [vmem:[%s1 + $0x38] sm:$0xff]
  %v44 = vld [vmem:[%s1 + $0x40] sm:$0xff]
  %v45 = vld [vmem:[%s1 + $0x48] sm:$0xff]
  %v46 = vld [vmem:[%s1 + $0x50] sm:$0xff]
  %v47 = vld [vmem:[%s1 + $0x58] sm:$0xff]
  %v48 = vld [vmem:[%s1 + $0x60] sm:$0xff]
  %v49 = vld [vmem:[%s1 + $0x68] sm:$0xff]
  %v50 = vld [vmem:[%s1 + $0x70] sm:$0xff]
  %v51 = vld [vmem:[%s1 + $0x78] sm:$0xff]
  %v52 = vld [vmem:[%s1 + $0x80] sm:$0xff]
  %v53 = vld [vmem:[%s1 + $0x88] sm:$0xff]
  %v54 = vld [vmem:[%s1 + $0x90] sm:$0xff]
  %v55 = vld [vmem:[%s1 + $0x98] sm:$0xff]
  %v56 = vld [vmem:[%s1 + $0xa0] sm:$0xff]
  %v57 = vld [vmem:[%s1 + $0xa8] sm:$0xff]
  %v58 = vld [vmem:[%s1 + $0xb0] sm:$0xff]
  %v59 = vld [vmem:[%s1 + $0xb8] sm:$0xff]
  %v60 = vld [vmem:[%s1 + $0xc0] sm:$0xff]
  %v61 = vld [vmem:[%s1 + $0xc8] sm:$0xff]
  %v62 = vld [vmem:[%s1 + $0xd0] sm:$0xff]
  %v63 = vld [vmem:[%s1 + $0xd8] sm:$0xff]
  %v64 = vld [vmem:[%s1 + $0xe0] sm:$0x7f]
  %vm65 = vcmask 64512
  %66 = vst.msk [vmem:[#allocation2] sm:$0xff] %vm65, %v36
  %67 = vst.msk [vmem:[#allocation2 + $0x8] sm:$0xff] %vm65, %v37
  %68 = vst.msk [vmem:[#allocation2 + $0x10] sm:$0xff] %vm65, %v38
  %69 = vst.msk [vmem:[#allocation2 + $0x18] sm:$0xff] %vm65, %v39
  %70 = vst.msk [vmem:[#allocation2 + $0x20] sm:$0xff] %vm65, %v40
  %71 = vst.msk [vmem:[#allocation2 + $0x28] sm:$0xff] %vm65, %v41
  %72 = vst.msk [vmem:[#allocation2 + $0x30] sm:$0xff] %vm65, %v42
  %73 = vst.msk [vmem:[#allocation2 + $0x38] sm:$0xff] %vm65, %v43
  %74 = vst.msk [vmem:[#allocation2 + $0x40] sm:$0xff] %vm65, %v44
  %75 = vst.msk [vmem:[#allocation2 + $0x48] sm:$0xff] %vm65, %v45
  %76 = vst.msk [vmem:[#allocation2 + $0x50] sm:$0xff] %vm65, %v46
  %77 = vst.msk [vmem:[#allocation2 + $0x58] sm:$0xff] %vm65, %v47
  %78 = vst.msk [vmem:[#allocation2 + $0x60] sm:$0xff] %vm65, %v48
  %79 = vst.msk [vmem:[#allocation2 + $0x68] sm:$0xff] %vm65, %v49
  %80 = vst.msk [vmem:[#allocation2 + $0x70] sm:$0xff] %vm65, %v50
  %81 = vst.msk [vmem:[#allocation2 + $0x78] sm:$0xff] %vm65, %v51
  %82 = vst.msk [vmem:[#allocation2 + $0x80] sm:$0xff] %vm65, %v52
  %83 = vst.msk [vmem:[#allocation2 + $0x88] sm:$0xff] %vm65, %v53
  %84 = vst.msk [vmem:[#allocation2 + $0x90] sm:$0xff] %vm65, %v54
  %85 = vst.msk [vmem:[#allocation2 + $0x98] sm:$0xff] %vm65, %v55
  %86 = vst.msk [vmem:[#allocation2 + $0xa0] sm:$0xff] %vm65, %v56
  %87 = vst.msk [vmem:[#allocation2 + $0xa8] sm:$0xff] %vm65, %v57
  %88 = vst.msk [vmem:[#allocation2 + $0xb0] sm:$0xff] %vm65, %v58
  %89 = vst.msk [vmem:[#allocation2 + $0xb8] sm:$0xff] %vm65, %v59
  %90 = vst.msk [vmem:[#allocation2 + $0xc0] sm:$0xff] %vm65, %v60
  %91 = vst.msk [vmem:[#allocation2 + $0xc8] sm:$0xff] %vm65, %v61
  %92 = vst.msk [vmem:[#allocation2 + $0xd0] sm:$0xff] %vm65, %v62
  %93 = vst.msk [vmem:[#allocation2 + $0xd8] sm:$0xff] %vm65, %v63
  %vm94 = vcmask 63488
  %95 = vst.msk [vmem:[#allocation2 + $0xe0] sm:$0x7f] %vm94, %v64
  %v96 = vld [vmem:[%s1 + $0x1] sm:$0xff]
  %v97 = vld [vmem:[%s1 + $0x9] sm:$0xff]
  %v98 = vld [vmem:[%s1 + $0x11] sm:$0xff]
  %v99 = vld [vmem:[%s1 + $0x19] sm:$0xff]
  %v100 = vld [vmem:[%s1 + $0x21] sm:$0xff]
  %v101 = vld [vmem:[%s1 + $0x29] sm:$0xff]
  %v102 = vld [vmem:[%s1 + $0x31] sm:$0xff]
  %v103 = vld [vmem:[%s1 + $0x39] sm:$0xff]
  %v104 = vld [vmem:[%s1 + $0x41] sm:$0xff]
  %v105 = vld [vmem:[%s1 + $0x49] sm:$0xff]
  %v106 = vld [vmem:[%s1 + $0x51] sm:$0xff]
  %v107 = vld [vmem:[%s1 + $0x59] sm:$0xff]
  %v108 = vld [vmem:[%s1 + $0x61] sm:$0xff]
  %v109 = vld [vmem:[%s1 + $0x69] sm:$0xff]
  %v110 = vld [vmem:[%s1 + $0x71] sm:$0xff]
  %v111 = vld [vmem:[%s1 + $0x79] sm:$0xff]
  %v112 = vld [vmem:[%s1 + $0x81] sm:$0xff]
  %v113 = vld [vmem:[%s1 + $0x89] sm:$0xff]
  %v114 = vld [vmem:[%s1 + $0x91] sm:$0xff]
  %v115 = vld [vmem:[%s1 + $0x99] sm:$0xff]
  %v116 = vld [vmem:[%s1 + $0xa1] sm:$0xff]
  %v117 = vld [vmem:[%s1 + $0xa9] sm:$0xff]
  %v118 = vld [vmem:[%s1 + $0xb1] sm:$0xff]
  %v119 = vld [vmem:[%s1 + $0xb9] sm:$0xff]
  %v120 = vld [vmem:[%s1 + $0xc1] sm:$0xff]
  %v121 = vld [vmem:[%s1 + $0xc9] sm:$0xff]
  %v122 = vld [vmem:[%s1 + $0xd1] sm:$0xff]
  %v123 = vld [vmem:[%s1 + $0xd9] sm:$0xff]
  %v124 = vld [vmem:[%s1 + $0xe1] sm:$0x7f]
  %154 = vrot.lane.b32.xlu0 %v96, 8
  %v155 = vpop.permute.xlu0 %154
  %156 = vrot.lane.b32.xlu0 %v97, 8
  %v157 = vpop.permute.xlu0 %156
  %158 = vrot.lane.b32.xlu0 %v98, 8
  %v159 = vpop.permute.xlu0 %158
  %160 = vrot.lane.b32.xlu0 %v99, 8
  %v161 = vpop.permute.xlu0 %160
  %162 = vrot.lane.b32.xlu0 %v100, 8
  %v163 = vpop.permute.xlu0 %162
  %164 = vrot.lane.b32.xlu0 %v101, 8
  %v165 = vpop.permute.xlu0 %164
  %166 = vrot.lane.b32.xlu0 %v102, 8
  %v167 = vpop.permute.xlu0 %166
  %168 = vrot.lane.b32.xlu0 %v103, 8
  %v169 = vpop.permute.xlu0 %168
  %170 = vrot.lane.b32.xlu0 %v104, 8
  %v171 = vpop.permute.xlu0 %170
  %172 = vrot.lane.b32.xlu0 %v105, 8
  %v173 = vpop.permute.xlu0 %172
  %174 = vrot.lane.b32.xlu0 %v106, 8
  %v175 = vpop.permute.xlu0 %174
  %176 = vrot.lane.b32.xlu0 %v107, 8
  %v177 = vpop.permute.xlu0 %176
  %178 = vrot.lane.b32.xlu0 %v108, 8
  %v179 = vpop.permute.xlu0 %178
  %180 = vrot.lane.b32.xlu0 %v109, 8
  %v181 = vpop.permute.xlu0 %180
  %182 = vrot.lane.b32.xlu0 %v110, 8
  %v183 = vpop.permute.xlu0 %182
  %184 = vrot.lane.b32.xlu0 %v111, 8
  %v185 = vpop.permute.xlu0 %184
  %186 = vrot.lane.b32.xlu0 %v112, 8
  %v187 = vpop.permute.xlu0 %186
  %188 = vrot.lane.b32.xlu0 %v113, 8
  %v189 = vpop.permute.xlu0 %188
  %190 = vrot.lane.b32.xlu0 %v114, 8
  %v191 = vpop.permute.xlu0 %190
  %192 = vrot.lane.b32.xlu0 %v115, 8
  %v193 = vpop.permute.xlu0 %192
  %194 = vrot.lane.b32.xlu0 %v116, 8
  %v195 = vpop.permute.xlu0 %194
  %196 = vrot.lane.b32.xlu0 %v117, 8
  %v197 = vpop.permute.xlu0 %196
  %198 = vrot.lane.b32.xlu0 %v118, 8
  %v199 = vpop.permute.xlu0 %198
  %200 = vrot.lane.b32.xlu0 %v119, 8
  %v201 = vpop.permute.xlu0 %200
  %202 = vrot.lane.b32.xlu0 %v120, 8
  %v203 = vpop.permute.xlu0 %202
  %204 = vrot.lane.b32.xlu0 %v121, 8
  %v205 = vpop.permute.xlu0 %204
  %206 = vrot.lane.b32.xlu0 %v122, 8
  %v207 = vpop.permute.xlu0 %206
  %208 = vrot.lane.b32.xlu0 %v123, 8
  %v209 = vpop.permute.xlu0 %208
  %210 = vrot.lane.b32.xlu0 %v124, 8
  %v211 = vpop.permute.xlu0 %210
  %vm241 = vcmask 97344
  %242 = vst.msk [vmem:[#allocation2] sm:$0xff] %vm241, %v155
  %243 = vst.msk [vmem:[#allocation2 + $0x8] sm:$0xff] %vm241, %v157
  %244 = vst.msk [vmem:[#allocation2 + $0x10] sm:$0xff] %vm241, %v159
  %245 = vst.msk [vmem:[#allocation2 + $0x18] sm:$0xff] %vm241, %v161
  %246 = vst.msk [vmem:[#allocation2 + $0x20] sm:$0xff] %vm241, %v163
  %247 = vst.msk [vmem:[#allocation2 + $0x28] sm:$0xff] %vm241, %v165
  %248 = vst.msk [vmem:[#allocation2 + $0x30] sm:$0xff] %vm241, %v167
  %249 = vst.msk [vmem:[#allocation2 + $0x38] sm:$0xff] %vm241, %v169
  %250 = vst.msk [vmem:[#allocation2 + $0x40] sm:$0xff] %vm241, %v171
  %251 = vst.msk [vmem:[#allocation2 + $0x48] sm:$0xff] %vm241, %v173
  %252 = vst.msk [vmem:[#allocation2 + $0x50] sm:$0xff] %vm241, %v175
  %253 = vst.msk [vmem:[#allocation2 + $0x58] sm:$0xff] %vm241, %v177
  %254 = vst.msk [vmem:[#allocation2 + $0x60] sm:$0xff] %vm241, %v179
  %255 = vst.msk [vmem:[#allocation2 + $0x68] sm:$0xff] %vm241, %v181
  %256 = vst.msk [vmem:[#allocation2 + $0x70] sm:$0xff] %vm241, %v183
  %257 = vst.msk [vmem:[#allocation2 + $0x78] sm:$0xff] %vm241, %v185
  %258 = vst.msk [vmem:[#allocation2 + $0x80] sm:$0xff] %vm241, %v187
  %259 = vst.msk [vmem:[#allocation2 + $0x88] sm:$0xff] %vm241, %v189
  %260 = vst.msk [vmem:[#allocation2 + $0x90] sm:$0xff] %vm241, %v191
  %261 = vst.msk [vmem:[#allocation2 + $0x98] sm:$0xff] %vm241, %v193
  %262 = vst.msk [vmem:[#allocation2 + $0xa0] sm:$0xff] %vm241, %v195
  %263 = vst.msk [vmem:[#allocation2 + $0xa8] sm:$0xff] %vm241, %v197
  %264 = vst.msk [vmem:[#allocation2 + $0xb0] sm:$0xff] %vm241, %v199
  %265 = vst.msk [vmem:[#allocation2 + $0xb8] sm:$0xff] %vm241, %v201
  %266 = vst.msk [vmem:[#allocation2 + $0xc0] sm:$0xff] %vm241, %v203
  %267 = vst.msk [vmem:[#allocation2 + $0xc8] sm:$0xff] %vm241, %v205
  %268 = vst.msk [vmem:[#allocation2 + $0xd0] sm:$0xff] %vm241, %v207
  %269 = vst.msk [vmem:[#allocation2 + $0xd8] sm:$0xff] %vm241, %v209
  %vm270 = vcmask 96320
  %271 = vst.msk [vmem:[#allocation2 + $0xe0] sm:$0x7f] %vm270, %v211
  %v272 = vld [vmem:[%s1 + $0x8] sm:$0xff]
  %v273 = vld [vmem:[%s1 + $0x10] sm:$0xff]
  %v274 = vld [vmem:[%s1 + $0x18] sm:$0xff]
  %v275 = vld [vmem:[%s1 + $0x20] sm:$0xff]
  %v276 = vld [vmem:[%s1 + $0x28] sm:$0xff]
  %v277 = vld [vmem:[%s1 + $0x30] sm:$0xff]
  %v278 = vld [vmem:[%s1 + $0x38] sm:$0xff]
  %v279 = vld [vmem:[%s1 + $0x40] sm:$0xff]
  %v280 = vld [vmem:[%s1 + $0x48] sm:$0xff]
  %v281 = vld [vmem:[%s1 + $0x50] sm:$0xff]
  %v282 = vld [vmem:[%s1 + $0x58] sm:$0xff]
  %v283 = vld [vmem:[%s1 + $0x60] sm:$0xff]
  %v284 = vld [vmem:[%s1 + $0x68] sm:$0xff]
  %v285 = vld [vmem:[%s1 + $0x70] sm:$0xff]
  %v286 = vld [vmem:[%s1 + $0x78] sm:$0xff]
  %v287 = vld [vmem:[%s1 + $0x80] sm:$0xff]
  %v288 = vld [vmem:[%s1 + $0x88] sm:$0xff]
  %v289 = vld [vmem:[%s1 + $0x90] sm:$0xff]
  %v290 = vld [vmem:[%s1 + $0x98] sm:$0xff]
  %v291 = vld [vmem:[%s1 + $0xa0] sm:$0xff]
  %v292 = vld [vmem:[%s1 + $0xa8] sm:$0xff]
  %v293 = vld [vmem:[%s1 + $0xb0] sm:$0xff]
  %v294 = vld [vmem:[%s1 + $0xb8] sm:$0xff]
  %v295 = vld [vmem:[%s1 + $0xc0] sm:$0xff]
  %v296 = vld [vmem:[%s1 + $0xc8] sm:$0xff]
  %v297 = vld [vmem:[%s1 + $0xd0] sm:$0xff]
  %v298 = vld [vmem:[%s1 + $0xd8] sm:$0xff]
  %v299 = vld [vmem:[%s1 + $0xe0] sm:$0xff]
  %v300 = vld [vmem:[%s1 + $0xe8] sm:$0x7f]
  %330 = vrot.lane.b32.xlu0 %v272, 12
  %v331 = vpop.permute.xlu0 %330
  %332 = vrot.lane.b32.xlu0 %v273, 12
  %v333 = vpop.permute.xlu0 %332
  %334 = vrot.lane.b32.xlu0 %v274, 12
  %v335 = vpop.permute.xlu0 %334
  %336 = vrot.lane.b32.xlu0 %v275, 12
  %v337 = vpop.permute.xlu0 %336
  %338 = vrot.lane.b32.xlu0 %v276, 12
  %v339 = vpop.permute.xlu0 %338
  %340 = vrot.lane.b32.xlu0 %v277, 12
  %v341 = vpop.permute.xlu0 %340
  %342 = vrot.lane.b32.xlu0 %v278, 12
  %v343 = vpop.permute.xlu0 %342
  %344 = vrot.lane.b32.xlu0 %v279, 12
  %v345 = vpop.permute.xlu0 %344
  %346 = vrot.lane.b32.xlu0 %v280, 12
  %v347 = vpop.permute.xlu0 %346
  %348 = vrot.lane.b32.xlu0 %v281, 12
  %v349 = vpop.permute.xlu0 %348
  %350 = vrot.lane.b32.xlu0 %v282, 12
  %v351 = vpop.permute.xlu0 %350
  %352 = vrot.lane.b32.xlu0 %v283, 12
  %v353 = vpop.permute.xlu0 %352
  %354 = vrot.lane.b32.xlu0 %v284, 12
  %v355 = vpop.permute.xlu0 %354
  %356 = vrot.lane.b32.xlu0 %v285, 12
  %v357 = vpop.permute.xlu0 %356
  %358 = vrot.lane.b32.xlu0 %v286, 12
  %v359 = vpop.permute.xlu0 %358
  %360 = vrot.lane.b32.xlu0 %v287, 12
  %v361 = vpop.permute.xlu0 %360
  %362 = vrot.lane.b32.xlu0 %v288, 12
  %v363 = vpop.permute.xlu0 %362
  %364 = vrot.lane.b32.xlu0 %v289, 12
  %v365 = vpop.permute.xlu0 %364
  %366 = vrot.lane.b32.xlu0 %v290, 12
  %v367 = vpop.permute.xlu0 %366
  %368 = vrot.lane.b32.xlu0 %v291, 12
  %v369 = vpop.permute.xlu0 %368
  %370 = vrot.lane.b32.xlu0 %v292, 12
  %v371 = vpop.permute.xlu0 %370
  %372 = vrot.lane.b32.xlu0 %v293, 12
  %v373 = vpop.permute.xlu0 %372
  %374 = vrot.lane.b32.xlu0 %v294, 12
  %v375 = vpop.permute.xlu0 %374
  %376 = vrot.lane.b32.xlu0 %v295, 12
  %v377 = vpop.permute.xlu0 %376
  %378 = vrot.lane.b32.xlu0 %v296, 12
  %v379 = vpop.permute.xlu0 %378
  %380 = vrot.lane.b32.xlu0 %v297, 12
  %v381 = vpop.permute.xlu0 %380
  %382 = vrot.lane.b32.xlu0 %v298, 12
  %v383 = vpop.permute.xlu0 %382
  %384 = vrot.lane.b32.xlu0 %v299, 12
  %v385 = vpop.permute.xlu0 %384
  %386 = vrot.lane.b32.xlu0 %v300, 12
  %v387 = vpop.permute.xlu0 %386
  %vm417 = vcmask 162912
  %418 = vst.msk [vmem:[#allocation2] sm:$0xff] %vm417, %v331
  %419 = vst.msk [vmem:[#allocation2 + $0x8] sm:$0xff] %vm417, %v333
  %420 = vst.msk [vmem:[#allocation2 + $0x10] sm:$0xff] %vm417, %v335
  %421 = vst.msk [vmem:[#allocation2 + $0x18] sm:$0xff] %vm417, %v337
  %422 = vst.msk [vmem:[#allocation2 + $0x20] sm:$0xff] %vm417, %v339
  %423 = vst.msk [vmem:[#allocation2 + $0x28] sm:$0xff] %vm417, %v341
  %424 = vst.msk [vmem:[#allocation2 + $0x30] sm:$0xff] %vm417, %v343
  %425 = vst.msk [vmem:[#allocation2 + $0x38] sm:$0xff] %vm417, %v345
  %426 = vst.msk [vmem:[#allocation2 + $0x40] sm:$0xff] %vm417, %v347
  %427 = vst.msk [vmem:[#allocation2 + $0x48] sm:$0xff] %vm417, %v349
  %428 = vst.msk [vmem:[#allocation2 + $0x50] sm:$0xff] %vm417, %v351
  %429 = vst.msk [vmem:[#allocation2 + $0x58] sm:$0xff] %vm417, %v353
  %430 = vst.msk [vmem:[#allocation2 + $0x60] sm:$0xff] %vm417, %v355
  %431 = vst.msk [vmem:[#allocation2 + $0x68] sm:$0xff] %vm417, %v357
  %432 = vst.msk [vmem:[#allocation2 + $0x70] sm:$0xff] %vm417, %v359
  %433 = vst.msk [vmem:[#allocation2 + $0x78] sm:$0xff] %vm417, %v361
  %434 = vst.msk [vmem:[#allocation2 + $0x80] sm:$0xff] %vm417, %v363
  %435 = vst.msk [vmem:[#allocation2 + $0x88] sm:$0xff] %vm417, %v365
  %436 = vst.msk [vmem:[#allocation2 + $0x90] sm:$0xff] %vm417, %v367
  %437 = vst.msk [vmem:[#allocation2 + $0x98] sm:$0xff] %vm417, %v369
  %438 = vst.msk [vmem:[#allocation2 + $0xa0] sm:$0xff] %vm417, %v371
  %439 = vst.msk [vmem:[#allocation2 + $0xa8] sm:$0xff] %vm417, %v373
  %440 = vst.msk [vmem:[#allocation2 + $0xb0] sm:$0xff] %vm417, %v375
  %441 = vst.msk [vmem:[#allocation2 + $0xb8] sm:$0xff] %vm417, %v377
  %442 = vst.msk [vmem:[#allocation2 + $0xc0] sm:$0xff] %vm417, %v379
  %443 = vst.msk [vmem:[#allocation2 + $0xc8] sm:$0xff] %vm417, %v381
  %444 = vst.msk [vmem:[#allocation2 + $0xd0] sm:$0xff] %vm417, %v383
  %445 = vst.msk [vmem:[#allocation2 + $0xd8] sm:$0xff] %vm417, %v385
  %vm446 = vcmask 161888
  %447 = vst.msk [vmem:[#allocation2 + $0xe0] sm:$0x7f] %vm446, %v387
  %v448 = vld [vmem:[%s1 + $0x9] sm:$0xff]
  %v449 = vld [vmem:[%s1 + $0x11] sm:$0xff]
  %v450 = vld [vmem:[%s1 + $0x19] sm:$0xff]
  %v451 = vld [vmem:[%s1 + $0x21] sm:$0xff]
  %v452 = vld [vmem:[%s1 + $0x29] sm:$0xff]
  %v453 = vld [vmem:[%s1 + $0x31] sm:$0xff]
  %v454 = vld [vmem:[%s1 + $0x39] sm:$0xff]
  %v455 = vld [vmem:[%s1 + $0x41] sm:$0xff]
  %v456 = vld [vmem:[%s1 + $0x49] sm:$0xff]
  %v457 = vld [vmem:[%s1 + $0x51] sm:$0xff]
  %v458 = vld [vmem:[%s1 + $0x59] sm:$0xff]
  %v459 = vld [vmem:[%s1 + $0x61] sm:$0xff]
  %v460 = vld [vmem:[%s1 + $0x69] sm:$0xff]
  %v461 = vld [vmem:[%s1 + $0x71] sm:$0xff]
  %v462 = vld [vmem:[%s1 + $0x79] sm:$0xff]
  %v463 = vld [vmem:[%s1 + $0x81] sm:$0xff]
  %v464 = vld [vmem:[%s1 + $0x89] sm:$0xff]
  %v465 = vld [vmem:[%s1 + $0x91] sm:$0xff]
  %v466 = vld [vmem:[%s1 + $0x99] sm:$0xff]
  %v467 = vld [vmem:[%s1 + $0xa1] sm:$0xff]
  %v468 = vld [vmem:[%s1 + $0xa9] sm:$0xff]
  %v469 = vld [vmem:[%s1 + $0xb1] sm:$0xff]
  %v470 = vld [vmem:[%s1 + $0xb9] sm:$0xff]
  %v471 = vld [vmem:[%s1 + $0xc1] sm:$0xff]
  %v472 = vld [vmem:[%s1 + $0xc9] sm:$0xff]
  %v473 = vld [vmem:[%s1 + $0xd1] sm:$0xff]
  %v474 = vld [vmem:[%s1 + $0xd9] sm:$0xff]
  %v475 = vld [vmem:[%s1 + $0xe1] sm:$0xff]
  %v476 = vld [vmem:[%s1 + $0xe9] sm:$0x7f]
  %506 = vrot.lane.b32.xlu0 %v448, 20
  %v507 = vpop.permute.xlu0 %506
  %508 = vrot.lane.b32.xlu0 %v449, 20
  %v509 = vpop.permute.xlu0 %508
  %510 = vrot.lane.b32.xlu0 %v450, 20
  %v511 = vpop.permute.xlu0 %510
  %512 = vrot.lane.b32.xlu0 %v451, 20
  %v513 = vpop.permute.xlu0 %512
  %514 = vrot.lane.b32.xlu0 %v452, 20
  %v515 = vpop.permute.xlu0 %514
  %516 = vrot.lane.b32.xlu0 %v453, 20
  %v517 = vpop.permute.xlu0 %516
  %518 = vrot.lane.b32.xlu0 %v454, 20
  %v519 = vpop.permute.xlu0 %518
  %520 = vrot.lane.b32.xlu0 %v455, 20
  %v521 = vpop.permute.xlu0 %520
  %522 = vrot.lane.b32.xlu0 %v456, 20
  %v523 = vpop.permute.xlu0 %522
  %524 = vrot.lane.b32.xlu0 %v457, 20
  %v525 = vpop.permute.xlu0 %524
  %526 = vrot.lane.b32.xlu0 %v458, 20
  %v527 = vpop.permute.xlu0 %526
  %528 = vrot.lane.b32.xlu0 %v459, 20
  %v529 = vpop.permute.xlu0 %528
  %530 = vrot.lane.b32.xlu0 %v460, 20
  %v531 = vpop.permute.xlu0 %530
  %532 = vrot.lane.b32.xlu0 %v461, 20
  %v533 = vpop.permute.xlu0 %532
  %534 = vrot.lane.b32.xlu0 %v462, 20
  %v535 = vpop.permute.xlu0 %534
  %536 = vrot.lane.b32.xlu0 %v463, 20
  %v537 = vpop.permute.xlu0 %536
  %538 = vrot.lane.b32.xlu0 %v464, 20
  %v539 = vpop.permute.xlu0 %538
  %540 = vrot.lane.b32.xlu0 %v465, 20
  %v541 = vpop.permute.xlu0 %540
  %542 = vrot.lane.b32.xlu0 %v466, 20
  %v543 = vpop.permute.xlu0 %542
  %544 = vrot.lane.b32.xlu0 %v467, 20
  %v545 = vpop.permute.xlu0 %544
  %546 = vrot.lane.b32.xlu0 %v468, 20
  %v547 = vpop.permute.xlu0 %546
  %548 = vrot.lane.b32.xlu0 %v469, 20
  %v549 = vpop.permute.xlu0 %548
  %550 = vrot.lane.b32.xlu0 %v470, 20
  %v551 = vpop.permute.xlu0 %550
  %552 = vrot.lane.b32.xlu0 %v471, 20
  %v553 = vpop.permute.xlu0 %552
  %554 = vrot.lane.b32.xlu0 %v472, 20
  %v555 = vpop.permute.xlu0 %554
  %556 = vrot.lane.b32.xlu0 %v473, 20
  %v557 = vpop.permute.xlu0 %556
  %558 = vrot.lane.b32.xlu0 %v474, 20
  %v559 = vpop.permute.xlu0 %558
  %560 = vrot.lane.b32.xlu0 %v475, 20
  %v561 = vpop.permute.xlu0 %560
  %562 = vrot.lane.b32.xlu0 %v476, 20
  %v563 = vpop.permute.xlu0 %562
  %vm593 = vcmask 195744
  %594 = vst.msk [vmem:[#allocation2] sm:$0xff] %vm593, %v507
  %595 = vst.msk [vmem:[#allocation2 + $0x8] sm:$0xff] %vm593, %v509
  %596 = vst.msk [vmem:[#allocation2 + $0x10] sm:$0xff] %vm593, %v511
  %597 = vst.msk [vmem:[#allocation2 + $0x18] sm:$0xff] %vm593, %v513
  %598 = vst.msk [vmem:[#allocation2 + $0x20] sm:$0xff] %vm593, %v515
  %599 = vst.msk [vmem:[#allocation2 + $0x28] sm:$0xff] %vm593, %v517
  %600 = vst.msk [vmem:[#allocation2 + $0x30] sm:$0xff] %vm593, %v519
  %601 = vst.msk [vmem:[#allocation2 + $0x38] sm:$0xff] %vm593, %v521
  %602 = vst.msk [vmem:[#allocation2 + $0x40] sm:$0xff] %vm593, %v523
  %603 = vst.msk [vmem:[#allocation2 + $0x48] sm:$0xff] %vm593, %v525
  %604 = vst.msk [vmem:[#allocation2 + $0x50] sm:$0xff] %vm593, %v527
  %605 = vst.msk [vmem:[#allocation2 + $0x58] sm:$0xff] %vm593, %v529
  %606 = vst.msk [vmem:[#allocation2 + $0x60] sm:$0xff] %vm593, %v531
  %607 = vst.msk [vmem:[#allocation2 + $0x68] sm:$0xff] %vm593, %v533
  %608 = vst.msk [vmem:[#allocation2 + $0x70] sm:$0xff] %vm593, %v535
  %609 = vst.msk [vmem:[#allocation2 + $0x78] sm:$0xff] %vm593, %v537
  %610 = vst.msk [vmem:[#allocation2 + $0x80] sm:$0xff] %vm593, %v539
  %611 = vst.msk [vmem:[#allocation2 + $0x88] sm:$0xff] %vm593, %v541
  %612 = vst.msk [vmem:[#allocation2 + $0x90] sm:$0xff] %vm593, %v543
  %613 = vst.msk [vmem:[#allocation2 + $0x98] sm:$0xff] %vm593, %v545
  %614 = vst.msk [vmem:[#allocation2 + $0xa0] sm:$0xff] %vm593, %v547
  %615 = vst.msk [vmem:[#allocation2 + $0xa8] sm:$0xff] %vm593, %v549
  %616 = vst.msk [vmem:[#allocation2 + $0xb0] sm:$0xff] %vm593, %v551
  %617 = vst.msk [vmem:[#allocation2 + $0xb8] sm:$0xff] %vm593, %v553
  %618 = vst.msk [vmem:[#allocation2 + $0xc0] sm:$0xff] %vm593, %v555
  %619 = vst.msk [vmem:[#allocation2 + $0xc8] sm:$0xff] %vm593, %v557
  %620 = vst.msk [vmem:[#allocation2 + $0xd0] sm:$0xff] %vm593, %v559
  %621 = vst.msk [vmem:[#allocation2 + $0xd8] sm:$0xff] %vm593, %v561
  %vm622 = vcmask 194720
  %623 = vst.msk [vmem:[#allocation2 + $0xe0] sm:$0x7f] %vm622, %v563
  %v624 = vld [vmem:[%s1 + $0x10] sm:$0xff]
  %v625 = vld [vmem:[%s1 + $0x18] sm:$0xff]
  %v626 = vld [vmem:[%s1 + $0x20] sm:$0xff]
  %v627 = vld [vmem:[%s1 + $0x28] sm:$0xff]
  %v628 = vld [vmem:[%s1 + $0x30] sm:$0xff]
  %v629 = vld [vmem:[%s1 + $0x38] sm:$0xff]
  %v630 = vld [vmem:[%s1 + $0x40] sm:$0xff]
  %v631 = vld [vmem:[%s1 + $0x48] sm:$0xff]
  %v632 = vld [vmem:[%s1 + $0x50] sm:$0xff]
  %v633 = vld [vmem:[%s1 + $0x58] sm:$0xff]
  %v634 = vld [vmem:[%s1 + $0x60] sm:$0xff]
  %v635 = vld [vmem:[%s1 + $0x68] sm:$0xff]
  %v636 = vld [vmem:[%s1 + $0x70] sm:$0xff]
  %v637 = vld [vmem:[%s1 + $0x78] sm:$0xff]
  %v638 = vld [vmem:[%s1 + $0x80] sm:$0xff]
  %v639 = vld [vmem:[%s1 + $0x88] sm:$0xff]
  %v640 = vld [vmem:[%s1 + $0x90] sm:$0xff]
  %v641 = vld [vmem:[%s1 + $0x98] sm:$0xff]
  %v642 = vld [vmem:[%s1 + $0xa0] sm:$0xff]
  %v643 = vld [vmem:[%s1 + $0xa8] sm:$0xff]
  %v644 = vld [vmem:[%s1 + $0xb0] sm:$0xff]
  %v645 = vld [vmem:[%s1 + $0xb8] sm:$0xff]
  %v646 = vld [vmem:[%s1 + $0xc0] sm:$0xff]
  %v647 = vld [vmem:[%s1 + $0xc8] sm:$0xff]
  %v648 = vld [vmem:[%s1 + $0xd0] sm:$0xff]
  %v649 = vld [vmem:[%s1 + $0xd8] sm:$0xff]
  %v650 = vld [vmem:[%s1 + $0xe0] sm:$0xff]
  %v651 = vld [vmem:[%s1 + $0xe8] sm:$0xff]
  %v652 = vld [vmem:[%s1 + $0xf0] sm:$0x7f]
  %682 = vrot.lane.b32.xlu0 %v624, 24
  %v683 = vpop.permute.xlu0 %682
  %684 = vrot.lane.b32.xlu0 %v625, 24
  %v685 = vpop.permute.xlu0 %684
  %686 = vrot.lane.b32.xlu0 %v626, 24
  %v687 = vpop.permute.xlu0 %686
  %688 = vrot.lane.b32.xlu0 %v627, 24
  %v689 = vpop.permute.xlu0 %688
  %690 = vrot.lane.b32.xlu0 %v628, 24
  %v691 = vpop.permute.xlu0 %690
  %692 = vrot.lane.b32.xlu0 %v629, 24
  %v693 = vpop.permute.xlu0 %692
  %694 = vrot.lane.b32.xlu0 %v630, 24
  %v695 = vpop.permute.xlu0 %694
  %696 = vrot.lane.b32.xlu0 %v631, 24
  %v697 = vpop.permute.xlu0 %696
  %698 = vrot.lane.b32.xlu0 %v632, 24
  %v699 = vpop.permute.xlu0 %698
  %700 = vrot.lane.b32.xlu0 %v633, 24
  %v701 = vpop.permute.xlu0 %700
  %702 = vrot.lane.b32.xlu0 %v634, 24
  %v703 = vpop.permute.xlu0 %702
  %704 = vrot.lane.b32.xlu0 %v635, 24
  %v705 = vpop.permute.xlu0 %704
  %706 = vrot.lane.b32.xlu0 %v636, 24
  %v707 = vpop.permute.xlu0 %706
  %708 = vrot.lane.b32.xlu0 %v637, 24
  %v709 = vpop.permute.xlu0 %708
  %710 = vrot.lane.b32.xlu0 %v638, 24
  %v711 = vpop.permute.xlu0 %710
  %712 = vrot.lane.b32.xlu0 %v639, 24
  %v713 = vpop.permute.xlu0 %712
  %714 = vrot.lane.b32.xlu0 %v640, 24
  %v715 = vpop.permute.xlu0 %714
  %716 = vrot.lane.b32.xlu0 %v641, 24
  %v717 = vpop.permute.xlu0 %716
  %718 = vrot.lane.b32.xlu0 %v642, 24
  %v719 = vpop.permute.xlu0 %718
  %720 = vrot.lane.b32.xlu0 %v643, 24
  %v721 = vpop.permute.xlu0 %720
  %722 = vrot.lane.b32.xlu0 %v644, 24
  %v723 = vpop.permute.xlu0 %722
  %724 = vrot.lane.b32.xlu0 %v645, 24
  %v725 = vpop.permute.xlu0 %724
  %726 = vrot.lane.b32.xlu0 %v646, 24
  %v727 = vpop.permute.xlu0 %726
  %728 = vrot.lane.b32.xlu0 %v647, 24
  %v729 = vpop.permute.xlu0 %728
  %730 = vrot.lane.b32.xlu0 %v648, 24
  %v731 = vpop.permute.xlu0 %730
  %732 = vrot.lane.b32.xlu0 %v649, 24
  %v733 = vpop.permute.xlu0 %732
  %734 = vrot.lane.b32.xlu0 %v650, 24
  %v735 = vpop.permute.xlu0 %734
  %736 = vrot.lane.b32.xlu0 %v651, 24
  %v737 = vpop.permute.xlu0 %736
  %738 = vrot.lane.b32.xlu0 %v652, 24
  %v739 = vpop.permute.xlu0 %738
  %vm769 = vcmask 261312
  %770 = vst.msk [vmem:[#allocation2] sm:$0xff] %vm769, %v683
  %771 = vst.msk [vmem:[#allocation2 + $0x8] sm:$0xff] %vm769, %v685
  %772 = vst.msk [vmem:[#allocation2 + $0x10] sm:$0xff] %vm769, %v687
  %773 = vst.msk [vmem:[#allocation2 + $0x18] sm:$0xff] %vm769, %v689
  %774 = vst.msk [vmem:[#allocation2 + $0x20] sm:$0xff] %vm769, %v691
  %775 = vst.msk [vmem:[#allocation2 + $0x28] sm:$0xff] %vm769, %v693
  %776 = vst.msk [vmem:[#allocation2 + $0x30] sm:$0xff] %vm769, %v695
  %777 = vst.msk [vmem:[#allocation2 + $0x38] sm:$0xff] %vm769, %v697
  %778 = vst.msk [vmem:[#allocation2 + $0x40] sm:$0xff] %vm769, %v699
  %779 = vst.msk [vmem:[#allocation2 + $0x48] sm:$0xff] %vm769, %v701
  %780 = vst.msk [vmem:[#allocation2 + $0x50] sm:$0xff] %vm769, %v703
  %781 = vst.msk [vmem:[#allocation2 + $0x58] sm:$0xff] %vm769, %v705
  %782 = vst.msk [vmem:[#allocation2 + $0x60] sm:$0xff] %vm769, %v707
  %783 = vst.msk [vmem:[#allocation2 + $0x68] sm:$0xff] %vm769, %v709
  %784 = vst.msk [vmem:[#allocation2 + $0x70] sm:$0xff] %vm769, %v711
  %785 = vst.msk [vmem:[#allocation2 + $0x78] sm:$0xff] %vm769, %v713
  %786 = vst.msk [vmem:[#allocation2 + $0x80] sm:$0xff] %vm769, %v715
  %787 = vst.msk [vmem:[#allocation2 + $0x88] sm:$0xff] %vm769, %v717
  %788 = vst.msk [vmem:[#allocation2 + $0x90] sm:$0xff] %vm769, %v719
  %789 = vst.msk [vmem:[#allocation2 + $0x98] sm:$0xff] %vm769, %v721
  %790 = vst.msk [vmem:[#allocation2 + $0xa0] sm:$0xff] %vm769, %v723
  %791 = vst.msk [vmem:[#allocation2 + $0xa8] sm:$0xff] %vm769, %v725
  %792 = vst.msk [vmem:[#allocation2 + $0xb0] sm:$0xff] %vm769, %v727
  %793 = vst.msk [vmem:[#allocation2 + $0xb8] sm:$0xff] %vm769, %v729
  %794 = vst.msk [vmem:[#allocation2 + $0xc0] sm:$0xff] %vm769, %v731
  %795 = vst.msk [vmem:[#allocation2 + $0xc8] sm:$0xff] %vm769, %v733
  %796 = vst.msk [vmem:[#allocation2 + $0xd0] sm:$0xff] %vm769, %v735
  %797 = vst.msk [vmem:[#allocation2 + $0xd8] sm:$0xff] %vm769, %v737
  %vm798 = vcmask 260288
  %799 = vst.msk [vmem:[#allocation2 + $0xe0] sm:$0x7f] %vm798, %v739
  %v800 = vld [vmem:[%s1 + $0x11] sm:$0xff]
  %v801 = vld [vmem:[%s1 + $0x19] sm:$0xff]
  %v802 = vld [vmem:[%s1 + $0x21] sm:$0xff]
  %v803 = vld [vmem:[%s1 + $0x29] sm:$0xff]
  %v804 = vld [vmem:[%s1 + $0x31] sm:$0xff]
  %v805 = vld [vmem:[%s1 + $0x39] sm:$0xff]
  %v806 = vld [vmem:[%s1 + $0x41] sm:$0xff]
  %v807 = vld [vmem:[%s1 + $0x49] sm:$0xff]
  %v808 = vld [vmem:[%s1 + $0x51] sm:$0xff]
  %v809 = vld [vmem:[%s1 + $0x59] sm:$0xff]
  %v810 = vld [vmem:[%s1 + $0x61] sm:$0xff]
  %v811 = vld [vmem:[%s1 + $0x69] sm:$0xff]
  %v812 = vld [vmem:[%s1 + $0x71] sm:$0xff]
  %v813 = vld [vmem:[%s1 + $0x79] sm:$0xff]
  %v814 = vld [vmem:[%s1 + $0x81] sm:$0xff]
  %v815 = vld [vmem:[%s1 + $0x89] sm:$0xff]
  %v816 = vld [vmem:[%s1 + $0x91] sm:$0xff]
  %v817 = vld [vmem:[%s1 + $0x99] sm:$0xff]
  %v818 = vld [vmem:[%s1 + $0xa1] sm:$0xff]
  %v819 = vld [vmem:[%s1 + $0xa9] sm:$0xff]
  %v820 = vld [vmem:[%s1 + $0xb1] sm:$0xff]
  %v821 = vld [vmem:[%s1 + $0xb9] sm:$0xff]
  %v822 = vld [vmem:[%s1 + $0xc1] sm:$0xff]
  %v823 = vld [vmem:[%s1 + $0xc9] sm:$0xff]
  %v824 = vld [vmem:[%s1 + $0xd1] sm:$0xff]
  %v825 = vld [vmem:[%s1 + $0xd9] sm:$0xff]
  %v826 = vld [vmem:[%s1 + $0xe1] sm:$0xff]
  %v827 = vld [vmem:[%s1 + $0xe9] sm:$0xff]
  %v828 = vld [vmem:[%s1 + $0xf1] sm:$0x7f]
  %858 = vrot.lane.b32.xlu0 %v800, 32
  %v859 = vpop.permute.xlu0 %858
  %860 = vrot.lane.b32.xlu0 %v801, 32
  %v861 = vpop.permute.xlu0 %860
  %862 = vrot.lane.b32.xlu0 %v802, 32
  %v863 = vpop.permute.xlu0 %862
  %864 = vrot.lane.b32.xlu0 %v803, 32
  %v865 = vpop.permute.xlu0 %864
  %866 = vrot.lane.b32.xlu0 %v804, 32
  %v867 = vpop.permute.xlu0 %866
  %868 = vrot.lane.b32.xlu0 %v805, 32
  %v869 = vpop.permute.xlu0 %868
  %870 = vrot.lane.b32.xlu0 %v806, 32
  %v871 = vpop.permute.xlu0 %870
  %872 = vrot.lane.b32.xlu0 %v807, 32
  %v873 = vpop.permute.xlu0 %872
  %874 = vrot.lane.b32.xlu0 %v808, 32
  %v875 = vpop.permute.xlu0 %874
  %876 = vrot.lane.b32.xlu0 %v809, 32
  %v877 = vpop.permute.xlu0 %876
  %878 = vrot.lane.b32.xlu0 %v810, 32
  %v879 = vpop.permute.xlu0 %878
  %880 = vrot.lane.b32.xlu0 %v811, 32
  %v881 = vpop.permute.xlu0 %880
  %882 = vrot.lane.b32.xlu0 %v812, 32
  %v883 = vpop.permute.xlu0 %882
  %884 = vrot.lane.b32.xlu0 %v813, 32
  %v885 = vpop.permute.xlu0 %884
  %886 = vrot.lane.b32.xlu0 %v814, 32
  %v887 = vpop.permute.xlu0 %886
  %888 = vrot.lane.b32.xlu0 %v815, 32
  %v889 = vpop.permute.xlu0 %888
  %890 = vrot.lane.b32.xlu0 %v816, 32
  %v891 = vpop.permute.xlu0 %890
  %892 = vrot.lane.b32.xlu0 %v817, 32
  %v893 = vpop.permute.xlu0 %892
  %894 = vrot.lane.b32.xlu0 %v818, 32
  %v895 = vpop.permute.xlu0 %894
  %896 = vrot.lane.b32.xlu0 %v819, 32
  %v897 = vpop.permute.xlu0 %896
  %898 = vrot.lane.b32.xlu0 %v820, 32
  %v899 = vpop.permute.xlu0 %898
  %900 = vrot.lane.b32.xlu0 %v821, 32
  %v901 = vpop.permute.xlu0 %900
  %902 = vrot.lane.b32.xlu0 %v822, 32
  %v903 = vpop.permute.xlu0 %902
  %904 = vrot.lane.b32.xlu0 %v823, 32
  %v905 = vpop.permute.xlu0 %904
  %906 = vrot.lane.b32.xlu0 %v824, 32
  %v907 = vpop.permute.xlu0 %906
  %908 = vrot.lane.b32.xlu0 %v825, 32
  %v909 = vpop.permute.xlu0 %908
  %910 = vrot.lane.b32.xlu0 %v826, 32
  %v911 = vpop.permute.xlu0 %910
  %912 = vrot.lane.b32.xlu0 %v827, 32
  %v913 = vpop.permute.xlu0 %912
  %914 = vrot.lane.b32.xlu0 %v828, 32
  %v915 = vpop.permute.xlu0 %914
  %vm945 = vcmask 294144
  %946 = vst.msk [vmem:[#allocation2] sm:$0xff] %vm945, %v859
  %947 = vst.msk [vmem:[#allocation2 + $0x8] sm:$0xff] %vm945, %v861
  %948 = vst.msk [vmem:[#allocation2 + $0x10] sm:$0xff] %vm945, %v863
  %949 = vst.msk [vmem:[#allocation2 + $0x18] sm:$0xff] %vm945, %v865
  %950 = vst.msk [vmem:[#allocation2 + $0x20] sm:$0xff] %vm945, %v867
  %951 = vst.msk [vmem:[#allocation2 + $0x28] sm:$0xff] %vm945, %v869
  %952 = vst.msk [vmem:[#allocation2 + $0x30] sm:$0xff] %vm945, %v871
  %953 = vst.msk [vmem:[#allocation2 + $0x38] sm:$0xff] %vm945, %v873
  %954 = vst.msk [vmem:[#allocation2 + $0x40] sm:$0xff] %vm945, %v875
  %955 = vst.msk [vmem:[#allocation2 + $0x48] sm:$0xff] %vm945, %v877
  %956 = vst.msk [vmem:[#allocation2 + $0x50] sm:$0xff] %vm945, %v879
  %957 = vst.msk [vmem:[#allocation2 + $0x58] sm:$0xff] %vm945, %v881
  %958 = vst.msk [vmem:[#allocation2 + $0x60] sm:$0xff] %vm945, %v883
  %959 = vst.msk [vmem:[#allocation2 + $0x68] sm:$0xff] %vm945, %v885
  %960 = vst.msk [vmem:[#allocation2 + $0x70] sm:$0xff] %vm945, %v887
  %961 = vst.msk [vmem:[#allocation2 + $0x78] sm:$0xff] %vm945, %v889
  %962 = vst.msk [vmem:[#allocation2 + $0x80] sm:$0xff] %vm945, %v891
  %963 = vst.msk [vmem:[#allocation2 + $0x88] sm:$0xff] %vm945, %v893
  %964 = vst.msk [vmem:[#allocation2 + $0x90] sm:$0xff] %vm945, %v895
  %965 = vst.msk [vmem:[#allocation2 + $0x98] sm:$0xff] %vm945, %v897
  %966 = vst.msk [vmem:[#allocation2 + $0xa0] sm:$0xff] %vm945, %v899
  %967 = vst.msk [vmem:[#allocation2 + $0xa8] sm:$0xff] %vm945, %v901
  %968 = vst.msk [vmem:[#allocation2 + $0xb0] sm:$0xff] %vm945, %v903
  %969 = vst.msk [vmem:[#allocation2 + $0xb8] sm:$0xff] %vm945, %v905
  %970 = vst.msk [vmem:[#allocation2 + $0xc0] sm:$0xff] %vm945, %v907
  %971 = vst.msk [vmem:[#allocation2 + $0xc8] sm:$0xff] %vm945, %v909
  %972 = vst.msk [vmem:[#allocation2 + $0xd0] sm:$0xff] %vm945, %v911
  %973 = vst.msk [vmem:[#allocation2 + $0xd8] sm:$0xff] %vm945, %v913
  %vm974 = vcmask 293120
  %975 = vst.msk [vmem:[#allocation2 + $0xe0] sm:$0x7f] %vm974, %v915
  %v976 = vld [vmem:[%s7] sm:$0x1]
  %v977 = vld [vmem:[#allocation2] sm:$0xff]
  %v978 = vld [vmem:[#allocation2 + $0x8] sm:$0xff]
  %v979 = vld [vmem:[#allocation2 + $0x10] sm:$0xff]
  %v980 = vld [vmem:[#allocation2 + $0x18] sm:$0xff]
  %v981 = vld [vmem:[#allocation2 + $0x20] sm:$0xff]
  %v982 = vld [vmem:[#allocation2 + $0x28] sm:$0xff]
  %v983 = vld [vmem:[#allocation2 + $0x30] sm:$0xff]
  %v984 = vld [vmem:[#allocation2 + $0x38] sm:$0xff]
  %v985 = vld [vmem:[#allocation2 + $0x40] sm:$0xff]
  %v986 = vld [vmem:[#allocation2 + $0x48] sm:$0xff]
  %v987 = vld [vmem:[#allocation2 + $0x50] sm:$0xff]
  %v988 = vld [vmem:[#allocation2 + $0x58] sm:$0xff]
  %v989 = vld [vmem:[#allocation2 + $0x60] sm:$0xff]
  %v990 = vld [vmem:[#allocation2 + $0x68] sm:$0xff]
  %v991 = vld [vmem:[#allocation2 + $0x70] sm:$0xff]
  %v992 = vld [vmem:[#allocation2 + $0x78] sm:$0xff]
  %v993 = vld [vmem:[#allocation2 + $0x80] sm:$0xff]
  %v994 = vld [vmem:[#allocation2 + $0x88] sm:$0xff]
  %v995 = vld [vmem:[#allocation2 + $0x90] sm:$0xff]
  %v996 = vld [vmem:[#allocation2 + $0x98] sm:$0xff]
  %v997 = vld [vmem:[#allocation2 + $0xa0] sm:$0xff]
  %v998 = vld [vmem:[#allocation2 + $0xa8] sm:$0xff]
  %v999 = vld [vmem:[#allocation2 + $0xb0] sm:$0xff]
  %v1000 = vld [vmem:[#allocation2 + $0xb8] sm:$0xff]
  %v1001 = vld [vmem:[#allocation2 + $0xc0] sm:$0xff]
  %v1002 = vld [vmem:[#allocation2 + $0xc8] sm:$0xff]
  %v1003 = vld [vmem:[#allocation2 + $0xd0] sm:$0xff]
  %v1004 = vld [vmem:[#allocation2 + $0xd8] sm:$0xff]
  %v1005 = vld [vmem:[#allocation2 + $0xe0] sm:$0x7f]
  %v1006 = vpack.c.bf16 %v978, %v977
  %v1007 = vpack.c.bf16 %v980, %v979
  %v1008 = vpack.c.bf16 %v982, %v981
  %v1009 = vpack.c.bf16 %v984, %v983
  %v1010 = vpack.c.bf16 %v986, %v985
  %v1011 = vpack.c.bf16 %v988, %v987
  %v1012 = vpack.c.bf16 %v990, %v989
  %v1013 = vpack.c.bf16 %v992, %v991
  %v1014 = vpack.c.bf16 %v994, %v993
  %v1015 = vpack.c.bf16 %v996, %v995
  %v1016 = vpack.c.bf16 %v998, %v997
  %v1017 = vpack.c.bf16 %v1000, %v999
  %v1018 = vpack.c.bf16 %v1002, %v1001
  %v1019 = vpack.c.bf16 %v1004, %v1003
  %v1020 = vpack.c.bf16 %v1005, %v1005
  %v1021 = vld [vmem:[%s2] sm:$0xf]
  %v1022 = vld [vmem:[%s2 + $0x4] sm:$0xf]
  %v1023 = vld [vmem:[%s2 + $0x8] sm:$0xf]
  %v1024 = vld [vmem:[%s2 + $0xc] sm:$0xf]
  %v1025 = vld [vmem:[%s2 + $0x10] sm:$0x3]
  %v1027 = vperm.slane %v976, 0
  %v1034 = vunpack.c.l.b16 %v1021
  %v1035 = vunpack.c.l.b16 %v1022
  %v1036 = vunpack.c.l.b16 %v1023
  %v1037 = vunpack.c.l.b16 %v1024
  %v1038 = vunpack.c.l.b16 %v1025
  %v1039 = vpack.c.b16 %v1035, %v1034
  %v1040 = vpack.c.b16 %v1037, %v1036
  %v1041 = vpack.c.b16 %v1038, %v1038
  %vm1044 = vcmask 293888
  %v1046 = vsel %vm1044, %v1006, 0
  %v1049 = vsel %vm1044, %v1007, 0
  %v1052 = vsel %vm1044, %v1008, 0
  %v1055 = vsel %vm1044, %v1009, 0
  %v1058 = vsel %vm1044, %v1010, 0
  %v1061 = vsel %vm1044, %v1011, 0
  %v1064 = vsel %vm1044, %v1012, 0
  %v1067 = vsel %vm1044, %v1013, 0
  %v1070 = vsel %vm1044, %v1014, 0
  %v1073 = vsel %vm1044, %v1015, 0
  %v1076 = vsel %vm1044, %v1016, 0
  %v1079 = vsel %vm1044, %v1017, 0
  %v1082 = vsel %vm1044, %v1018, 0
  %v1085 = vsel %vm1044, %v1019, 0
  %v1088 = vsel %vm1044, %v1020, 0
  %vm1090 = vcmask 1041408
  %v1092 = vsel %vm1090, %v1041, 0
  %1094 = vmatpush.bf16.msra.mxu0 0
  %1095 = vmatpush.bf16.msra.mxu0 0
  %1096 = vmatpush.bf16.msra.mxu0 0
  %1097 = vmatpush.bf16.msra.mxu0 0
  %1098 = vmatpush.bf16.msra.mxu0 0
  %1099 = vmatpush.bf16.msra.mxu0 %v1092
  %1100 = vmatpush.bf16.msra.mxu0 %v1040
  %1101 = vmatpush.bf16.msra.mxu0 %v1039
  %1102 = vmatmul.bf16.gmra.mxu0 %v1046
  %v1103 = vpop.f32.mrf.mxu0
  %v1104 = vadd.f32 %v1027, %v1103
  %v1105 = vpop.f32.mrf.mxu0
  %v1106 = vadd.f32 %v1027, %v1105
  %1107 = vmatmul.bf16.gmra.mxu0 %v1049
  %v1108 = vpop.f32.mrf.mxu0
  %v1109 = vadd.f32 %v1027, %v1108
  %v1110 = vpop.f32.mrf.mxu0
  %v1111 = vadd.f32 %v1027, %v1110
  %1112 = vmatmul.bf16.gmra.mxu0 %v1052
  %v1113 = vpop.f32.mrf.mxu0
  %v1114 = vadd.f32 %v1027, %v1113
  %v1115 = vpop.f32.mrf.mxu0
  %v1116 = vadd.f32 %v1027, %v1115
  %1117 = vmatmul.bf16.gmra.mxu0 %v1055
  %v1118 = vpop.f32.mrf.mxu0
  %v1119 = vadd.f32 %v1027, %v1118
  %v1120 = vpop.f32.mrf.mxu0
  %v1121 = vadd.f32 %v1027, %v1120
  %1122 = vmatmul.bf16.gmra.mxu0 %v1058
  %v1123 = vpop.f32.mrf.mxu0
  %v1124 = vadd.f32 %v1027, %v1123
  %v1125 = vpop.f32.mrf.mxu0
  %v1126 = vadd.f32 %v1027, %v1125
  %1127 = vmatmul.bf16.gmra.mxu0 %v1061
  %v1128 = vpop.f32.mrf.mxu0
  %v1129 = vadd.f32 %v1027, %v1128
  %v1130 = vpop.f32.mrf.mxu0
  %v1131 = vadd.f32 %v1027, %v1130
  %1132 = vmatmul.bf16.gmra.mxu0 %v1064
  %v1133 = vpop.f32.mrf.mxu0
  %v1134 = vadd.f32 %v1027, %v1133
  %v1135 = vpop.f32.mrf.mxu0
  %v1136 = vadd.f32 %v1027, %v1135
  %1137 = vmatmul.bf16.gmra.mxu0 %v1067
  %v1138 = vpop.f32.mrf.mxu0
  %v1139 = vadd.f32 %v1027, %v1138
  %v1140 = vpop.f32.mrf.mxu0
  %v1141 = vadd.f32 %v1027, %v1140
  %1142 = vmatmul.bf16.gmra.mxu0 %v1070
  %v1143 = vpop.f32.mrf.mxu0
  %v1144 = vadd.f32 %v1027, %v1143
  %v1145 = vpop.f32.mrf.mxu0
  %v1146 = vadd.f32 %v1027, %v1145
  %1147 = vmatmul.bf16.gmra.mxu0 %v1073
  %v1148 = vpop.f32.mrf.mxu0
  %v1149 = vadd.f32 %v1027, %v1148
  %v1150 = vpop.f32.mrf.mxu0
  %v1151 = vadd.f32 %v1027, %v1150
  %1152 = vmatmul.bf16.gmra.mxu0 %v1076
  %v1153 = vpop.f32.mrf.mxu0
  %v1154 = vadd.f32 %v1027, %v1153
  %v1155 = vpop.f32.mrf.mxu0
  %v1156 = vadd.f32 %v1027, %v1155
  %1157 = vmatmul.bf16.gmra.mxu0 %v1079
  %v1158 = vpop.f32.mrf.mxu0
  %v1159 = vadd.f32 %v1027, %v1158
  %v1160 = vpop.f32.mrf.mxu0
  %v1161 = vadd.f32 %v1027, %v1160
  %1162 = vmatmul.bf16.gmra.mxu0 %v1082
  %v1163 = vpop.f32.mrf.mxu0
  %v1164 = vadd.f32 %v1027, %v1163
  %v1165 = vpop.f32.mrf.mxu0
  %v1166 = vadd.f32 %v1027, %v1165
  %1167 = vmatmul.bf16.gmra.mxu0 %v1085
  %v1168 = vpop.f32.mrf.mxu0
  %v1169 = vadd.f32 %v1027, %v1168
  %v1170 = vpop.f32.mrf.mxu0
  %v1171 = vadd.f32 %v1027, %v1170
  %1172 = vmatmul.bf16.gmra.mxu0 %v1088
  %v1173 = vpop.f32.mrf.mxu0
  %v1174 = vadd.f32 %v1027, %v1173
  %v1175 = vpop.f32.mrf.mxu0
  %1176 = vdwg.mxu0
  %v1177 = vmax.f32 %v1104, 0.0
  %v1178 = vmax.f32 %v1106, 0.0
  %v1179 = vmax.f32 %v1109, 0.0
  %v1180 = vmax.f32 %v1111, 0.0
  %v1181 = vmax.f32 %v1114, 0.0
  %v1182 = vmax.f32 %v1116, 0.0
  %v1183 = vmax.f32 %v1119, 0.0
  %v1184 = vmax.f32 %v1121, 0.0
  %v1185 = vmax.f32 %v1124, 0.0
  %v1186 = vmax.f32 %v1126, 0.0
  %v1187 = vmax.f32 %v1129, 0.0
  %v1188 = vmax.f32 %v1131, 0.0
  %v1189 = vmax.f32 %v1134, 0.0
  %v1190 = vmax.f32 %v1136, 0.0
  %v1191 = vmax.f32 %v1139, 0.0
  %v1192 = vmax.f32 %v1141, 0.0
  %v1193 = vmax.f32 %v1144, 0.0
  %v1194 = vmax.f32 %v1146, 0.0
  %v1195 = vmax.f32 %v1149, 0.0
  %v1196 = vmax.f32 %v1151, 0.0
  %v1197 = vmax.f32 %v1154, 0.0
  %v1198 = vmax.f32 %v1156, 0.0
  %v1199 = vmax.f32 %v1159, 0.0
  %v1200 = vmax.f32 %v1161, 0.0
  %v1201 = vmax.f32 %v1164, 0.0
  %v1202 = vmax.f32 %v1166, 0.0
  %v1203 = vmax.f32 %v1169, 0.0
  %v1204 = vmax.f32 %v1171, 0.0
  %v1205 = vmax.f32 %v1174, 0.0
  %vm1206 = vcmask 261120
  %1207 = vst.msk [vmem:[#allocation3] sm:$0xff] %vm1206, %v1177
  %1208 = vst.msk [vmem:[#allocation3 + $0x8] sm:$0xff] %vm1206, %v1178
  %1209 = vst.msk [vmem:[#allocation3 + $0x10] sm:$0xff] %vm1206, %v1179
  %1210 = vst.msk [vmem:[#allocation3 + $0x18] sm:$0xff] %vm1206, %v1180
  %1211 = vst.msk [vmem:[#allocation3 + $0x20] sm:$0xff] %vm1206, %v1181
  %1212 = vst.msk [vmem:[#allocation3 + $0x28] sm:$0xff] %vm1206, %v1182
  %1213 = vst.msk [vmem:[#allocation3 + $0x30] sm:$0xff] %vm1206, %v1183
  %1214 = vst.msk [vmem:[#allocation3 + $0x38] sm:$0xff] %vm1206, %v1184
  %1215 = vst.msk [vmem:[#allocation3 + $0x40] sm:$0xff] %vm1206, %v1185
  %1216 = vst.msk [vmem:[#allocation3 + $0x48] sm:$0xff] %vm1206, %v1186
  %1217 = vst.msk [vmem:[#allocation3 + $0x50] sm:$0xff] %vm1206, %v1187
  %1218 = vst.msk [vmem:[#allocation3 + $0x58] sm:$0xff] %vm1206, %v1188
  %1219 = vst.msk [vmem:[#allocation3 + $0x60] sm:$0xff] %vm1206, %v1189
  %1220 = vst.msk [vmem:[#allocation3 + $0x68] sm:$0xff] %vm1206, %v1190
  %1221 = vst.msk [vmem:[#allocation3 + $0x70] sm:$0xff] %vm1206, %v1191
  %1222 = vst.msk [vmem:[#allocation3 + $0x78] sm:$0xff] %vm1206, %v1192
  %1223 = vst.msk [vmem:[#allocation3 + $0x80] sm:$0xff] %vm1206, %v1193
  %1224 = vst.msk [vmem:[#allocation3 + $0x88] sm:$0xff] %vm1206, %v1194
  %1225 = vst.msk [vmem:[#allocation3 + $0x90] sm:$0xff] %vm1206, %v1195
  %1226 = vst.msk [vmem:[#allocation3 + $0x98] sm:$0xff] %vm1206, %v1196
  %1227 = vst.msk [vmem:[#allocation3 + $0xa0] sm:$0xff] %vm1206, %v1197
  %1228 = vst.msk [vmem:[#allocation3 + $0xa8] sm:$0xff] %vm1206, %v1198
  %1229 = vst.msk [vmem:[#allocation3 + $0xb0] sm:$0xff] %vm1206, %v1199
  %1230 = vst.msk [vmem:[#allocation3 + $0xb8] sm:$0xff] %vm1206, %v1200
  %1231 = vst.msk [vmem:[#allocation3 + $0xc0] sm:$0xff] %vm1206, %v1201
  %1232 = vst.msk [vmem:[#allocation3 + $0xc8] sm:$0xff] %vm1206, %v1202
  %1233 = vst.msk [vmem:[#allocation3 + $0xd0] sm:$0xff] %vm1206, %v1203
  %1234 = vst.msk [vmem:[#allocation3 + $0xd8] sm:$0xff] %vm1206, %v1204
  %vm1235 = vcmask 260096
  %1236 = vst.msk [vmem:[#allocation3 + $0xe0] sm:$0x7f] %vm1235, %v1205
  %v1237 = vld [vmem:[#allocation3] ss:$2 sm:$0xff]
  %s1238 = scalar_lea.vmem [#allocation3], 16
  %v1239 = vld [vmem:[%s1238] ss:$2 sm:$0xff]
  %s1240 = scalar_lea.vmem [#allocation3], 32
  %v1241 = vld [vmem:[%s1240] ss:$2 sm:$0xff]
  %s1242 = scalar_lea.vmem [#allocation3], 48
  %v1243 = vld [vmem:[%s1242] ss:$2 sm:$0xff]
  %s1244 = scalar_lea.vmem [#allocation3], 64
  %v1245 = vld [vmem:[%s1244] ss:$2 sm:$0xff]
  %s1246 = scalar_lea.vmem [#allocation3], 80
  %v1247 = vld [vmem:[%s1246] ss:$2 sm:$0xff]
  %s1248 = scalar_lea.vmem [#allocation3], 96
  %v1249 = vld [vmem:[%s1248] ss:$2 sm:$0xff]
  %s1250 = scalar_lea.vmem [#allocation3], 112
  %v1251 = vld [vmem:[%s1250] ss:$2 sm:$0xff]
  %s1252 = scalar_lea.vmem [#allocation3], 128
  %v1253 = vld [vmem:[%s1252] ss:$2 sm:$0xff]
  %s1254 = scalar_lea.vmem [#allocation3], 144
  %v1255 = vld [vmem:[%s1254] ss:$2 sm:$0xff]
  %s1256 = scalar_lea.vmem [#allocation3], 160
  %v1257 = vld [vmem:[%s1256] ss:$2 sm:$0xff]
  %s1258 = scalar_lea.vmem [#allocation3], 176
  %v1259 = vld [vmem:[%s1258] ss:$2 sm:$0xff]
  %s1260 = scalar_lea.vmem [#allocation3], 192
  %v1261 = vld [vmem:[%s1260] ss:$2 sm:$0x7]
  %1262 = vst.msk [vmem:[#allocation4] sm:$0xff] %vm1206, %v1237
  %1263 = vst.msk [vmem:[#allocation4 + $0x18] sm:$0xff] %vm1206, %v1239
  %1264 = vst.msk [vmem:[#allocation4 + $0x30] sm:$0xff] %vm1206, %v1241
  %1265 = vst.msk [vmem:[#allocation4 + $0x48] sm:$0xff] %vm1206, %v1243
  %1266 = vst.msk [vmem:[#allocation4 + $0x60] sm:$0xff] %vm1206, %v1245
  %1267 = vst.msk [vmem:[#allocation4 + $0x78] sm:$0xff] %vm1206, %v1247
  %1268 = vst.msk [vmem:[#allocation4 + $0x90] sm:$0xff] %vm1206, %v1249
  %1269 = vst.msk [vmem:[#allocation4 + $0xa8] sm:$0xff] %vm1206, %v1251
  %1270 = vst.msk [vmem:[#allocation4 + $0xc0] sm:$0xff] %vm1206, %v1253
  %1271 = vst.msk [vmem:[#allocation4 + $0xd8] sm:$0xff] %vm1206, %v1255
  %1272 = vst.msk [vmem:[#allocation4 + $0xf0] sm:$0xff] %vm1206, %v1257
  %1273 = vst.msk [vmem:[#allocation4 + $0x108] sm:$0xff] %vm1206, %v1259
  %vm1274 = vcmask 256000
  %1275 = vst.msk [vmem:[#allocation4 + $0x120] sm:$0x7] %vm1274, %v1261
  %s1276 = scalar_lea.vmem [#allocation3], 1
  %v1277 = vld [vmem:[%s1276] ss:$2 sm:$0xff]
  %s1278 = scalar_lea.vmem [#allocation3], 17
  %v1279 = vld [vmem:[%s1278] ss:$2 sm:$0xff]
  %s1280 = scalar_lea.vmem [#allocation3], 33
  %v1281 = vld [vmem:[%s1280] ss:$2 sm:$0xff]
  %s1282 = scalar_lea.vmem [#allocation3], 49
  %v1283 = vld [vmem:[%s1282] ss:$2 sm:$0xff]
  %s1284 = scalar_lea.vmem [#allocation3], 65
  %v1285 = vld [vmem:[%s1284] ss:$2 sm:$0xff]
  %s1286 = scalar_lea.vmem [#allocation3], 81
  %v1287 = vld [vmem:[%s1286] ss:$2 sm:$0xff]
  %s1288 = scalar_lea.vmem [#allocation3], 97
  %v1289 = vld [vmem:[%s1288] ss:$2 sm:$0xff]
  %s1290 = scalar_lea.vmem [#allocation3], 113
  %v1291 = vld [vmem:[%s1290] ss:$2 sm:$0xff]
  %s1292 = scalar_lea.vmem [#allocation3], 129
  %v1293 = vld [vmem:[%s1292] ss:$2 sm:$0xff]
  %s1294 = scalar_lea.vmem [#allocation3], 145
  %v1295 = vld [vmem:[%s1294] ss:$2 sm:$0xff]
  %s1296 = scalar_lea.vmem [#allocation3], 161
  %v1297 = vld [vmem:[%s1296] ss:$2 sm:$0xff]
  %s1298 = scalar_lea.vmem [#allocation3], 177
  %v1299 = vld [vmem:[%s1298] ss:$2 sm:$0xff]
  %s1300 = scalar_lea.vmem [#allocation3], 193
  %v1301 = vld [vmem:[%s1300] ss:$2 sm:$0x7]
  %1315 = vrot.lane.b32.xlu0 %v1277, 32
  %v1316 = vpop.permute.xlu0 %1315
  %1317 = vrot.lane.b32.xlu0 %v1279, 32
  %v1318 = vpop.permute.xlu0 %1317
  %1319 = vrot.lane.b32.xlu0 %v1281, 32
  %v1320 = vpop.permute.xlu0 %1319
  %1321 = vrot.lane.b32.xlu0 %v1283, 32
  %v1322 = vpop.permute.xlu0 %1321
  %1323 = vrot.lane.b32.xlu0 %v1285, 32
  %v1324 = vpop.permute.xlu0 %1323
  %1325 = vrot.lane.b32.xlu0 %v1287, 32
  %v1326 = vpop.permute.xlu0 %1325
  %1327 = vrot.lane.b32.xlu0 %v1289, 32
  %v1328 = vpop.permute.xlu0 %1327
  %1329 = vrot.lane.b32.xlu0 %v1291, 32
  %v1330 = vpop.permute.xlu0 %1329
  %1331 = vrot.lane.b32.xlu0 %v1293, 32
  %v1332 = vpop.permute.xlu0 %1331
  %1333 = vrot.lane.b32.xlu0 %v1295, 32
  %v1334 = vpop.permute.xlu0 %1333
  %1335 = vrot.lane.b32.xlu0 %v1297, 32
  %v1336 = vpop.permute.xlu0 %1335
  %1337 = vrot.lane.b32.xlu0 %v1299, 32
  %v1338 = vpop.permute.xlu0 %1337
  %1339 = vrot.lane.b32.xlu0 %v1301, 32
  %v1340 = vpop.permute.xlu0 %1339
  %vm1354 = vcmask 523520
  %1355 = vst.msk [vmem:[#allocation4] sm:$0xff] %vm1354, %v1316
  %1356 = vst.msk [vmem:[#allocation4 + $0x18] sm:$0xff] %vm1354, %v1318
  %1357 = vst.msk [vmem:[#allocation4 + $0x30] sm:$0xff] %vm1354, %v1320
  %1358 = vst.msk [vmem:[#allocation4 + $0x48] sm:$0xff] %vm1354, %v1322
  %1359 = vst.msk [vmem:[#allocation4 + $0x60] sm:$0xff] %vm1354, %v1324
  %1360 = vst.msk [vmem:[#allocation4 + $0x78] sm:$0xff] %vm1354, %v1326
  %1361 = vst.msk [vmem:[#allocation4 + $0x90] sm:$0xff] %vm1354, %v1328
  %1362 = vst.msk [vmem:[#allocation4 + $0xa8] sm:$0xff] %vm1354, %v1330
  %1363 = vst.msk [vmem:[#allocation4 + $0xc0] sm:$0xff] %vm1354, %v1332
  %1364 = vst.msk [vmem:[#allocation4 + $0xd8] sm:$0xff] %vm1354, %v1334
  %1365 = vst.msk [vmem:[#allocation4 + $0xf0] sm:$0xff] %vm1354, %v1336
  %1366 = vst.msk [vmem:[#allocation4 + $0x108] sm:$0xff] %vm1354, %v1338
  %vm1367 = vcmask 518400
  %1368 = vst.msk [vmem:[#allocation4 + $0x120] sm:$0x7] %vm1367, %v1340
  %s1369 = scalar_lea.vmem [#allocation3], 2
  %v1370 = vld [vmem:[%s1369] ss:$2 sm:$0xff]
  %s1371 = scalar_lea.vmem [#allocation3], 18
  %v1372 = vld [vmem:[%s1371] ss:$2 sm:$0xff]
  %s1373 = scalar_lea.vmem [#allocation3], 34
  %v1374 = vld [vmem:[%s1373] ss:$2 sm:$0xff]
  %s1375 = scalar_lea.vmem [#allocation3], 50
  %v1376 = vld [vmem:[%s1375] ss:$2 sm:$0xff]
  %s1377 = scalar_lea.vmem [#allocation3], 66
  %v1378 = vld [vmem:[%s1377] ss:$2 sm:$0xff]
  %s1379 = scalar_lea.vmem [#allocation3], 82
  %v1380 = vld [vmem:[%s1379] ss:$2 sm:$0xff]
  %s1381 = scalar_lea.vmem [#allocation3], 98
  %v1382 = vld [vmem:[%s1381] ss:$2 sm:$0xff]
  %s1383 = scalar_lea.vmem [#allocation3], 114
  %v1384 = vld [vmem:[%s1383] ss:$2 sm:$0xff]
  %s1385 = scalar_lea.vmem [#allocation3], 130
  %v1386 = vld [vmem:[%s1385] ss:$2 sm:$0xff]
  %s1387 = scalar_lea.vmem [#allocation3], 146
  %v1388 = vld [vmem:[%s1387] ss:$2 sm:$0xff]
  %s1389 = scalar_lea.vmem [#allocation3], 162
  %v1390 = vld [vmem:[%s1389] ss:$2 sm:$0xff]
  %s1391 = scalar_lea.vmem [#allocation3], 178
  %v1392 = vld [vmem:[%s1391] ss:$2 sm:$0xff]
  %s1393 = scalar_lea.vmem [#allocation3], 194
  %v1394 = vld [vmem:[%s1393] ss:$2 sm:$0x7]
  %1408 = vrot.lane.b32.xlu0 %v1370, 64
  %v1409 = vpop.permute.xlu0 %1408
  %1410 = vrot.lane.b32.xlu0 %v1372, 64
  %v1411 = vpop.permute.xlu0 %1410
  %1412 = vrot.lane.b32.xlu0 %v1374, 64
  %v1413 = vpop.permute.xlu0 %1412
  %1414 = vrot.lane.b32.xlu0 %v1376, 64
  %v1415 = vpop.permute.xlu0 %1414
  %1416 = vrot.lane.b32.xlu0 %v1378, 64
  %v1417 = vpop.permute.xlu0 %1416
  %1418 = vrot.lane.b32.xlu0 %v1380, 64
  %v1419 = vpop.permute.xlu0 %1418
  %1420 = vrot.lane.b32.xlu0 %v1382, 64
  %v1421 = vpop.permute.xlu0 %1420
  %1422 = vrot.lane.b32.xlu0 %v1384, 64
  %v1423 = vpop.permute.xlu0 %1422
  %1424 = vrot.lane.b32.xlu0 %v1386, 64
  %v1425 = vpop.permute.xlu0 %1424
  %1426 = vrot.lane.b32.xlu0 %v1388, 64
  %v1427 = vpop.permute.xlu0 %1426
  %1428 = vrot.lane.b32.xlu0 %v1390, 64
  %v1429 = vpop.permute.xlu0 %1428
  %1430 = vrot.lane.b32.xlu0 %v1392, 64
  %v1431 = vpop.permute.xlu0 %1430
  %1432 = vrot.lane.b32.xlu0 %v1394, 64
  %v1433 = vpop.permute.xlu0 %1432
  %vm1447 = vcmask 785920
  %1448 = vst.msk [vmem:[#allocation4] sm:$0xff] %vm1447, %v1409
  %1449 = vst.msk [vmem:[#allocation4 + $0x18] sm:$0xff] %vm1447, %v1411
  %1450 = vst.msk [vmem:[#allocation4 + $0x30] sm:$0xff] %vm1447, %v1413
  %1451 = vst.msk [vmem:[#allocation4 + $0x48] sm:$0xff] %vm1447, %v1415
  %1452 = vst.msk [vmem:[#allocation4 + $0x60] sm:$0xff] %vm1447, %v1417
  %1453 = vst.msk [vmem:[#allocation4 + $0x78] sm:$0xff] %vm1447, %v1419
  %1454 = vst.msk [vmem:[#allocation4 + $0x90] sm:$0xff] %vm1447, %v1421
  %1455 = vst.msk [vmem:[#allocation4 + $0xa8] sm:$0xff] %vm1447, %v1423
  %1456 = vst.msk [vmem:[#allocation4 + $0xc0] sm:$0xff] %vm1447, %v1425
  %1457 = vst.msk [vmem:[#allocation4 + $0xd8] sm:$0xff] %vm1447, %v1427
  %1458 = vst.msk [vmem:[#allocation4 + $0xf0] sm:$0xff] %vm1447, %v1429
  %1459 = vst.msk [vmem:[#allocation4 + $0x108] sm:$0xff] %vm1447, %v1431
  %vm1460 = vcmask 780800
  %1461 = vst.msk [vmem:[#allocation4 + $0x120] sm:$0x7] %vm1460, %v1433
  %v1462 = vld [vmem:[%s1238] ss:$2 sm:$0xff]
  %v1463 = vld [vmem:[%s1240] ss:$2 sm:$0xff]
  %v1464 = vld [vmem:[%s1242] ss:$2 sm:$0xff]
  %v1465 = vld [vmem:[%s1244] ss:$2 sm:$0xff]
  %v1466 = vld [vmem:[%s1246] ss:$2 sm:$0xff]
  %v1467 = vld [vmem:[%s1248] ss:$2 sm:$0xff]
  %v1468 = vld [vmem:[%s1250] ss:$2 sm:$0xff]
  %v1469 = vld [vmem:[%s1252] ss:$2 sm:$0xff]
  %v1470 = vld [vmem:[%s1254] ss:$2 sm:$0xff]
  %v1471 = vld [vmem:[%s1256] ss:$2 sm:$0xff]
  %v1472 = vld [vmem:[%s1258] ss:$2 sm:$0xff]
  %v1473 = vld [vmem:[%s1260] ss:$2 sm:$0xff]
  %s1474 = scalar_lea.vmem [#allocation3], 208
  %v1475 = vld [vmem:[%s1474] ss:$2 sm:$0x7]
  %1489 = vrot.lane.b32.xlu0 %v1462, 96
  %v1490 = vpop.permute.xlu0 %1489
  %1491 = vrot.lane.b32.xlu0 %v1463, 96
  %v1492 = vpop.permute.xlu0 %1491
  %1493 = vrot.lane.b32.xlu0 %v1464, 96
  %v1494 = vpop.permute.xlu0 %1493
  %1495 = vrot.lane.b32.xlu0 %v1465, 96
  %v1496 = vpop.permute.xlu0 %1495
  %1497 = vrot.lane.b32.xlu0 %v1466, 96
  %v1498 = vpop.permute.xlu0 %1497
  %1499 = vrot.lane.b32.xlu0 %v1467, 96
  %v1500 = vpop.permute.xlu0 %1499
  %1501 = vrot.lane.b32.xlu0 %v1468, 96
  %v1502 = vpop.permute.xlu0 %1501
  %1503 = vrot.lane.b32.xlu0 %v1469, 96
  %v1504 = vpop.permute.xlu0 %1503
  %1505 = vrot.lane.b32.xlu0 %v1470, 96
  %v1506 = vpop.permute.xlu0 %1505
  %1507 = vrot.lane.b32.xlu0 %v1471, 96
  %v1508 = vpop.permute.xlu0 %1507
  %1509 = vrot.lane.b32.xlu0 %v1472, 96
  %v1510 = vpop.permute.xlu0 %1509
  %1511 = vrot.lane.b32.xlu0 %v1473, 96
  %v1512 = vpop.permute.xlu0 %1511
  %1513 = vrot.lane.b32.xlu0 %v1475, 96
  %v1514 = vpop.permute.xlu0 %1513
  %vm1528 = vcmask 1048320
  %1529 = vst.msk [vmem:[#allocation4] sm:$0xff] %vm1528, %v1490
  %1530 = vst.msk [vmem:[#allocation4 + $0x18] sm:$0xff] %vm1528, %v1492
  %1531 = vst.msk [vmem:[#allocation4 + $0x30] sm:$0xff] %vm1528, %v1494
  %1532 = vst.msk [vmem:[#allocation4 + $0x48] sm:$0xff] %vm1528, %v1496
  %1533 = vst.msk [vmem:[#allocation4 + $0x60] sm:$0xff] %vm1528, %v1498
  %1534 = vst.msk [vmem:[#allocation4 + $0x78] sm:$0xff] %vm1528, %v1500
  %1535 = vst.msk [vmem:[#allocation4 + $0x90] sm:$0xff] %vm1528, %v1502
  %1536 = vst.msk [vmem:[#allocation4 + $0xa8] sm:$0xff] %vm1528, %v1504
  %1537 = vst.msk [vmem:[#allocation4 + $0xc0] sm:$0xff] %vm1528, %v1506
  %1538 = vst.msk [vmem:[#allocation4 + $0xd8] sm:$0xff] %vm1528, %v1508
  %1539 = vst.msk [vmem:[#allocation4 + $0xf0] sm:$0xff] %vm1528, %v1510
  %1540 = vst.msk [vmem:[#allocation4 + $0x108] sm:$0xff] %vm1528, %v1512
  %vm1541 = vcmask 1043200
  %1542 = vst.msk [vmem:[#allocation4 + $0x120] sm:$0x7] %vm1541, %v1514
  %v1543 = vld [vmem:[%s1278] ss:$2 sm:$0xff]
  %v1544 = vld [vmem:[%s1280] ss:$2 sm:$0xff]
  %v1545 = vld [vmem:[%s1282] ss:$2 sm:$0xff]
  %v1546 = vld [vmem:[%s1284] ss:$2 sm:$0xff]
  %v1547 = vld [vmem:[%s1286] ss:$2 sm:$0xff]
  %v1548 = vld [vmem:[%s1288] ss:$2 sm:$0xff]
  %v1549 = vld [vmem:[%s1290] ss:$2 sm:$0xff]
  %v1550 = vld [vmem:[%s1292] ss:$2 sm:$0xff]
  %v1551 = vld [vmem:[%s1294] ss:$2 sm:$0xff]
  %v1552 = vld [vmem:[%s1296] ss:$2 sm:$0xff]
  %v1553 = vld [vmem:[%s1298] ss:$2 sm:$0xff]
  %v1554 = vld [vmem:[%s1300] ss:$2 sm:$0xff]
  %s1555 = scalar_lea.vmem [#allocation3], 209
  %v1556 = vld [vmem:[%s1555] ss:$2 sm:$0x7]
  %1557 = vst.msk [vmem:[#allocation4 + $0x8] sm:$0xff] %vm1206, %v1543
  %1558 = vst.msk [vmem:[#allocation4 + $0x20] sm:$0xff] %vm1206, %v1544
  %1559 = vst.msk [vmem:[#allocation4 + $0x38] sm:$0xff] %vm1206, %v1545
  %1560 = vst.msk [vmem:[#allocation4 + $0x50] sm:$0xff] %vm1206, %v1546
  %1561 = vst.msk [vmem:[#allocation4 + $0x68] sm:$0xff] %vm1206, %v1547
  %1562 = vst.msk [vmem:[#allocation4 + $0x80] sm:$0xff] %vm1206, %v1548
  %1563 = vst.msk [vmem:[#allocation4 + $0x98] sm:$0xff] %vm1206, %v1549
  %1564 = vst.msk [vmem:[#allocation4 + $0xb0] sm:$0xff] %vm1206, %v1550
  %1565 = vst.msk [vmem:[#allocation4 + $0xc8] sm:$0xff] %vm1206, %v1551
  %1566 = vst.msk [vmem:[#allocation4 + $0xe0] sm:$0xff] %vm1206, %v1552
  %1567 = vst.msk [vmem:[#allocation4 + $0xf8] sm:$0xff] %vm1206, %v1553
  %1568 = vst.msk [vmem:[#allocation4 + $0x110] sm:$0xff] %vm1206, %v1554
  %1569 = vst.msk [vmem:[#allocation4 + $0x128] sm:$0x7] %vm1274, %v1556
  %v1570 = vld [vmem:[%s1371] ss:$2 sm:$0xff]
  %v1571 = vld [vmem:[%s1373] ss:$2 sm:$0xff]
  %v1572 = vld [vmem:[%s1375] ss:$2 sm:$0xff]
  %v1573 = vld [vmem:[%s1377] ss:$2 sm:$0xff]
  %v1574 = vld [vmem:[%s1379] ss:$2 sm:$0xff]
  %v1575 = vld [vmem:[%s1381] ss:$2 sm:$0xff]
  %v1576 = vld [vmem:[%s1383] ss:$2 sm:$0xff]
  %v1577 = vld [vmem:[%s1385] ss:$2 sm:$0xff]
  %v1578 = vld [vmem:[%s1387] ss:$2 sm:$0xff]
  %v1579 = vld [vmem:[%s1389] ss:$2 sm:$0xff]
  %v1580 = vld [vmem:[%s1391] ss:$2 sm:$0xff]
  %v1581 = vld [vmem:[%s1393] ss:$2 sm:$0xff]
  %s1582 = scalar_lea.vmem [#allocation3], 210
  %v1583 = vld [vmem:[%s1582] ss:$2 sm:$0x7]
  %1597 = vrot.lane.b32.xlu0 %v1570, 32
  %v1598 = vpop.permute.xlu0 %1597
  %1599 = vrot.lane.b32.xlu0 %v1571, 32
  %v1600 = vpop.permute.xlu0 %1599
  %1601 = vrot.lane.b32.xlu0 %v1572, 32
  %v1602 = vpop.permute.xlu0 %1601
  %1603 = vrot.lane.b32.xlu0 %v1573, 32
  %v1604 = vpop.permute.xlu0 %1603
  %1605 = vrot.lane.b32.xlu0 %v1574, 32
  %v1606 = vpop.permute.xlu0 %1605
  %1607 = vrot.lane.b32.xlu0 %v1575, 32
  %v1608 = vpop.permute.xlu0 %1607
  %1609 = vrot.lane.b32.xlu0 %v1576, 32
  %v1610 = vpop.permute.xlu0 %1609
  %1611 = vrot.lane.b32.xlu0 %v1577, 32
  %v1612 = vpop.permute.xlu0 %1611
  %1613 = vrot.lane.b32.xlu0 %v1578, 32
  %v1614 = vpop.permute.xlu0 %1613
  %1615 = vrot.lane.b32.xlu0 %v1579, 32
  %v1616 = vpop.permute.xlu0 %1615
  %1617 = vrot.lane.b32.xlu0 %v1580, 32
  %v1618 = vpop.permute.xlu0 %1617
  %1619 = vrot.lane.b32.xlu0 %v1581, 32
  %v1620 = vpop.permute.xlu0 %1619
  %1621 = vrot.lane.b32.xlu0 %v1583, 32
  %v1622 = vpop.permute.xlu0 %1621
  %1636 = vst.msk [vmem:[#allocation4 + $0x8] sm:$0xff] %vm1354, %v1598
  %1637 = vst.msk [vmem:[#allocation4 + $0x20] sm:$0xff] %vm1354, %v1600
  %1638 = vst.msk [vmem:[#allocation4 + $0x38] sm:$0xff] %vm1354, %v1602
  %1639 = vst.msk [vmem:[#allocation4 + $0x50] sm:$0xff] %vm1354, %v1604
  %1640 = vst.msk [vmem:[#allocation4 + $0x68] sm:$0xff] %vm1354, %v1606
  %1641 = vst.msk [vmem:[#allocation4 + $0x80] sm:$0xff] %vm1354, %v1608
  %1642 = vst.msk [vmem:[#allocation4 + $0x98] sm:$0xff] %vm1354, %v1610
  %1643 = vst.msk [vmem:[#allocation4 + $0xb0] sm:$0xff] %vm1354, %v1612
  %1644 = vst.msk [vmem:[#allocation4 + $0xc8] sm:$0xff] %vm1354, %v1614
  %1645 = vst.msk [vmem:[#allocation4 + $0xe0] sm:$0xff] %vm1354, %v1616
  %1646 = vst.msk [vmem:[#allocation4 + $0xf8] sm:$0xff] %vm1354, %v1618
  %1647 = vst.msk [vmem:[#allocation4 + $0x110] sm:$0xff] %vm1354, %v1620
  %1648 = vst.msk [vmem:[#allocation4 + $0x128] sm:$0x7] %vm1367, %v1622
  %v1649 = vld [vmem:[%s1240] ss:$2 sm:$0xff]
  %v1650 = vld [vmem:[%s1242] ss:$2 sm:$0xff]
  %v1651 = vld [vmem:[%s1244] ss:$2 sm:$0xff]
  %v1652 = vld [vmem:[%s1246] ss:$2 sm:$0xff]
  %v1653 = vld [vmem:[%s1248] ss:$2 sm:$0xff]
  %v1654 = vld [vmem:[%s1250] ss:$2 sm:$0xff]
  %v1655 = vld [vmem:[%s1252] ss:$2 sm:$0xff]
  %v1656 = vld [vmem:[%s1254] ss:$2 sm:$0xff]
  %v1657 = vld [vmem:[%s1256] ss:$2 sm:$0xff]
  %v1658 = vld [vmem:[%s1258] ss:$2 sm:$0xff]
  %v1659 = vld [vmem:[%s1260] ss:$2 sm:$0xff]
  %v1660 = vld [vmem:[%s1474] ss:$2 sm:$0xff]
  %s1661 = scalar_lea.vmem [#allocation3], 224
  %v1662 = vld [vmem:[%s1661] ss:$2 sm:$0x7]
  %1676 = vrot.lane.b32.xlu0 %v1649, 64
  %v1677 = vpop.permute.xlu0 %1676
  %1678 = vrot.lane.b32.xlu0 %v1650, 64
  %v1679 = vpop.permute.xlu0 %1678
  %1680 = vrot.lane.b32.xlu0 %v1651, 64
  %v1681 = vpop.permute.xlu0 %1680
  %1682 = vrot.lane.b32.xlu0 %v1652, 64
  %v1683 = vpop.permute.xlu0 %1682
  %1684 = vrot.lane.b32.xlu0 %v1653, 64
  %v1685 = vpop.permute.xlu0 %1684
  %1686 = vrot.lane.b32.xlu0 %v1654, 64
  %v1687 = vpop.permute.xlu0 %1686
  %1688 = vrot.lane.b32.xlu0 %v1655, 64
  %v1689 = vpop.permute.xlu0 %1688
  %1690 = vrot.lane.b32.xlu0 %v1656, 64
  %v1691 = vpop.permute.xlu0 %1690
  %1692 = vrot.lane.b32.xlu0 %v1657, 64
  %v1693 = vpop.permute.xlu0 %1692
  %1694 = vrot.lane.b32.xlu0 %v1658, 64
  %v1695 = vpop.permute.xlu0 %1694
  %1696 = vrot.lane.b32.xlu0 %v1659, 64
  %v1697 = vpop.permute.xlu0 %1696
  %1698 = vrot.lane.b32.xlu0 %v1660, 64
  %v1699 = vpop.permute.xlu0 %1698
  %1700 = vrot.lane.b32.xlu0 %v1662, 64
  %v1701 = vpop.permute.xlu0 %1700
  %1715 = vst.msk [vmem:[#allocation4 + $0x8] sm:$0xff] %vm1447, %v1677
  %1716 = vst.msk [vmem:[#allocation4 + $0x20] sm:$0xff] %vm1447, %v1679
  %1717 = vst.msk [vmem:[#allocation4 + $0x38] sm:$0xff] %vm1447, %v1681
  %1718 = vst.msk [vmem:[#allocation4 + $0x50] sm:$0xff] %vm1447, %v1683
  %1719 = vst.msk [vmem:[#allocation4 + $0x68] sm:$0xff] %vm1447, %v1685
  %1720 = vst.msk [vmem:[#allocation4 + $0x80] sm:$0xff] %vm1447, %v1687
  %1721 = vst.msk [vmem:[#allocation4 + $0x98] sm:$0xff] %vm1447, %v1689
  %1722 = vst.msk [vmem:[#allocation4 + $0xb0] sm:$0xff] %vm1447, %v1691
  %1723 = vst.msk [vmem:[#allocation4 + $0xc8] sm:$0xff] %vm1447, %v1693
  %1724 = vst.msk [vmem:[#allocation4 + $0xe0] sm:$0xff] %vm1447, %v1695
  %1725 = vst.msk [vmem:[#allocation4 + $0xf8] sm:$0xff] %vm1447, %v1697
  %1726 = vst.msk [vmem:[#allocation4 + $0x110] sm:$0xff] %vm1447, %v1699
  %1727 = vst.msk [vmem:[#allocation4 + $0x128] sm:$0x7] %vm1460, %v1701
  %v1728 = vld [vmem:[%s1280] ss:$2 sm:$0xff]
  %v1729 = vld [vmem:[%s1282] ss:$2 sm:$0xff]
  %v1730 = vld [vmem:[%s1284] ss:$2 sm:$0xff]
  %v1731 = vld [vmem:[%s1286] ss:$2 sm:$0xff]
  %v1732 = vld [vmem:[%s1288] ss:$2 sm:$0xff]
  %v1733 = vld [vmem:[%s1290] ss:$2 sm:$0xff]
  %v1734 = vld [vmem:[%s1292] ss:$2 sm:$0xff]
  %v1735 = vld [vmem:[%s1294] ss:$2 sm:$0xff]
  %v1736 = vld [vmem:[%s1296] ss:$2 sm:$0xff]
  %v1737 = vld [vmem:[%s1298] ss:$2 sm:$0xff]
  %v1738 = vld [vmem:[%s1300] ss:$2 sm:$0xff]
  %v1739 = vld [vmem:[%s1555] ss:$2 sm:$0xff]
  %s1740 = scalar_lea.vmem [#allocation3], 225
  %v1741 = vld [vmem:[%s1740] ss:$2 sm:$0x7]
  %1755 = vrot.lane.b32.xlu0 %v1728, 96
  %v1756 = vpop.permute.xlu0 %1755
  %1757 = vrot.lane.b32.xlu0 %v1729, 96
  %v1758 = vpop.permute.xlu0 %1757
  %1759 = vrot.lane.b32.xlu0 %v1730, 96
  %v1760 = vpop.permute.xlu0 %1759
  %1761 = vrot.lane.b32.xlu0 %v1731, 96
  %v1762 = vpop.permute.xlu0 %1761
  %1763 = vrot.lane.b32.xlu0 %v1732, 96
  %v1764 = vpop.permute.xlu0 %1763
  %1765 = vrot.lane.b32.xlu0 %v1733, 96
  %v1766 = vpop.permute.xlu0 %1765
  %1767 = vrot.lane.b32.xlu0 %v1734, 96
  %v1768 = vpop.permute.xlu0 %1767
  %1769 = vrot.lane.b32.xlu0 %v1735, 96
  %v1770 = vpop.permute.xlu0 %1769
  %1771 = vrot.lane.b32.xlu0 %v1736, 96
  %v1772 = vpop.permute.xlu0 %1771
  %1773 = vrot.lane.b32.xlu0 %v1737, 96
  %v1774 = vpop.permute.xlu0 %1773
  %1775 = vrot.lane.b32.xlu0 %v1738, 96
  %v1776 = vpop.permute.xlu0 %1775
  %1777 = vrot.lane.b32.xlu0 %v1739, 96
  %v1778 = vpop.permute.xlu0 %1777
  %1779 = vrot.lane.b32.xlu0 %v1741, 96
  %v1780 = vpop.permute.xlu0 %1779
  %1794 = vst.msk [vmem:[#allocation4 + $0x8] sm:$0xff] %vm1528, %v1756
  %1795 = vst.msk [vmem:[#allocation4 + $0x20] sm:$0xff] %vm1528, %v1758
  %1796 = vst.msk [vmem:[#allocation4 + $0x38] sm:$0xff] %vm1528, %v1760
  %1797 = vst.msk [vmem:[#allocation4 + $0x50] sm:$0xff] %vm1528, %v1762
  %1798 = vst.msk [vmem:[#allocation4 + $0x68] sm:$0xff] %vm1528, %v1764
  %1799 = vst.msk [vmem:[#allocation4 + $0x80] sm:$0xff] %vm1528, %v1766
  %1800 = vst.msk [vmem:[#allocation4 + $0x98] sm:$0xff] %vm1528, %v1768
  %1801 = vst.msk [vmem:[#allocation4 + $0xb0] sm:$0xff] %vm1528, %v1770
  %1802 = vst.msk [vmem:[#allocation4 + $0xc8] sm:$0xff] %vm1528, %v1772
  %1803 = vst.msk [vmem:[#allocation4 + $0xe0] sm:$0xff] %vm1528, %v1774
  %1804 = vst.msk [vmem:[#allocation4 + $0xf8] sm:$0xff] %vm1528, %v1776
  %1805 = vst.msk [vmem:[#allocation4 + $0x110] sm:$0xff] %vm1528, %v1778
  %1806 = vst.msk [vmem:[#allocation4 + $0x128] sm:$0x7] %vm1541, %v1780
  %v1807 = vld [vmem:[%s1373] ss:$2 sm:$0xff]
  %v1808 = vld [vmem:[%s1375] ss:$2 sm:$0xff]
  %v1809 = vld [vmem:[%s1377] ss:$2 sm:$0xff]
  %v1810 = vld [vmem:[%s1379] ss:$2 sm:$0xff]
  %v1811 = vld [vmem:[%s1381] ss:$2 sm:$0xff]
  %v1812 = vld [vmem:[%s1383] ss:$2 sm:$0xff]
  %v1813 = vld [vmem:[%s1385] ss:$2 sm:$0xff]
  %v1814 = vld [vmem:[%s1387] ss:$2 sm:$0xff]
  %v1815 = vld [vmem:[%s1389] ss:$2 sm:$0xff]
  %v1816 = vld [vmem:[%s1391] ss:$2 sm:$0xff]
  %v1817 = vld [vmem:[%s1393] ss:$2 sm:$0xff]
  %v1818 = vld [vmem:[%s1582] ss:$2 sm:$0xff]
  %s1819 = scalar_lea.vmem [#allocation3], 226
  %v1820 = vld [vmem:[%s1819] ss:$2 sm:$0x7]
  %1821 = vst.msk [vmem:[#allocation4 + $0x10] sm:$0xff] %vm1206, %v1807
  %1822 = vst.msk [vmem:[#allocation4 + $0x28] sm:$0xff] %vm1206, %v1808
  %1823 = vst.msk [vmem:[#allocation4 + $0x40] sm:$0xff] %vm1206, %v1809
  %1824 = vst.msk [vmem:[#allocation4 + $0x58] sm:$0xff] %vm1206, %v1810
  %1825 = vst.msk [vmem:[#allocation4 + $0x70] sm:$0xff] %vm1206, %v1811
  %1826 = vst.msk [vmem:[#allocation4 + $0x88] sm:$0xff] %vm1206, %v1812
  %1827 = vst.msk [vmem:[#allocation4 + $0xa0] sm:$0xff] %vm1206, %v1813
  %1828 = vst.msk [vmem:[#allocation4 + $0xb8] sm:$0xff] %vm1206, %v1814
  %1829 = vst.msk [vmem:[#allocation4 + $0xd0] sm:$0xff] %vm1206, %v1815
  %1830 = vst.msk [vmem:[#allocation4 + $0xe8] sm:$0xff] %vm1206, %v1816
  %1831 = vst.msk [vmem:[#allocation4 + $0x100] sm:$0xff] %vm1206, %v1817
  %1832 = vst.msk [vmem:[#allocation4 + $0x118] sm:$0xff] %vm1206, %v1818
  %1833 = vst.msk [vmem:[#allocation4 + $0x130] sm:$0x7] %vm1274, %v1820
  %v1834 = vld [vmem:[%s7 + $0x1] sm:$0x1]
  %v1835 = vld [vmem:[#allocation4] sm:$0xff]
  %v1836 = vld [vmem:[#allocation4 + $0x8] sm:$0xff]
  %v1837 = vld [vmem:[#allocation4 + $0x10] sm:$0xff]
  %v1838 = vld [vmem:[#allocation4 + $0x18] sm:$0xff]
  %v1839 = vld [vmem:[#allocation4 + $0x20] sm:$0xff]
  %v1840 = vld [vmem:[#allocation4 + $0x28] sm:$0xff]
  %v1841 = vld [vmem:[#allocation4 + $0x30] sm:$0xff]
  %v1842 = vld [vmem:[#allocation4 + $0x38] sm:$0xff]
  %v1843 = vld [vmem:[#allocation4 + $0x40] sm:$0xff]
  %v1844 = vld [vmem:[#allocation4 + $0x48] sm:$0xff]
  %v1845 = vld [vmem:[#allocation4 + $0x50] sm:$0xff]
  %v1846 = vld [vmem:[#allocation4 + $0x58] sm:$0xff]
  %v1847 = vld [vmem:[#allocation4 + $0x60] sm:$0xff]
  %v1848 = vld [vmem:[#allocation4 + $0x68] sm:$0xff]
  %v1849 = vld [vmem:[#allocation4 + $0x70] sm:$0xff]
  %v1850 = vld [vmem:[#allocation4 + $0x78] sm:$0xff]
  %v1851 = vld [vmem:[#allocation4 + $0x80] sm:$0xff]
  %v1852 = vld [vmem:[#allocation4 + $0x88] sm:$0xff]
  %v1853 = vld [vmem:[#allocation4 + $0x90] sm:$0xff]
  %v1854 = vld [vmem:[#allocation4 + $0x98] sm:$0xff]
  %v1855 = vld [vmem:[#allocation4 + $0xa0] sm:$0xff]
  %v1856 = vld [vmem:[#allocation4 + $0xa8] sm:$0xff]
  %v1857 = vld [vmem:[#allocation4 + $0xb0] sm:$0xff]
  %v1858 = vld [vmem:[#allocation4 + $0xb8] sm:$0xff]
  %v1859 = vld [vmem:[#allocation4 + $0xc0] sm:$0xff]
  %v1860 = vld [vmem:[#allocation4 + $0xc8] sm:$0xff]
  %v1861 = vld [vmem:[#allocation4 + $0xd0] sm:$0xff]
  %v1862 = vld [vmem:[#allocation4 + $0xd8] sm:$0xff]
  %v1863 = vld [vmem:[#allocation4 + $0xe0] sm:$0xff]
  %v1864 = vld [vmem:[#allocation4 + $0xe8] sm:$0xff]
  %v1865 = vld [vmem:[#allocation4 + $0xf0] sm:$0xff]
  %v1866 = vld [vmem:[#allocation4 + $0xf8] sm:$0xff]
  %v1867 = vld [vmem:[#allocation4 + $0x100] sm:$0xff]
  %v1868 = vld [vmem:[#allocation4 + $0x108] sm:$0xff]
  %v1869 = vld [vmem:[#allocation4 + $0x110] sm:$0xff]
  %v1870 = vld [vmem:[#allocation4 + $0x118] sm:$0xff]
  %v1871 = vld [vmem:[#allocation4 + $0x120] sm:$0x7]
  %v1872 = vld [vmem:[#allocation4 + $0x128] sm:$0x7]
  %v1873 = vld [vmem:[#allocation4 + $0x130] sm:$0x7]
  %v1874 = vpack.c.bf16 %v1838, %v1835
  %v1875 = vpack.c.bf16 %v1839, %v1836
  %v1876 = vpack.c.bf16 %v1840, %v1837
  %v1877 = vpack.c.bf16 %v1844, %v1841
  %v1878 = vpack.c.bf16 %v1845, %v1842
  %v1879 = vpack.c.bf16 %v1846, %v1843
  %v1880 = vpack.c.bf16 %v1850, %v1847
  %v1881 = vpack.c.bf16 %v1851, %v1848
  %v1882 = vpack.c.bf16 %v1852, %v1849
  %v1883 = vpack.c.bf16 %v1856, %v1853
  %v1884 = vpack.c.bf16 %v1857, %v1854
  %v1885 = vpack.c.bf16 %v1858, %v1855
  %v1886 = vpack.c.bf16 %v1862, %v1859
  %v1887 = vpack.c.bf16 %v1863, %v1860
  %v1888 = vpack.c.bf16 %v1864, %v1861
  %v1889 = vpack.c.bf16 %v1868, %v1865
  %v1890 = vpack.c.bf16 %v1869, %v1866
  %v1891 = vpack.c.bf16 %v1870, %v1867
  %v1892 = vpack.c.bf16 %v1871, %v1871
  %v1893 = vpack.c.bf16 %v1872, %v1872
  %v1894 = vpack.c.bf16 %v1873, %v1873
  %v1895 = vld [vmem:[%s3] sm:$0xf]
  %v1896 = vld [vmem:[%s3 + $0x4] sm:$0xf]
  %v1897 = vld [vmem:[%s3 + $0x8] sm:$0xf]
  %v1898 = vld [vmem:[%s3 + $0xc] sm:$0xf]
  %v1899 = vld [vmem:[%s3 + $0x10] sm:$0xf]
  %v1900 = vld [vmem:[%s3 + $0x14] sm:$0xf]
  %v1901 = vld [vmem:[%s3 + $0x18] sm:$0xf]
  %v1902 = vld [vmem:[%s3 + $0x1c] sm:$0xf]
  %v1903 = vld [vmem:[%s3 + $0x20] sm:$0xf]
  %v1904 = vld [vmem:[%s3 + $0x24] sm:$0xf]
  %v1905 = vld [vmem:[%s3 + $0x28] sm:$0xf]
  %v1906 = vld [vmem:[%s3 + $0x2c] sm:$0xf]
  %v1907 = vld [vmem:[%s3 + $0x30] sm:$0xf]
  %v1908 = vld [vmem:[%s3 + $0x34] sm:$0xf]
  %v1909 = vld [vmem:[%s3 + $0x38] sm:$0xf]
  %v1910 = vld [vmem:[%s3 + $0x3c] sm:$0xf]
  %v1911 = vld [vmem:[%s3 + $0x40] sm:$0xf]
  %v1912 = vld [vmem:[%s3 + $0x44] sm:$0xf]
  %v1913 = vld [vmem:[%s3 + $0x48] sm:$0xf]
  %v1914 = vld [vmem:[%s3 + $0x4c] sm:$0xf]
  %v1915 = vld [vmem:[%s3 + $0x50] sm:$0xf]
  %v1916 = vld [vmem:[%s3 + $0x54] sm:$0xf]
  %v1917 = vld [vmem:[%s3 + $0x58] sm:$0xf]
  %v1918 = vld [vmem:[%s3 + $0x5c] sm:$0xf]
  %v1919 = vld [vmem:[%s3 + $0x60] sm:$0xf]
  %v1920 = vld [vmem:[%s3 + $0x64] sm:$0xf]
  %v1921 = vld [vmem:[%s3 + $0x68] sm:$0xf]
  %v1922 = vld [vmem:[%s3 + $0x6c] sm:$0xf]
  %v1923 = vld [vmem:[%s3 + $0x70] sm:$0xf]
  %v1924 = vld [vmem:[%s3 + $0x74] sm:$0xf]
  %v1925 = vld [vmem:[%s3 + $0x78] sm:$0xf]
  %v1926 = vld [vmem:[%s3 + $0x7c] sm:$0xf]
  %v1927 = vld [vmem:[%s3 + $0x80] sm:$0xf]
  %v1928 = vld [vmem:[%s3 + $0x84] sm:$0xf]
  %v1929 = vld [vmem:[%s3 + $0x88] sm:$0xf]
  %v1930 = vld [vmem:[%s3 + $0x8c] sm:$0xf]
  %v1932 = vperm.slane %v1834, 0
  %v1970 = vunpack.c.l.b16 %v1895
  %v1971 = vunpack.c.l.b16 %v1896
  %v1972 = vunpack.c.l.b16 %v1897
  %v1973 = vunpack.c.l.b16 %v1898
  %v1974 = vunpack.c.l.b16 %v1899
  %v1975 = vunpack.c.l.b16 %v1900
  %v1976 = vunpack.c.l.b16 %v1901
  %v1977 = vunpack.c.l.b16 %v1902
  %v1978 = vunpack.c.l.b16 %v1903
  %v1979 = vunpack.c.l.b16 %v1904
  %v1980 = vunpack.c.l.b16 %v1905
  %v1981 = vunpack.c.l.b16 %v1906
  %v1982 = vunpack.c.l.b16 %v1907
  %v1983 = vunpack.c.l.b16 %v1908
  %v1984 = vunpack.c.l.b16 %v1909
  %v1985 = vunpack.c.l.b16 %v1910
  %v1986 = vunpack.c.l.b16 %v1911
  %v1987 = vunpack.c.l.b16 %v1912
  %v1988 = vunpack.c.l.b16 %v1913
  %v1989 = vunpack.c.l.b16 %v1914
  %v1990 = vunpack.c.l.b16 %v1915
  %v1991 = vunpack.c.l.b16 %v1916
  %v1992 = vunpack.c.l.b16 %v1917
  %v1993 = vunpack.c.l.b16 %v1918
  %v1994 = vunpack.c.l.b16 %v1919
  %v1995 = vunpack.c.l.b16 %v1920
  %v1996 = vunpack.c.l.b16 %v1921
  %v1997 = vunpack.c.l.b16 %v1922
  %v1998 = vunpack.c.l.b16 %v1923
  %v1999 = vunpack.c.l.b16 %v1924
  %v2000 = vunpack.c.l.b16 %v1925
  %v2001 = vunpack.c.l.b16 %v1926
  %v2002 = vunpack.c.l.b16 %v1927
  %v2003 = vunpack.c.l.b16 %v1928
  %v2004 = vunpack.c.l.b16 %v1929
  %v2005 = vunpack.c.l.b16 %v1930
  %v2006 = vpack.c.b16 %v1971, %v1970
  %v2007 = vpack.c.b16 %v1973, %v1972
  %v2008 = vpack.c.b16 %v1975, %v1974
  %v2009 = vpack.c.b16 %v1977, %v1976
  %v2010 = vpack.c.b16 %v1979, %v1978
  %v2011 = vpack.c.b16 %v1981, %v1980
  %v2012 = vpack.c.b16 %v1983, %v1982
  %v2013 = vpack.c.b16 %v1985, %v1984
  %v2014 = vpack.c.b16 %v1987, %v1986
  %v2015 = vpack.c.b16 %v1989, %v1988
  %v2016 = vpack.c.b16 %v1991, %v1990
  %v2017 = vpack.c.b16 %v1993, %v1992
  %v2018 = vpack.c.b16 %v1995, %v1994
  %v2019 = vpack.c.b16 %v1997, %v1996
  %v2020 = vpack.c.b16 %v1999, %v1998
  %v2021 = vpack.c.b16 %v2001, %v2000
  %v2022 = vpack.c.b16 %v2003, %v2002
  %v2023 = vpack.c.b16 %v2005, %v2004
  %v2043 = vsel %vm1206, %v1876, 0
  %v2046 = vsel %vm1206, %v1879, 0
  %v2049 = vsel %vm1206, %v1882, 0
  %v2052 = vsel %vm1206, %v1885, 0
  %v2055 = vsel %vm1206, %v1888, 0
  %v2058 = vsel %vm1206, %v1891, 0
  %v2061 = vsel %vm1206, %v1894, 0
  %2063 = vmatpush.bf16.msra.mxu0 %v2013
  %2064 = vmatpush.bf16.msra.mxu0 %v2012
  %2065 = vmatpush.bf16.msra.mxu0 %v2011
  %2066 = vmatpush.bf16.msra.mxu0 %v2010
  %2067 = vmatpush.bf16.msra.mxu0 %v2009
  %2068 = vmatpush.bf16.msra.mxu0 %v2008
  %2069 = vmatpush.bf16.msra.mxu0 %v2007
  %2070 = vmatpush.bf16.msra.mxu0 %v2006
  %2071 = vmatmul.bf16.gmra.mxu0 %v1874
  %v2072 = vpop.f32.mrf.mxu0
  %v2073 = vadd.f32 %v1932, %v2072
  %v2074 = vpop.f32.mrf.mxu0
  %v2075 = vadd.f32 %v1932, %v2074
  %2076 = vmatmul.bf16.gmra.mxu0 %v1877
  %v2077 = vpop.f32.mrf.mxu0
  %v2078 = vadd.f32 %v1932, %v2077
  %v2079 = vpop.f32.mrf.mxu0
  %v2080 = vadd.f32 %v1932, %v2079
  %2081 = vmatmul.bf16.gmra.mxu0 %v1880
  %v2082 = vpop.f32.mrf.mxu0
  %v2083 = vadd.f32 %v1932, %v2082
  %v2084 = vpop.f32.mrf.mxu0
  %v2085 = vadd.f32 %v1932, %v2084
  %2086 = vmatmul.bf16.gmra.mxu0 %v1883
  %v2087 = vpop.f32.mrf.mxu0
  %v2088 = vadd.f32 %v1932, %v2087
  %v2089 = vpop.f32.mrf.mxu0
  %v2090 = vadd.f32 %v1932, %v2089
  %2091 = vmatmul.bf16.gmra.mxu0 %v1886
  %v2092 = vpop.f32.mrf.mxu0
  %v2093 = vadd.f32 %v1932, %v2092
  %v2094 = vpop.f32.mrf.mxu0
  %v2095 = vadd.f32 %v1932, %v2094
  %2096 = vmatmul.bf16.gmra.mxu0 %v1889
  %v2097 = vpop.f32.mrf.mxu0
  %v2098 = vadd.f32 %v1932, %v2097
  %v2099 = vpop.f32.mrf.mxu0
  %v2100 = vadd.f32 %v1932, %v2099
  %2101 = vmatmul.bf16.gmra.mxu0 %v1892
  %v2102 = vpop.f32.mrf.mxu0
  %v2103 = vadd.f32 %v1932, %v2102
  %v2104 = vpop.f32.mrf.mxu0
  %2105 = vdwg.mxu0
  %2106 = vmatpush.bf16.msra.mxu0 %v2021
  %2107 = vmatpush.bf16.msra.mxu0 %v2020
  %2108 = vmatpush.bf16.msra.mxu0 %v2019
  %2109 = vmatpush.bf16.msra.mxu0 %v2018
  %2110 = vmatpush.bf16.msra.mxu0 %v2017
  %2111 = vmatpush.bf16.msra.mxu0 %v2016
  %2112 = vmatpush.bf16.msra.mxu0 %v2015
  %2113 = vmatpush.bf16.msra.mxu0 %v2014
  %2114 = vmatmul.bf16.gmra.mxu0 %v1875
  %v2115 = vpop.f32.mrf.mxu0
  %v2116 = vadd.f32 %v2073, %v2115
  %v2117 = vpop.f32.mrf.mxu0
  %v2118 = vadd.f32 %v2075, %v2117
  %2119 = vmatmul.bf16.gmra.mxu0 %v1878
  %v2120 = vpop.f32.mrf.mxu0
  %v2121 = vadd.f32 %v2078, %v2120
  %v2122 = vpop.f32.mrf.mxu0
  %v2123 = vadd.f32 %v2080, %v2122
  %2124 = vmatmul.bf16.gmra.mxu0 %v1881
  %v2125 = vpop.f32.mrf.mxu0
  %v2126 = vadd.f32 %v2083, %v2125
  %v2127 = vpop.f32.mrf.mxu0
  %v2128 = vadd.f32 %v2085, %v2127
  %2129 = vmatmul.bf16.gmra.mxu0 %v1884
  %v2130 = vpop.f32.mrf.mxu0
  %v2131 = vadd.f32 %v2088, %v2130
  %v2132 = vpop.f32.mrf.mxu0
  %v2133 = vadd.f32 %v2090, %v2132
  %2134 = vmatmul.bf16.gmra.mxu0 %v1887
  %v2135 = vpop.f32.mrf.mxu0
  %v2136 = vadd.f32 %v2093, %v2135
  %v2137 = vpop.f32.mrf.mxu0
  %v2138 = vadd.f32 %v2095, %v2137
  %2139 = vmatmul.bf16.gmra.mxu0 %v1890
  %v2140 = vpop.f32.mrf.mxu0
  %v2141 = vadd.f32 %v2098, %v2140
  %v2142 = vpop.f32.mrf.mxu0
  %v2143 = vadd.f32 %v2100, %v2142
  %2144 = vmatmul.bf16.gmra.mxu0 %v1893
  %v2145 = vpop.f32.mrf.mxu0
  %v2146 = vadd.f32 %v2103, %v2145
  %v2147 = vpop.f32.mrf.mxu0
  %2148 = vdwg.mxu0
  %2149 = vmatpush.bf16.msra.mxu0 0
  %2150 = vmatpush.bf16.msra.mxu0 0
  %2151 = vmatpush.bf16.msra.mxu0 0
  %2152 = vmatpush.bf16.msra.mxu0 0
  %2153 = vmatpush.bf16.msra.mxu0 0
  %2154 = vmatpush.bf16.msra.mxu0 0
  %2155 = vmatpush.bf16.msra.mxu0 %v2023
  %2156 = vmatpush.bf16.msra.mxu0 %v2022
  %2157 = vmatmul.bf16.gmra.mxu0 %v2043
  %v2158 = vpop.f32.mrf.mxu0
  %v2159 = vadd.f32 %v2116, %v2158
  %v2160 = vpop.f32.mrf.mxu0
  %v2161 = vadd.f32 %v2118, %v2160
  %2162 = vmatmul.bf16.gmra.mxu0 %v2046
  %v2163 = vpop.f32.mrf.mxu0
  %v2164 = vadd.f32 %v2121, %v2163
  %v2165 = vpop.f32.mrf.mxu0
  %v2166 = vadd.f32 %v2123, %v2165
  %2167 = vmatmul.bf16.gmra.mxu0 %v2049
  %v2168 = vpop.f32.mrf.mxu0
  %v2169 = vadd.f32 %v2126, %v2168
  %v2170 = vpop.f32.mrf.mxu0
  %v2171 = vadd.f32 %v2128, %v2170
  %2172 = vmatmul.bf16.gmra.mxu0 %v2052
  %v2173 = vpop.f32.mrf.mxu0
  %v2174 = vadd.f32 %v2131, %v2173
  %v2175 = vpop.f32.mrf.mxu0
  %v2176 = vadd.f32 %v2133, %v2175
  %2177 = vmatmul.bf16.gmra.mxu0 %v2055
  %v2178 = vpop.f32.mrf.mxu0
  %v2179 = vadd.f32 %v2136, %v2178
  %v2180 = vpop.f32.mrf.mxu0
  %v2181 = vadd.f32 %v2138, %v2180
  %2182 = vmatmul.bf16.gmra.mxu0 %v2058
  %v2183 = vpop.f32.mrf.mxu0
  %v2184 = vadd.f32 %v2141, %v2183
  %v2185 = vpop.f32.mrf.mxu0
  %v2186 = vadd.f32 %v2143, %v2185
  %2187 = vmatmul.bf16.gmra.mxu0 %v2061
  %v2188 = vpop.f32.mrf.mxu0
  %v2189 = vadd.f32 %v2146, %v2188
  %v2190 = vpop.f32.mrf.mxu0
  %2191 = vdwg.mxu0
  %v2192 = vmax.f32 %v2159, 0.0
  %v2193 = vmax.f32 %v2161, 0.0
  %v2194 = vmax.f32 %v2164, 0.0
  %v2195 = vmax.f32 %v2166, 0.0
  %v2196 = vmax.f32 %v2169, 0.0
  %v2197 = vmax.f32 %v2171, 0.0
  %v2198 = vmax.f32 %v2174, 0.0
  %v2199 = vmax.f32 %v2176, 0.0
  %v2200 = vmax.f32 %v2179, 0.0
  %v2201 = vmax.f32 %v2181, 0.0
  %v2202 = vmax.f32 %v2184, 0.0
  %v2203 = vmax.f32 %v2186, 0.0
  %v2204 = vmax.f32 %v2189, 0.0
  %vm2205 = vcmask 523264
  %2206 = vst.msk [vmem:[#allocation5] sm:$0xff] %vm2205, %v2192
  %2207 = vst.msk [vmem:[#allocation5 + $0x8] sm:$0xff] %vm2205, %v2193
  %2208 = vst.msk [vmem:[#allocation5 + $0x10] sm:$0xff] %vm2205, %v2194
  %2209 = vst.msk [vmem:[#allocation5 + $0x18] sm:$0xff] %vm2205, %v2195
  %2210 = vst.msk [vmem:[#allocation5 + $0x20] sm:$0xff] %vm2205, %v2196
  %2211 = vst.msk [vmem:[#allocation5 + $0x28] sm:$0xff] %vm2205, %v2197
  %2212 = vst.msk [vmem:[#allocation5 + $0x30] sm:$0xff] %vm2205, %v2198
  %2213 = vst.msk [vmem:[#allocation5 + $0x38] sm:$0xff] %vm2205, %v2199
  %2214 = vst.msk [vmem:[#allocation5 + $0x40] sm:$0xff] %vm2205, %v2200
  %2215 = vst.msk [vmem:[#allocation5 + $0x48] sm:$0xff] %vm2205, %v2201
  %2216 = vst.msk [vmem:[#allocation5 + $0x50] sm:$0xff] %vm2205, %v2202
  %2217 = vst.msk [vmem:[#allocation5 + $0x58] sm:$0xff] %vm2205, %v2203
  %vm2218 = vcmask 518144
  %2219 = vst.msk [vmem:[#allocation5 + $0x60] sm:$0x7] %vm2218, %v2204
  %v2220 = vld [vmem:[#allocation5] ss:$64 sm:$0x1]
  %v2221 = vld [vmem:[#allocation5] ss:$64 sm:$0x2]
  %v2222 = vor.u32 %v2220, %v2221
  %vm2223 = vcmask 517120
  %2224 = vst.msk [vmem:[#allocation6] sm:$0x3] %vm2223, %v2222
  %s2225 = scalar_lea.vmem [#allocation5], 1
  %v2226 = vld [vmem:[%s2225] ss:$64 sm:$0x1]
  %v2227 = vld [vmem:[%s2225] ss:$64 sm:$0x2]
  %v2228 = vor.u32 %v2226, %v2227
  %2230 = vrot.lane.b32.xlu0 %v2228, 64
  %v2231 = vpop.permute.xlu0 %2230
  %vm2233 = vcmask 1041920
  %2234 = vst.msk [vmem:[#allocation6] sm:$0x3] %vm2233, %v2231
  %s2235 = scalar_lea.vmem [#allocation5], 2
  %v2236 = vld [vmem:[%s2235] ss:$64 sm:$0x1]
  %v2237 = vld [vmem:[%s2235] ss:$64 sm:$0x2]
  %v2238 = vor.u32 %v2236, %v2237
  %2239 = vst.msk [vmem:[#allocation6 + $0x2] sm:$0x3] %vm2223, %v2238
  %s2240 = scalar_lea.vmem [#allocation5], 16
  %v2241 = vld [vmem:[%s2240] ss:$64 sm:$0x1]
  %v2242 = vld [vmem:[%s2240] ss:$64 sm:$0x2]
  %v2243 = vor.u32 %v2241, %v2242
  %2245 = vrot.lane.b32.xlu0 %v2243, 64
  %v2246 = vpop.permute.xlu0 %2245
  %2248 = vst.msk [vmem:[#allocation6 + $0x2] sm:$0x3] %vm2233, %v2246
  %s2249 = scalar_lea.vmem [#allocation5], 17
  %v2250 = vld [vmem:[%s2249] ss:$64 sm:$0x1]
  %v2251 = vld [vmem:[%s2249] ss:$64 sm:$0x2]
  %v2252 = vor.u32 %v2250, %v2251
  %2253 = vst.msk [vmem:[#allocation6 + $0x4] sm:$0x3] %vm2223, %v2252
  %s2254 = scalar_lea.vmem [#allocation5], 18
  %v2255 = vld [vmem:[%s2254] ss:$64 sm:$0x1]
  %v2256 = vld [vmem:[%s2254] ss:$64 sm:$0x2]
  %v2257 = vor.u32 %v2255, %v2256
  %2259 = vrot.lane.b32.xlu0 %v2257, 64
  %v2260 = vpop.permute.xlu0 %2259
  %2262 = vst.msk [vmem:[#allocation6 + $0x4] sm:$0x3] %vm2233, %v2260
  %s2263 = scalar_lea.vmem [#allocation5], 32
  %v2264 = vld [vmem:[%s2263] ss:$64 sm:$0x1]
  %v2265 = vld [vmem:[%s2263] ss:$64 sm:$0x2]
  %v2266 = vor.u32 %v2264, %v2265
  %2267 = vst.msk [vmem:[#allocation6 + $0x6] sm:$0x3] %vm2223, %v2266
  %s2268 = scalar_lea.vmem [#allocation5], 33
  %v2269 = vld [vmem:[%s2268] ss:$64 sm:$0x1]
  %v2270 = vld [vmem:[%s2268] ss:$64 sm:$0x2]
  %v2271 = vor.u32 %v2269, %v2270
  %2273 = vrot.lane.b32.xlu0 %v2271, 64
  %v2274 = vpop.permute.xlu0 %2273
  %2276 = vst.msk [vmem:[#allocation6 + $0x6] sm:$0x3] %vm2233, %v2274
  %s2277 = scalar_lea.vmem [#allocation5], 34
  %v2278 = vld [vmem:[%s2277] ss:$64 sm:$0x1]
  %v2279 = vld [vmem:[%s2277] ss:$64 sm:$0x2]
  %v2280 = vor.u32 %v2278, %v2279
  %2281 = vst.msk [vmem:[#allocation6 + $0x8] sm:$0x3] %vm2223, %v2280
  %s2282 = sld [smem:[#allocation9]]
  %s2283 = scalar_lea.vmem %s6, %s2282
  %v2284 = vld [vmem:[%s2283] sm:$0x1]
  %2285 = vst [vmem:[#allocation7] sm:$0x1] %v2284
  %s2286 = sld [smem:[#allocation9 + $0x1]]
  %s2287 = scalar_lea.vmem %s6, %s2286
  %v2288 = vld [vmem:[%s2287] sm:$0x1]
  %2289 = vst [vmem:[#allocation7 + $0x1] sm:$0x1] %v2288
  %v2290 = vld [vmem:[#allocation7] sm:$0x3]
  %v2291 = vld [vmem:[%s7 + $0x2] sm:$0x1]
  %v2293 = vperm.slane %v2291, 0
  %v2295 = vadd.f32 %v2290, %v2293
  %v2296 = vld [vmem:[#allocation6] sm:$0xff]
  %v2297 = vld [vmem:[#allocation6 + $0x8] sm:$0x3]
  %2300 = vst [vmem:[#allocation1] ss:$4 sm:$0xff] %v2296
  %s2301 = scalar_lea.vmem [#allocation1], 32
  %2302 = vst [vmem:[%s2301] ss:$4 sm:$0xff] %v2297
  %v2303 = vld.sshfl [vmem:[#allocation1] sm:$0xff pattern:$0x73625140]
  %v2304 = vld.sshfl [vmem:[#allocation1 + $0x8] sm:$0xff pattern:$0x73625140]
  %v2305 = vld.sshfl [vmem:[#allocation1 + $0x10] sm:$0xff pattern:$0x73625140]
  %v2306 = vld.sshfl [vmem:[#allocation1 + $0x18] sm:$0xff pattern:$0x73625140]
  %v2307 = vld.sshfl [vmem:[#allocation1 + $0x20] sm:$0xff pattern:$0x73625140]
  %v2313 = vpack.c.bf16 %v2303, %v2303
  %v2314 = vpack.c.bf16 %v2304, %v2304
  %v2315 = vpack.c.bf16 %v2305, %v2305
  %v2316 = vpack.c.bf16 %v2306, %v2306
  %v2317 = vpack.c.bf16 %v2307, %v2307
  %v2318 = vld [vmem:[%s4] sm:$0xf]
  %v2319 = vld [vmem:[%s4 + $0x4] sm:$0xf]
  %v2320 = vld [vmem:[%s4 + $0x8] sm:$0xf]
  %v2321 = vld [vmem:[%s4 + $0xc] sm:$0xf]
  %v2322 = vld [vmem:[%s4 + $0x10] sm:$0xf]
  %v2323 = vld [vmem:[%s4 + $0x14] sm:$0xf]
  %v2324 = vld [vmem:[%s4 + $0x18] sm:$0xf]
  %v2325 = vld [vmem:[%s4 + $0x1c] sm:$0xf]
  %v2326 = vld [vmem:[%s4 + $0x20] sm:$0xf]
  %v2327 = vld [vmem:[%s4 + $0x24] sm:$0xf]
  %v2328 = vld [vmem:[%s4 + $0x28] sm:$0xf]
  %v2329 = vld [vmem:[%s4 + $0x2c] sm:$0xf]
  %v2330 = vld [vmem:[%s4 + $0x30] sm:$0xf]
  %v2331 = vld [vmem:[%s4 + $0x34] sm:$0xf]
  %v2332 = vld [vmem:[%s4 + $0x38] sm:$0xf]
  %v2333 = vld [vmem:[%s4 + $0x3c] sm:$0xf]
  %v2334 = vld [vmem:[%s4 + $0x40] sm:$0xf]
  %v2335 = vld [vmem:[%s4 + $0x44] sm:$0xf]
  %v2336 = vld [vmem:[%s4 + $0x48] sm:$0xf]
  %v2337 = vld [vmem:[%s4 + $0x4c] sm:$0xf]
  %v2338 = vld [vmem:[%s4 + $0x50] sm:$0xf]
  %v2339 = vld [vmem:[%s4 + $0x54] sm:$0xf]
  %v2340 = vld [vmem:[%s4 + $0x58] sm:$0xf]
  %v2341 = vld [vmem:[%s4 + $0x5c] sm:$0xf]
  %v2342 = vld [vmem:[%s4 + $0x60] sm:$0xf]
  %v2343 = vld [vmem:[%s4 + $0x64] sm:$0xf]
  %v2344 = vld [vmem:[%s4 + $0x68] sm:$0xf]
  %v2345 = vld [vmem:[%s4 + $0x6c] sm:$0xf]
  %v2346 = vld [vmem:[%s4 + $0x70] sm:$0xf]
  %v2347 = vld [vmem:[%s4 + $0x74] sm:$0xf]
  %v2348 = vld [vmem:[%s4 + $0x78] sm:$0xf]
  %v2349 = vld [vmem:[%s4 + $0x7c] sm:$0xf]
  %v2350 = vld [vmem:[%s4 + $0x80] sm:$0xf]
  %v2351 = vld [vmem:[%s4 + $0x84] sm:$0xf]
  %v2352 = vld [vmem:[%s4 + $0x88] sm:$0xf]
  %v2353 = vld [vmem:[%s4 + $0x8c] sm:$0xf]
  %v2354 = vld [vmem:[%s4 + $0x90] sm:$0xf]
  %v2355 = vld [vmem:[%s4 + $0x94] sm:$0xf]
  %v2356 = vld [vmem:[%s4 + $0x98] sm:$0xf]
  %v2357 = vld [vmem:[%s4 + $0x9c] sm:$0xf]
  %v2358 = vld [vmem:[%s4 + $0xa0] sm:$0xf]
  %v2359 = vld [vmem:[%s4 + $0xa4] sm:$0xf]
  %v2360 = vld [vmem:[%s4 + $0xa8] sm:$0xf]
  %v2361 = vld [vmem:[%s4 + $0xac] sm:$0xf]
  %v2362 = vld [vmem:[%s4 + $0xb0] sm:$0xf]
  %v2363 = vld [vmem:[%s4 + $0xb4] sm:$0xf]
  %v2364 = vld [vmem:[%s4 + $0xb8] sm:$0xf]
  %v2365 = vld [vmem:[%s4 + $0xbc] sm:$0xf]
  %v2366 = vld [vmem:[%s4 + $0xc0] sm:$0xf]
  %v2367 = vld [vmem:[%s4 + $0xc4] sm:$0xf]
  %v2368 = vld [vmem:[%s4 + $0xc8] sm:$0xf]
  %v2369 = vld [vmem:[%s4 + $0xcc] sm:$0xf]
  %v2370 = vld [vmem:[%s4 + $0xd0] sm:$0xf]
  %v2371 = vld [vmem:[%s4 + $0xd4] sm:$0xf]
  %v2372 = vld [vmem:[%s4 + $0xd8] sm:$0xf]
  %v2373 = vld [vmem:[%s4 + $0xdc] sm:$0xf]
  %v2374 = vld [vmem:[%s4 + $0xe0] sm:$0xf]
  %v2375 = vld [vmem:[%s4 + $0xe4] sm:$0xf]
  %v2376 = vld [vmem:[%s4 + $0xe8] sm:$0xf]
  %v2377 = vld [vmem:[%s4 + $0xec] sm:$0xf]
  %v2378 = vld [vmem:[%s4 + $0xf0] sm:$0xf]
  %v2379 = vld [vmem:[%s4 + $0xf4] sm:$0xf]
  %v2380 = vld [vmem:[%s4 + $0xf8] sm:$0xf]
  %v2381 = vld [vmem:[%s4 + $0xfc] sm:$0xf]
  %v2382 = vld [vmem:[%s4 + $0x100] sm:$0xf]
  %v2383 = vld [vmem:[%s4 + $0x104] sm:$0xf]
  %v2384 = vld [vmem:[%s4 + $0x108] sm:$0xf]
  %v2385 = vld [vmem:[%s4 + $0x10c] sm:$0xf]
  %v2386 = vld [vmem:[%s4 + $0x110] sm:$0xf]
  %v2387 = vld [vmem:[%s4 + $0x114] sm:$0xf]
  %v2388 = vld [vmem:[%s4 + $0x118] sm:$0xf]
  %v2389 = vld [vmem:[%s4 + $0x11c] sm:$0xf]
  %v2462 = vunpack.c.l.b16 %v2318
  %v2463 = vunpack.c.l.b16 %v2319
  %v2464 = vunpack.c.l.b16 %v2320
  %v2465 = vunpack.c.l.b16 %v2321
  %v2466 = vunpack.c.l.b16 %v2322
  %v2467 = vunpack.c.l.b16 %v2323
  %v2468 = vunpack.c.l.b16 %v2324
  %v2469 = vunpack.c.l.b16 %v2325
  %v2470 = vunpack.c.l.b16 %v2326
  %v2471 = vunpack.c.l.b16 %v2327
  %v2472 = vunpack.c.l.b16 %v2328
  %v2473 = vunpack.c.l.b16 %v2329
  %v2474 = vunpack.c.l.b16 %v2330
  %v2475 = vunpack.c.l.b16 %v2331
  %v2476 = vunpack.c.l.b16 %v2332
  %v2477 = vunpack.c.l.b16 %v2333
  %v2478 = vunpack.c.l.b16 %v2334
  %v2479 = vunpack.c.l.b16 %v2335
  %v2480 = vunpack.c.l.b16 %v2336
  %v2481 = vunpack.c.l.b16 %v2337
  %v2482 = vunpack.c.l.b16 %v2338
  %v2483 = vunpack.c.l.b16 %v2339
  %v2484 = vunpack.c.l.b16 %v2340
  %v2485 = vunpack.c.l.b16 %v2341
  %v2486 = vunpack.c.l.b16 %v2342
  %v2487 = vunpack.c.l.b16 %v2343
  %v2488 = vunpack.c.l.b16 %v2344
  %v2489 = vunpack.c.l.b16 %v2345
  %v2490 = vunpack.c.l.b16 %v2346
  %v2491 = vunpack.c.l.b16 %v2347
  %v2492 = vunpack.c.l.b16 %v2348
  %v2493 = vunpack.c.l.b16 %v2349
  %v2494 = vunpack.c.l.b16 %v2350
  %v2495 = vunpack.c.l.b16 %v2351
  %v2496 = vunpack.c.l.b16 %v2352
  %v2497 = vunpack.c.l.b16 %v2353
  %v2498 = vunpack.c.l.b16 %v2354
  %v2499 = vunpack.c.l.b16 %v2355
  %v2500 = vunpack.c.l.b16 %v2356
  %v2501 = vunpack.c.l.b16 %v2357
  %v2502 = vunpack.c.l.b16 %v2358
  %v2503 = vunpack.c.l.b16 %v2359
  %v2504 = vunpack.c.l.b16 %v2360
  %v2505 = vunpack.c.l.b16 %v2361
  %v2506 = vunpack.c.l.b16 %v2362
  %v2507 = vunpack.c.l.b16 %v2363
  %v2508 = vunpack.c.l.b16 %v2364
  %v2509 = vunpack.c.l.b16 %v2365
  %v2510 = vunpack.c.l.b16 %v2366
  %v2511 = vunpack.c.l.b16 %v2367
  %v2512 = vunpack.c.l.b16 %v2368
  %v2513 = vunpack.c.l.b16 %v2369
  %v2514 = vunpack.c.l.b16 %v2370
  %v2515 = vunpack.c.l.b16 %v2371
  %v2516 = vunpack.c.l.b16 %v2372
  %v2517 = vunpack.c.l.b16 %v2373
  %v2518 = vunpack.c.l.b16 %v2374
  %v2519 = vunpack.c.l.b16 %v2375
  %v2520 = vunpack.c.l.b16 %v2376
  %v2521 = vunpack.c.l.b16 %v2377
  %v2522 = vunpack.c.l.b16 %v2378
  %v2523 = vunpack.c.l.b16 %v2379
  %v2524 = vunpack.c.l.b16 %v2380
  %v2525 = vunpack.c.l.b16 %v2381
  %v2526 = vunpack.c.l.b16 %v2382
  %v2527 = vunpack.c.l.b16 %v2383
  %v2528 = vunpack.c.l.b16 %v2384
  %v2529 = vunpack.c.l.b16 %v2385
  %v2530 = vunpack.c.l.b16 %v2386
  %v2531 = vunpack.c.l.b16 %v2387
  %v2532 = vunpack.c.l.b16 %v2388
  %v2533 = vunpack.c.l.b16 %v2389
  %v2534 = vpack.c.b16 %v2463, %v2462
  %v2535 = vpack.c.b16 %v2465, %v2464
  %v2536 = vpack.c.b16 %v2467, %v2466
  %v2537 = vpack.c.b16 %v2469, %v2468
  %v2538 = vpack.c.b16 %v2471, %v2470
  %v2539 = vpack.c.b16 %v2473, %v2472
  %v2540 = vpack.c.b16 %v2475, %v2474
  %v2541 = vpack.c.b16 %v2477, %v2476
  %v2542 = vpack.c.b16 %v2479, %v2478
  %v2543 = vpack.c.b16 %v2481, %v2480
  %v2544 = vpack.c.b16 %v2483, %v2482
  %v2545 = vpack.c.b16 %v2485, %v2484
  %v2546 = vpack.c.b16 %v2487, %v2486
  %v2547 = vpack.c.b16 %v2489, %v2488
  %v2548 = vpack.c.b16 %v2491, %v2490
  %v2549 = vpack.c.b16 %v2493, %v2492
  %v2550 = vpack.c.b16 %v2495, %v2494
  %v2551 = vpack.c.b16 %v2497, %v2496
  %v2552 = vpack.c.b16 %v2499, %v2498
  %v2553 = vpack.c.b16 %v2501, %v2500
  %v2554 = vpack.c.b16 %v2503, %v2502
  %v2555 = vpack.c.b16 %v2505, %v2504
  %v2556 = vpack.c.b16 %v2507, %v2506
  %v2557 = vpack.c.b16 %v2509, %v2508
  %v2558 = vpack.c.b16 %v2511, %v2510
  %v2559 = vpack.c.b16 %v2513, %v2512
  %v2560 = vpack.c.b16 %v2515, %v2514
  %v2561 = vpack.c.b16 %v2517, %v2516
  %v2562 = vpack.c.b16 %v2519, %v2518
  %v2563 = vpack.c.b16 %v2521, %v2520
  %v2564 = vpack.c.b16 %v2523, %v2522
  %v2565 = vpack.c.b16 %v2525, %v2524
  %v2566 = vpack.c.b16 %v2527, %v2526
  %v2567 = vpack.c.b16 %v2529, %v2528
  %v2568 = vpack.c.b16 %v2531, %v2530
  %v2569 = vpack.c.b16 %v2533, %v2532
  %v2607 = vsel %vm2205, %v2317, 0
  %2609 = vmatpush.bf16.msra.mxu0 %v2541
  %2610 = vmatpush.bf16.msra.mxu0 %v2540
  %2611 = vmatpush.bf16.msra.mxu0 %v2539
  %2612 = vmatpush.bf16.msra.mxu0 %v2538
  %2613 = vmatpush.bf16.msra.mxu0 %v2537
  %2614 = vmatpush.bf16.msra.mxu0 %v2536
  %2615 = vmatpush.bf16.msra.mxu0 %v2535
  %2616 = vmatpush.bf16.msra.mxu0 %v2534
  %2617 = vmatmul.bf16.gmra.mxu0 %v2313
  %v2618 = vpop.f32.mrf.mxu0
  %v2619 = vadd.f32 0.0, %v2618
  %v2620 = vpop.f32.mrf.mxu0
  %2621 = vdwg.mxu0
  %2622 = vmatpush.bf16.msra.mxu0 %v2549
  %2623 = vmatpush.bf16.msra.mxu0 %v2548
  %2624 = vmatpush.bf16.msra.mxu0 %v2547
  %2625 = vmatpush.bf16.msra.mxu0 %v2546
  %2626 = vmatpush.bf16.msra.mxu0 %v2545
  %2627 = vmatpush.bf16.msra.mxu0 %v2544
  %2628 = vmatpush.bf16.msra.mxu0 %v2543
  %2629 = vmatpush.bf16.msra.mxu0 %v2542
  %2630 = vmatmul.bf16.gmra.mxu0 %v2314
  %v2631 = vpop.f32.mrf.mxu0
  %v2632 = vadd.f32 %v2619, %v2631
  %v2633 = vpop.f32.mrf.mxu0
  %2634 = vdwg.mxu0
  %2635 = vmatpush.bf16.msra.mxu0 %v2557
  %2636 = vmatpush.bf16.msra.mxu0 %v2556
  %2637 = vmatpush.bf16.msra.mxu0 %v2555
  %2638 = vmatpush.bf16.msra.mxu0 %v2554
  %2639 = vmatpush.bf16.msra.mxu0 %v2553
  %2640 = vmatpush.bf16.msra.mxu0 %v2552
  %2641 = vmatpush.bf16.msra.mxu0 %v2551
  %2642 = vmatpush.bf16.msra.mxu0 %v2550
  %2643 = vmatmul.bf16.gmra.mxu0 %v2315
  %v2644 = vpop.f32.mrf.mxu0
  %v2645 = vadd.f32 %v2632, %v2644
  %v2646 = vpop.f32.mrf.mxu0
  %2647 = vdwg.mxu0
  %2648 = vmatpush.bf16.msra.mxu0 %v2565
  %2649 = vmatpush.bf16.msra.mxu0 %v2564
  %2650 = vmatpush.bf16.msra.mxu0 %v2563
  %2651 = vmatpush.bf16.msra.mxu0 %v2562
  %2652 = vmatpush.bf16.msra.mxu0 %v2561
  %2653 = vmatpush.bf16.msra.mxu0 %v2560
  %2654 = vmatpush.bf16.msra.mxu0 %v2559
  %2655 = vmatpush.bf16.msra.mxu0 %v2558
  %2656 = vmatmul.bf16.gmra.mxu0 %v2316
  %v2657 = vpop.f32.mrf.mxu0
  %v2658 = vadd.f32 %v2645, %v2657
  %v2659 = vpop.f32.mrf.mxu0
  %2660 = vdwg.mxu0
  %2661 = vmatpush.bf16.msra.mxu0 0
  %2662 = vmatpush.bf16.msra.mxu0 0
  %2663 = vmatpush.bf16.msra.mxu0 0
  %2664 = vmatpush.bf16.msra.mxu0 0
  %2665 = vmatpush.bf16.msra.mxu0 %v2569
  %2666 = vmatpush.bf16.msra.mxu0 %v2568
  %2667 = vmatpush.bf16.msra.mxu0 %v2567
  %2668 = vmatpush.bf16.msra.mxu0 %v2566
  %2669 = vmatmul.bf16.gmra.mxu0 %v2607
  %v2670 = vpop.f32.mrf.mxu0
  %v2671 = vadd.f32 %v2658, %v2670
  %v2672 = vpop.f32.mrf.mxu0
  %2673 = vdwg.mxu0
  %v2674 = vadd.f32 %v2295, %v2671
  %v2675 = vmax.f32 %v2674, 0.0
  %v2676 = vpack.c.bf16 %v2675, %v2675
  %v2677 = vld [vmem:[%s5] sm:$0xf]
  %v2678 = vld [vmem:[%s5 + $0x4] sm:$0xf]
  %v2679 = vld [vmem:[%s5 + $0x8] sm:$0xf]
  %v2680 = vld [vmem:[%s5 + $0xc] sm:$0xf]
  %v2681 = vld [vmem:[%s5 + $0x10] sm:$0xf]
  %v2682 = vld [vmem:[%s5 + $0x14] sm:$0xf]
  %v2683 = vld [vmem:[%s5 + $0x18] sm:$0xf]
  %v2684 = vld [vmem:[%s5 + $0x1c] sm:$0xf]
  %v2685 = vld [vmem:[%s5 + $0x20] sm:$0xf]
  %v2686 = vld [vmem:[%s5 + $0x24] sm:$0xf]
  %v2687 = vld [vmem:[%s5 + $0x28] sm:$0xf]
  %v2688 = vld [vmem:[%s5 + $0x2c] sm:$0xf]
  %v2689 = vld [vmem:[%s5 + $0x30] sm:$0xf]
  %v2690 = vld [vmem:[%s5 + $0x34] sm:$0xf]
  %v2691 = vld [vmem:[%s5 + $0x38] sm:$0xf]
  %v2692 = vld [vmem:[%s5 + $0x3c] sm:$0xf]
  %v2693 = vld [vmem:[%s7 + $0x3] sm:$0x1]
  %v2695 = vperm.slane %v2693, 0
  %v2713 = vunpack.c.l.b16 %v2677
  %v2714 = vunpack.c.l.b16 %v2678
  %v2715 = vunpack.c.l.b16 %v2679
  %v2716 = vunpack.c.l.b16 %v2680
  %v2717 = vunpack.c.l.b16 %v2681
  %v2718 = vunpack.c.l.b16 %v2682
  %v2719 = vunpack.c.l.b16 %v2683
  %v2720 = vunpack.c.l.b16 %v2684
  %v2721 = vunpack.c.l.b16 %v2685
  %v2722 = vunpack.c.l.b16 %v2686
  %v2723 = vunpack.c.l.b16 %v2687
  %v2724 = vunpack.c.l.b16 %v2688
  %v2725 = vunpack.c.l.b16 %v2689
  %v2726 = vunpack.c.l.b16 %v2690
  %v2727 = vunpack.c.l.b16 %v2691
  %v2728 = vunpack.c.l.b16 %v2692
  %v2729 = vpack.c.b16 %v2714, %v2713
  %v2730 = vpack.c.b16 %v2716, %v2715
  %v2731 = vpack.c.b16 %v2718, %v2717
  %v2732 = vpack.c.b16 %v2720, %v2719
  %v2733 = vpack.c.b16 %v2722, %v2721
  %v2734 = vpack.c.b16 %v2724, %v2723
  %v2735 = vpack.c.b16 %v2726, %v2725
  %v2736 = vpack.c.b16 %v2728, %v2727
  %2745 = vmatpush.bf16.msra.mxu0 %v2736
  %2746 = vmatpush.bf16.msra.mxu0 %v2735
  %2747 = vmatpush.bf16.msra.mxu0 %v2734
  %2748 = vmatpush.bf16.msra.mxu0 %v2733
  %2749 = vmatpush.bf16.msra.mxu0 %v2732
  %2750 = vmatpush.bf16.msra.mxu0 %v2731
  %2751 = vmatpush.bf16.msra.mxu0 %v2730
  %2752 = vmatpush.bf16.msra.mxu0 %v2729
  %2753 = vmatmul.bf16.gmra.mxu0 %v2676
  %v2754 = vpop.f32.mrf.mxu0
  %v2755 = vadd.f32 %v2695, %v2754
  %v2756 = vpop.f32.mrf.mxu0
  %2757 = vdwg.mxu0
  %v2758 = vmax.f32 %v2755, 0.0
  %v2759 = vld [vmem:[%s7 + $0x4] sm:$0x1]
  %v2760 = vld [vmem:[%s7 + $0x5] sm:$0x1]
  %v2762 = vperm.slane %v2759, 0
  %v2764 = vmul.f32 %v2758, %v2762
  %v2765 = vsel %vm1090, %v2764, 0.0
  %2766 = vadd.xlane.f32.xlu0 %v2765
  %v2767 = vpop.xlane.xlu0 %2766
  %v2769 = vperm.slane %v2760, 0
  %v2771 = vadd.f32 %v2767, %v2769
  %vm2772 = vcmask 1024
  %2773 = vst.msk [vmem:[%s8] sm:$0x3] %vm2772, %v2771
  // Predicated region
  $region30: #{reward_model_forward.1} parent=0 // pred_check
    _
  $region31: #{reward_model_forward.1} parent=0 // pred_check_branch
    %2775 = sbr.rel (0) target = $region33
  $region32: #{reward_model_forward.1} parent=0 // pred_region
    _
  $region33: #{reward_model_forward.1} parent=0 // pred_fallthru
    _
  // Predicated region
  $region34: #{reward_model_forward.1} parent=0 // pred_check
    _
  $region35: #{reward_model_forward.1} parent=0 // pred_check_branch
    %2777 = sbr.rel (0) target = $region37
  $region36: #{reward_model_forward.1} parent=0 // pred_region
    _
  $region37: #{reward_model_forward.1} parent=0 // pred_fallthru
    _

</llo_original>
